<compile_context>
chip_gen: v7x
topology: tpu7x:2x2x1
jax: 0.10.0
libtpu: 0.0.40
codegen_flags: <defaults>
</compile_context>

<pallas_src>
import jax
import jax.numpy as jnp
from jax.experimental import pallas as pl
from jax.experimental.pallas import tpu as pltpu

BN_EPS = 1e-5
# Finite stand-in for -inf when masking invalid max-pool taps.  Safe because
# post-BN activations are many orders of magnitude below 1e30, so a masked tap
# can never win the max, and no inf*0 NaNs can appear.
NEG_BIG = -1e30


# --------------------------------------------------------------------------
# Fused whole-cell kernel builder
# --------------------------------------------------------------------------
def _build_cell_kernel(op_names, indices, concat, op_param_idx, C, H, W):
    HW = H * W
    steps = len(op_names) // 2

    def kernel(*args):
        st_ref = args[-1]            # VMEM scratch [2+steps, C, HW]: DAG states
        out_ref = args[-2]           # [len(concat)*C, HW]
        refs = args
        s01_ref, aux_ref, wpre_ref, spre_ref, bpre_ref = refs[:5]

        aux = aux_ref[...]           # [8, HW] f32 (lane-dense auxiliary table)
        mask_l = aux[0:1, :]         # (w > 0)
        mask_r = aux[1:2, :]         # (w < W-1)
        mask_t = aux[2:3, :]         # (h > 0)
        mask_b = aux[3:4, :]         # (h < H-1)
        inv_cnt = aux[4:5, :]        # 1 / valid 3x3 window count

        def roll(x, s):
            # Static, positive-normalised lane rotation; lanes index the
            # flattened (h, w) position, so +-1 is a W shift and +-W an H shift.
            return pltpu.roll(x, shift=s % HW, axis=1)

        def pw_conv_bn(x, iw, isc, ish):
            # 1x1 conv on the MXU (bf16 operands, f32 accumulation) followed by
            # the folded BatchNorm scale/shift ([C,1] broadcast along lanes).
            y = jnp.dot(refs[iw][...], x.astype(jnp.bfloat16),
                        preferred_element_type=jnp.float32)
            return y * refs[isc][...] + refs[ish][...]

        def col_taps_zero(x):
            # (h, w-1) and (h, w+1) neighbours with zero padding at the borders.
            return roll(x, 1) * mask_l, roll(x, -1) * mask_r

        def dw_conv3x3(x, idw):
            # Depthwise 3x3, stride 1, zero padding 1.  Column taps are hoisted
            # and shared across the three kernel rows; the +-W row shifts are
            # applied to the per-row weighted sums (4 rolls total per conv).
            xl, xr = col_taps_zero(x)
            w = refs[idw]            # [9, C, 1] (row k = tap ky*3+kx)
            rows = [xl * w[3 * d + 0] + x * w[3 * d + 1] + xr * w[3 * d + 2]
                    for d in range(3)]
            return (roll(rows[0], W) * mask_t + rows[1]
                    + roll(rows[2], -W) * mask_b)

        def sep_conv(x, blocks):
            h = x
            for (idw, ipw, isc, ish) in blocks:   # (ReLU->dw3x3->pw1x1->BN) x 2
                h = dw_conv3x3(jnp.maximum(h, 0.0), idw)
                h = pw_conv_bn(h, ipw, isc, ish)
            return h

        def max_pool(x):
            # PyTorch MaxPool2d(3, stride=1, padding=1): padding acts as -inf.
            bl = mask_l > 0.5
            br = mask_r > 0.5
            bt = mask_t > 0.5
            bb = mask_b > 0.5
            cm = jnp.maximum(
                jnp.maximum(jnp.where(bl, roll(x, 1), NEG_BIG), x),
                jnp.where(br, roll(x, -1), NEG_BIG))
            return jnp.maximum(
                jnp.maximum(jnp.where(bt, roll(cm, W), NEG_BIG), cm),
                jnp.where(bb, roll(cm, -W), NEG_BIG))

        def avg_pool(x):
            # AvgPool2d(3, stride=1, padding=1, count_include_pad=False).
            xl, xr = col_taps_zero(x)
            cs = xl + x + xr
            return (roll(cs, W) * mask_t + cs + roll(cs, -W) * mask_b) * inv_cnt

        def apply_op(name, pidx, x):
            if name == "skip_connect":
                return x
            if name == "max_pool_3x3":
                return max_pool(x)
            if name == "avg_pool_3x3":
                return avg_pool(x)
            if name == "sep_conv_3x3":
                return sep_conv(x, pidx)
            raise NotImplementedError(name)

        # ---- fused preprocess0/1: ReLU -> block-diagonal 1x1 conv -> BN ----
        x01 = jnp.maximum(s01_ref[...], 0.0)
        y = jnp.dot(wpre_ref[...], x01.astype(jnp.bfloat16),
                    preferred_element_type=jnp.float32)
        y = y * spre_ref[...] + bpre_ref[...]
        st_ref[0] = y[:C, :]
        st_ref[1] = y[C:2 * C, :]

        # ---- cell DAG, states staged through the VMEM scratch ----
        for i in range(steps):
            h1 = apply_op(op_names[2 * i], op_param_idx[2 * i],
                          st_ref[indices[2 * i]])
            h2 = apply_op(op_names[2 * i + 1], op_param_idx[2 * i + 1],
                          st_ref[indices[2 * i + 1]])
            st_ref[2 + i] = h1 + h2      # drop_path: eval-mode no-op

        # single full-width, unmasked, lane-dense store of the channel concat
        out_ref[...] = jnp.concatenate([st_ref[ci] for ci in concat], axis=0)

    return kernel


# --------------------------------------------------------------------------
# Deterministic parameter initialization (synthetic weights, no checkpoint)
# --------------------------------------------------------------------------
def _fold_bn(key, c_out):
    kg, kb, km, kv = jax.random.split(key, 4)
    gamma = 1.0 + 0.1 * jax.random.normal(kg, (c_out,), jnp.float32)
    beta = 0.1 * jax.random.normal(kb, (c_out,), jnp.float32)
    mean = 0.1 * jax.random.normal(km, (c_out,), jnp.float32)
    var = jnp.abs(jax.random.normal(kv, (c_out,), jnp.float32)) * 0.1 + 1.0
    scale = gamma / jnp.sqrt(var + BN_EPS)
    shift = beta - mean * scale
    return scale, shift


# --------------------------------------------------------------------------
# Cell (JAX/Pallas port of the PyTorch module, inference mode)
# --------------------------------------------------------------------------
class Cell:
    def __init__(self, genotype, c_prev, c_prev_prev, C, reductions, key):
        self.reductions = reductions
        # TODO(synk): FactorizedReduce preprocess and stride-2 reduction-cell
        # ops are only reachable for specific reduction histories; this port
        # implements the normal-cell path (reductions[-1] == False).
        assert not reductions[-1], "reduction cell (stride-2 ops) not implemented"
        use_fr = (len(reductions) >= 3 and (not reductions[-1])
                  and reductions[-2] and (not reductions[-3]))
        assert not use_fr, "FactorizedReduce preprocess path not implemented"

        op_names, indices = zip(*genotype["normal"])
        concat = list(genotype["normal_concat"])
        assert len(op_names) == len(indices)
        self._steps = len(op_names) // 2
        self._concat = concat
        self.multiplier = len(concat)
        self._indices = tuple(indices)
        self._op_names = tuple(op_names)
        self.C = C
        self.c_prev_prev = c_prev_prev
        self.c_prev = c_prev

        keys = jax.random.split(key, 2 + len(op_names))

        # --- fused preprocess0/1: block-diagonal 1x1 weight + folded BN ------
        # PyTorch 1x1 conv weights are [C_out, C_in, 1, 1]; kept in [C_out, C_in]
        # orientation so the kernel computes y = W @ x with x = [C_in, H*W].
        k0w, k0b = jax.random.split(keys[0])
        k1w, k1b = jax.random.split(keys[1])
        w0 = 0.1 * jax.random.normal(k0w, (C, c_prev_prev), jnp.float32)  # preprocess0
        w1 = 0.1 * jax.random.normal(k1w, (C, c_prev), jnp.float32)       # preprocess1
        s0c, b0c = _fold_bn(k0b, C)
        s1c, b1c = _fold_bn(k1b, C)
        wpre = jnp.zeros((2 * C, c_prev_prev + c_prev), jnp.float32)
        wpre = wpre.at[:C, :c_prev_prev].set(w0)
        wpre = wpre.at[C:, c_prev_prev:].set(w1)
        self._wpre = wpre.astype(jnp.bfloat16)
        self._spre = jnp.concatenate([s0c, s1c]).reshape(2 * C, 1).astype(jnp.float32)
        self._bpre = jnp.concatenate([b0c, b1c]).reshape(2 * C, 1).astype(jnp.float32)

        # --- per-op parameters (flat ref list; kernel refs 5..) --------------
        self._param_arrays = []

        def add(a):
            self._param_arrays.append(a)
            return 5 + len(self._param_arrays) - 1   # refs[0:5] = s01, aux, wpre, spre, bpre

        self._op_param_idx = []
        for i, name in enumerate(op_names):
            if name == "sep_conv_3x3":
                blocks = []
                for kb in jax.random.split(keys[2 + i], 2):
                    kd, kp, kbn = jax.random.split(kb, 3)
                    # PyTorch depthwise weight [C,1,3,3] stored as [9, C, 1]
                    # (row k <-> tap (ky, kx) = (k//3, k%3)).
                    dw = 0.1 * jax.random.normal(kd, (9, C, 1), jnp.float32)
                    pw = 0.1 * jax.random.normal(kp, (C, C), jnp.float32)
                    scale, shift = _fold_bn(kbn, C)
                    blocks.append((add(dw),
                                   add(pw.astype(jnp.bfloat16)),
                                   add(scale.reshape(C, 1).astype(jnp.float32)),
                                   add(shift.reshape(C, 1).astype(jnp.float32))))
                self._op_param_idx.append(tuple(blocks))
            elif name in ("skip_connect", "max_pool_3x3", "avg_pool_3x3"):
                self._op_param_idx.append(None)
            else:
                raise NotImplementedError(f"op {name} not implemented in this port")

    def __call__(self, s0_nchw, s1_nchw, drop_prob=0.0):
        # drop_path is training-only in the reference forward -> eval no-op.
        N, c00, H, W = s0_nchw.shape
        n1, c10, H1, W1 = s1_nchw.shape
        assert (N, H, W) == (n1, H1, W1)
        assert c00 == self.c_prev_prev and c10 == self.c_prev
        HW = H * W
        C = self.C
        out_rows = self.multiplier * C

        # Boundary glue only: NCHW -> [N, Cin0+Cin1, H*W].  No transpose needed
        # because the kernel keeps channels on sublanes and the flattened
        # spatial dim on lanes (HW = 256 lanes -> everything lane-dense).
        s01 = jnp.concatenate(
            [s0_nchw.reshape(N, c00, HW), s1_nchw.reshape(N, c10, HW)],
            axis=1).astype(jnp.float32)

        # Per-(h, w) boundary masks and inverse 3x3 window counts, packed into
        # one lane-dense [8, HW] auxiliary input (rows 5..7 are unused padding).
        iw = jnp.arange(W)
        ih = jnp.arange(H)
        mask_l = jnp.tile((iw > 0).astype(jnp.float32), H)
        mask_r = jnp.tile((iw < W - 1).astype(jnp.float32), H)
        mask_t = jnp.repeat((ih > 0).astype(jnp.float32), W)
        mask_b = jnp.repeat((ih < H - 1).astype(jnp.float32), W)
        cw = 3.0 - (iw == 0).astype(jnp.float32) - (iw == W - 1).astype(jnp.float32)
        ch = 3.0 - (ih == 0).astype(jnp.float32) - (ih == H - 1).astype(jnp.float32)
        inv_cnt = (1.0 / (ch[:, None] * cw[None, :])).reshape(HW)
        aux = jnp.zeros((8, HW), jnp.float32)
        aux = aux.at[0].set(mask_l).at[1].set(mask_r)
        aux = aux.at[2].set(mask_t).at[3].set(mask_b).at[4].set(inv_cnt)

        kernel = _build_cell_kernel(self._op_names, self._indices, self._concat,
                                    self._op_param_idx, C, H, W)

        inputs = [s01, aux, self._wpre, self._spre, self._bpre] + list(self._param_arrays)

        def batched(rows):
            return pl.BlockSpec((None, rows, HW), lambda n: (n, 0, 0))

        def const(shape):
            return pl.BlockSpec(shape, lambda n, nd=len(shape): (0,) * nd)

        in_specs = ([batched(c00 + c10), const((8, HW)),
                     const(tuple(self._wpre.shape)), const(tuple(self._spre.shape)),
                     const(tuple(self._bpre.shape))]
                    + [const(tuple(a.shape)) for a in self._param_arrays])

        out = pl.pallas_call(
            kernel,
            out_shape=jax.ShapeDtypeStruct((N, out_rows, HW), jnp.float32),
            grid=(N,),                      # one image per step; on v7x the two
            in_specs=in_specs,              # TensorCores split the batch
            out_specs=batched(out_rows),
            scratch_shapes=[pltpu.VMEM((2 + self._steps, C, HW), jnp.float32)],
            compiler_params=pltpu.CompilerParams(
                dimension_semantics=("parallel",)),
        )(*inputs)

        # [N, mult*C, H*W] -> NCHW (matches torch.cat along the channel dim)
        return out.reshape(N, out_rows, H, W)


# --------------------------------------------------------------------------
if __name__ == "__main__":
    N, H, W = 2, 16, 16
    c_prev_prev, c_prev, C = 16, 16, 32

    genotype = {
        "normal": [
            ("sep_conv_3x3", 0), ("skip_connect", 1),
            ("max_pool_3x3", 0), ("avg_pool_3x3", 1),
            ("skip_connect", 0), ("sep_conv_3x3", 2),
            ("skip_connect", 2), ("max_pool_3x3", 3),
        ],
        "normal_concat": [2, 3, 4, 5],
        "reduce": [
            ("max_pool_3x3", 0), ("skip_connect", 1),
            ("max_pool_3x3", 0), ("skip_connect", 2),
            ("max_pool_3x3", 0), ("skip_connect", 2),
            ("max_pool_3x3", 0), ("skip_connect", 3),
        ],
        "reduce_concat": [2, 3, 4, 5],
    }
    reductions = [False]  # normal cell

    key = jax.random.PRNGKey(0)
    kcell, k0, k1 = jax.random.split(key, 3)

    cell = Cell(genotype, c_prev, c_prev_prev, C, reductions, kcell)

    s0 = jax.random.normal(k0, (N, c_prev_prev, H, W), jnp.float32)
    s1 = jax.random.normal(k1, (N, c_prev, H, W), jnp.float32)

    out = cell(s0, s1, drop_prob=0.2)
    out = jax.block_until_ready(out)
    assert out.shape == (N, C * len(genotype["normal_concat"]), H, W), out.shape
    assert bool(jnp.all(jnp.isfinite(out)))
    print("KERNEL_OK")
</pallas_src>

<mosaic_0001>
module attributes {stable_mosaic.version = 11 : i64} {
  func.func @kernel(%arg0: i32, %arg1: memref<1x32x256xf32, #tpu.memory_space<vmem>>, %arg2: memref<8x256xf32, #tpu.memory_space<vmem>>, %arg3: memref<64x32xbf16, #tpu.memory_space<vmem>>, %arg4: memref<64x1xf32, #tpu.memory_space<vmem>>, %arg5: memref<64x1xf32, #tpu.memory_space<vmem>>, %arg6: memref<9x32x1xf32, #tpu.memory_space<vmem>>, %arg7: memref<32x32xbf16, #tpu.memory_space<vmem>>, %arg8: memref<32x1xf32, #tpu.memory_space<vmem>>, %arg9: memref<32x1xf32, #tpu.memory_space<vmem>>, %arg10: memref<9x32x1xf32, #tpu.memory_space<vmem>>, %arg11: memref<32x32xbf16, #tpu.memory_space<vmem>>, %arg12: memref<32x1xf32, #tpu.memory_space<vmem>>, %arg13: memref<32x1xf32, #tpu.memory_space<vmem>>, %arg14: memref<9x32x1xf32, #tpu.memory_space<vmem>>, %arg15: memref<32x32xbf16, #tpu.memory_space<vmem>>, %arg16: memref<32x1xf32, #tpu.memory_space<vmem>>, %arg17: memref<32x1xf32, #tpu.memory_space<vmem>>, %arg18: memref<9x32x1xf32, #tpu.memory_space<vmem>>, %arg19: memref<32x32xbf16, #tpu.memory_space<vmem>>, %arg20: memref<32x1xf32, #tpu.memory_space<vmem>>, %arg21: memref<32x1xf32, #tpu.memory_space<vmem>>, %arg22: memref<1x128x256xf32, #tpu.memory_space<vmem>>, %arg23: memref<6x32x256xf32, #tpu.memory_space<vmem>>) attributes {dimension_semantics = [#tpu.dimension_semantics<parallel>], iteration_bounds = array<i64: 2>, scalar_prefetch = 0 : i64, scratch_operands = 1 : i64, tpu.core_type = #tpu.core_type<tc>, window_params = [{transform_indices = @transform_0, window_bounds = array<i64: 1, 32, 256>}, {pipeline_mode = #tpu.pipeline_mode<synchronous>, transform_indices = @transform_1, window_bounds = array<i64: 8, 256>}, {pipeline_mode = #tpu.pipeline_mode<synchronous>, transform_indices = @transform_2, window_bounds = array<i64: 64, 32>}, {pipeline_mode = #tpu.pipeline_mode<synchronous>, transform_indices = @transform_3, window_bounds = array<i64: 64, 1>}, {pipeline_mode = #tpu.pipeline_mode<synchronous>, transform_indices = @transform_4, window_bounds = array<i64: 64, 1>}, {pipeline_mode = #tpu.pipeline_mode<synchronous>, transform_indices = @transform_5, window_bounds = array<i64: 9, 32, 1>}, {pipeline_mode = #tpu.pipeline_mode<synchronous>, transform_indices = @transform_6, window_bounds = array<i64: 32, 32>}, {pipeline_mode = #tpu.pipeline_mode<synchronous>, transform_indices = @transform_7, window_bounds = array<i64: 32, 1>}, {pipeline_mode = #tpu.pipeline_mode<synchronous>, transform_indices = @transform_8, window_bounds = array<i64: 32, 1>}, {pipeline_mode = #tpu.pipeline_mode<synchronous>, transform_indices = @transform_9, window_bounds = array<i64: 9, 32, 1>}, {pipeline_mode = #tpu.pipeline_mode<synchronous>, transform_indices = @transform_10, window_bounds = array<i64: 32, 32>}, {pipeline_mode = #tpu.pipeline_mode<synchronous>, transform_indices = @transform_11, window_bounds = array<i64: 32, 1>}, {pipeline_mode = #tpu.pipeline_mode<synchronous>, transform_indices = @transform_12, window_bounds = array<i64: 32, 1>}, {pipeline_mode = #tpu.pipeline_mode<synchronous>, transform_indices = @transform_13, window_bounds = array<i64: 9, 32, 1>}, {pipeline_mode = #tpu.pipeline_mode<synchronous>, transform_indices = @transform_14, window_bounds = array<i64: 32, 32>}, {pipeline_mode = #tpu.pipeline_mode<synchronous>, transform_indices = @transform_15, window_bounds = array<i64: 32, 1>}, {pipeline_mode = #tpu.pipeline_mode<synchronous>, transform_indices = @transform_16, window_bounds = array<i64: 32, 1>}, {pipeline_mode = #tpu.pipeline_mode<synchronous>, transform_indices = @transform_17, window_bounds = array<i64: 9, 32, 1>}, {pipeline_mode = #tpu.pipeline_mode<synchronous>, transform_indices = @transform_18, window_bounds = array<i64: 32, 32>}, {pipeline_mode = #tpu.pipeline_mode<synchronous>, transform_indices = @transform_19, window_bounds = array<i64: 32, 1>}, {pipeline_mode = #tpu.pipeline_mode<synchronous>, transform_indices = @transform_20, window_bounds = array<i64: 32, 1>}, {transform_indices = @transform_21, window_bounds = array<i64: 1, 128, 256>}]} {
    %c0 = arith.constant 0 : index
    %c0_0 = arith.constant 0 : index
    %0 = vector.load %arg2[%c0, %c0_0] : memref<8x256xf32, #tpu.memory_space<vmem>>, vector<8x256xf32>
    %1 = vector.extract_strided_slice %0 {offsets = [0, 0], sizes = [1, 256], strides = [1, 1]} : vector<8x256xf32> to vector<1x256xf32>
    %2 = vector.extract_strided_slice %0 {offsets = [1, 0], sizes = [1, 256], strides = [1, 1]} : vector<8x256xf32> to vector<1x256xf32>
    %3 = vector.extract_strided_slice %0 {offsets = [2, 0], sizes = [1, 256], strides = [1, 1]} : vector<8x256xf32> to vector<1x256xf32>
    %4 = vector.extract_strided_slice %0 {offsets = [3, 0], sizes = [1, 256], strides = [1, 1]} : vector<8x256xf32> to vector<1x256xf32>
    %5 = vector.extract_strided_slice %0 {offsets = [4, 0], sizes = [1, 256], strides = [1, 1]} : vector<8x256xf32> to vector<1x256xf32>
    %c0_1 = arith.constant 0 : index
    %c0_2 = arith.constant 0 : index
    %c0_3 = arith.constant 0 : index
    %6 = vector.load %arg1[%c0_1, %c0_2, %c0_3] : memref<1x32x256xf32, #tpu.memory_space<vmem>>, vector<1x32x256xf32>
    %7 = vector.shape_cast %6 : vector<1x32x256xf32> to vector<32x256xf32>
    %cst = arith.constant 0.000000e+00 : f32
    %8 = vector.broadcast %cst : f32 to vector<32x256xf32>
    %9 = arith.maximumf %7, %8 : vector<32x256xf32>
    %c0_4 = arith.constant 0 : index
    %c0_5 = arith.constant 0 : index
    %10 = vector.load %arg3[%c0_4, %c0_5] : memref<64x32xbf16, #tpu.memory_space<vmem>>, vector<64x32xbf16>
    %11 = arith.truncf %9 : vector<32x256xf32> to vector<32x256xbf16>
    %cst_6 = arith.constant dense<0.000000e+00> : vector<64x256xf32>
    %12 = tpu.matmul %10, %11, %cst_6 {dimension_numbers = #tpu.dot_dimension_numbers<[1], [0], [0], [1], [0, 0, 1, 1], [], []>} : vector<64x32xbf16>, vector<32x256xbf16>, vector<64x256xf32> -> vector<64x256xf32>
    %c0_7 = arith.constant 0 : index
    %c0_8 = arith.constant 0 : index
    %13 = vector.load %arg4[%c0_7, %c0_8] : memref<64x1xf32, #tpu.memory_space<vmem>>, vector<64x1xf32>
    %14 = vector.broadcast %13 : vector<64x1xf32> to vector<64x256xf32>
    %15 = arith.mulf %12, %14 : vector<64x256xf32>
    %c0_9 = arith.constant 0 : index
    %c0_10 = arith.constant 0 : index
    %16 = vector.load %arg5[%c0_9, %c0_10] : memref<64x1xf32, #tpu.memory_space<vmem>>, vector<64x1xf32>
    %17 = vector.broadcast %16 : vector<64x1xf32> to vector<64x256xf32>
    %18 = arith.addf %15, %17 : vector<64x256xf32>
    %19 = vector.extract_strided_slice %18 {offsets = [0, 0], sizes = [32, 256], strides = [1, 1]} : vector<64x256xf32> to vector<32x256xf32>
    %c0_11 = arith.constant 0 : index
    %c0_12 = arith.constant 0 : index
    %c0_13 = arith.constant 0 : index
    %20 = vector.load %arg23[%c0_11, %c0_12, %c0_13] : memref<6x32x256xf32, #tpu.memory_space<vmem>>, vector<1x32x256xf32>
    %21 = vector.shape_cast %20 : vector<1x32x256xf32> to vector<32x256xf32>
    %22 = vector.shape_cast %19 : vector<32x256xf32> to vector<1x32x256xf32>
    tpu.vector_store %arg23[%c0_11, %c0_12, %c0_13], %22 {strides = array<i32>} : memref<6x32x256xf32, #tpu.memory_space<vmem>>, vector<1x32x256xf32>,
    %23 = vector.extract_strided_slice %18 {offsets = [32, 0], sizes = [32, 256], strides = [1, 1]} : vector<64x256xf32> to vector<32x256xf32>
    %c1 = arith.constant 1 : index
    %c0_14 = arith.constant 0 : index
    %c0_15 = arith.constant 0 : index
    %24 = vector.load %arg23[%c1, %c0_14, %c0_15] : memref<6x32x256xf32, #tpu.memory_space<vmem>>, vector<1x32x256xf32>
    %25 = vector.shape_cast %24 : vector<1x32x256xf32> to vector<32x256xf32>
    %26 = vector.shape_cast %23 : vector<32x256xf32> to vector<1x32x256xf32>
    tpu.vector_store %arg23[%c1, %c0_14, %c0_15], %26 {strides = array<i32>} : memref<6x32x256xf32, #tpu.memory_space<vmem>>, vector<1x32x256xf32>,
    %c0_16 = arith.constant 0 : index
    %c0_17 = arith.constant 0 : index
    %c0_18 = arith.constant 0 : index
    %27 = vector.load %arg23[%c0_16, %c0_17, %c0_18] : memref<6x32x256xf32, #tpu.memory_space<vmem>>, vector<1x32x256xf32>
    %28 = vector.shape_cast %27 : vector<1x32x256xf32> to vector<32x256xf32>
    %cst_19 = arith.constant 0.000000e+00 : f32
    %29 = vector.broadcast %cst_19 : f32 to vector<32x256xf32>
    %30 = arith.maximumf %28, %29 : vector<32x256xf32>
    %c1_i32 = arith.constant 1 : i32
    %31 = tpu.dynamic_rotate %30 by %c1_i32 dim 1 : vector<32x256xf32>, i32 -> vector<32x256xf32>
    %32 = vector.broadcast %1 : vector<1x256xf32> to vector<32x256xf32>
    %33 = arith.mulf %31, %32 : vector<32x256xf32>
    %c255_i32 = arith.constant 255 : i32
    %34 = tpu.dynamic_rotate %30 by %c255_i32 dim 1 : vector<32x256xf32>, i32 -> vector<32x256xf32>
    %35 = vector.broadcast %2 : vector<1x256xf32> to vector<32x256xf32>
    %36 = arith.mulf %34, %35 : vector<32x256xf32>
    %c0_20 = arith.constant 0 : index
    %c0_21 = arith.constant 0 : index
    %c0_22 = arith.constant 0 : index
    %37 = vector.load %arg6[%c0_20, %c0_21, %c0_22] : memref<9x32x1xf32, #tpu.memory_space<vmem>>, vector<1x32x1xf32>
    %38 = vector.shape_cast %37 : vector<1x32x1xf32> to vector<32x1xf32>
    %39 = vector.broadcast %38 : vector<32x1xf32> to vector<32x256xf32>
    %40 = arith.mulf %33, %39 : vector<32x256xf32>
    %c1_23 = arith.constant 1 : index
    %c0_24 = arith.constant 0 : index
    %c0_25 = arith.constant 0 : index
    %41 = vector.load %arg6[%c1_23, %c0_24, %c0_25] : memref<9x32x1xf32, #tpu.memory_space<vmem>>, vector<1x32x1xf32>
    %42 = vector.shape_cast %41 : vector<1x32x1xf32> to vector<32x1xf32>
    %43 = vector.broadcast %42 : vector<32x1xf32> to vector<32x256xf32>
    %44 = arith.mulf %30, %43 : vector<32x256xf32>
    %45 = arith.addf %40, %44 : vector<32x256xf32>
    %c2 = arith.constant 2 : index
    %c0_26 = arith.constant 0 : index
    %c0_27 = arith.constant 0 : index
    %46 = vector.load %arg6[%c2, %c0_26, %c0_27] : memref<9x32x1xf32, #tpu.memory_space<vmem>>, vector<1x32x1xf32>
    %47 = vector.shape_cast %46 : vector<1x32x1xf32> to vector<32x1xf32>
    %48 = vector.broadcast %47 : vector<32x1xf32> to vector<32x256xf32>
    %49 = arith.mulf %36, %48 : vector<32x256xf32>
    %50 = arith.addf %45, %49 : vector<32x256xf32>
    %c3 = arith.constant 3 : index
    %c0_28 = arith.constant 0 : index
    %c0_29 = arith.constant 0 : index
    %51 = vector.load %arg6[%c3, %c0_28, %c0_29] : memref<9x32x1xf32, #tpu.memory_space<vmem>>, vector<1x32x1xf32>
    %52 = vector.shape_cast %51 : vector<1x32x1xf32> to vector<32x1xf32>
    %53 = vector.broadcast %52 : vector<32x1xf32> to vector<32x256xf32>
    %54 = arith.mulf %33, %53 : vector<32x256xf32>
    %c4 = arith.constant 4 : index
    %c0_30 = arith.constant 0 : index
    %c0_31 = arith.constant 0 : index
    %55 = vector.load %arg6[%c4, %c0_30, %c0_31] : memref<9x32x1xf32, #tpu.memory_space<vmem>>, vector<1x32x1xf32>
    %56 = vector.shape_cast %55 : vector<1x32x1xf32> to vector<32x1xf32>
    %57 = vector.broadcast %56 : vector<32x1xf32> to vector<32x256xf32>
    %58 = arith.mulf %30, %57 : vector<32x256xf32>
    %59 = arith.addf %54, %58 : vector<32x256xf32>
    %c5 = arith.constant 5 : index
    %c0_32 = arith.constant 0 : index
    %c0_33 = arith.constant 0 : index
    %60 = vector.load %arg6[%c5, %c0_32, %c0_33] : memref<9x32x1xf32, #tpu.memory_space<vmem>>, vector<1x32x1xf32>
    %61 = vector.shape_cast %60 : vector<1x32x1xf32> to vector<32x1xf32>
    %62 = vector.broadcast %61 : vector<32x1xf32> to vector<32x256xf32>
    %63 = arith.mulf %36, %62 : vector<32x256xf32>
    %64 = arith.addf %59, %63 : vector<32x256xf32>
    %c6 = arith.constant 6 : index
    %c0_34 = arith.constant 0 : index
    %c0_35 = arith.constant 0 : index
    %65 = vector.load %arg6[%c6, %c0_34, %c0_35] : memref<9x32x1xf32, #tpu.memory_space<vmem>>, vector<1x32x1xf32>
    %66 = vector.shape_cast %65 : vector<1x32x1xf32> to vector<32x1xf32>
    %67 = vector.broadcast %66 : vector<32x1xf32> to vector<32x256xf32>
    %68 = arith.mulf %33, %67 : vector<32x256xf32>
    %c7 = arith.constant 7 : index
    %c0_36 = arith.constant 0 : index
    %c0_37 = arith.constant 0 : index
    %69 = vector.load %arg6[%c7, %c0_36, %c0_37] : memref<9x32x1xf32, #tpu.memory_space<vmem>>, vector<1x32x1xf32>
    %70 = vector.shape_cast %69 : vector<1x32x1xf32> to vector<32x1xf32>
    %71 = vector.broadcast %70 : vector<32x1xf32> to vector<32x256xf32>
    %72 = arith.mulf %30, %71 : vector<32x256xf32>
    %73 = arith.addf %68, %72 : vector<32x256xf32>
    %c8 = arith.constant 8 : index
    %c0_38 = arith.constant 0 : index
    %c0_39 = arith.constant 0 : index
    %74 = vector.load %arg6[%c8, %c0_38, %c0_39] : memref<9x32x1xf32, #tpu.memory_space<vmem>>, vector<1x32x1xf32>
    %75 = vector.shape_cast %74 : vector<1x32x1xf32> to vector<32x1xf32>
    %76 = vector.broadcast %75 : vector<32x1xf32> to vector<32x256xf32>
    %77 = arith.mulf %36, %76 : vector<32x256xf32>
    %78 = arith.addf %73, %77 : vector<32x256xf32>
    %c16_i32 = arith.constant 16 : i32
    %79 = tpu.dynamic_rotate %50 by %c16_i32 dim 1 : vector<32x256xf32>, i32 -> vector<32x256xf32>
    %80 = vector.broadcast %3 : vector<1x256xf32> to vector<32x256xf32>
    %81 = arith.mulf %79, %80 : vector<32x256xf32>
    %82 = arith.addf %81, %64 : vector<32x256xf32>
    %c240_i32 = arith.constant 240 : i32
    %83 = tpu.dynamic_rotate %78 by %c240_i32 dim 1 : vector<32x256xf32>, i32 -> vector<32x256xf32>
    %84 = vector.broadcast %4 : vector<1x256xf32> to vector<32x256xf32>
    %85 = arith.mulf %83, %84 : vector<32x256xf32>
    %86 = arith.addf %82, %85 : vector<32x256xf32>
    %c0_40 = arith.constant 0 : index
    %c0_41 = arith.constant 0 : index
    %87 = vector.load %arg7[%c0_40, %c0_41] : memref<32x32xbf16, #tpu.memory_space<vmem>>, vector<32x32xbf16>
    %88 = arith.truncf %86 : vector<32x256xf32> to vector<32x256xbf16>
    %cst_42 = arith.constant dense<0.000000e+00> : vector<32x256xf32>
    %89 = tpu.matmul %87, %88, %cst_42 {dimension_numbers = #tpu.dot_dimension_numbers<[1], [0], [0], [1], [0, 0, 1, 1], [], []>} : vector<32x32xbf16>, vector<32x256xbf16>, vector<32x256xf32> -> vector<32x256xf32>
    %c0_43 = arith.constant 0 : index
    %c0_44 = arith.constant 0 : index
    %90 = vector.load %arg8[%c0_43, %c0_44] : memref<32x1xf32, #tpu.memory_space<vmem>>, vector<32x1xf32>
    %91 = vector.broadcast %90 : vector<32x1xf32> to vector<32x256xf32>
    %92 = arith.mulf %89, %91 : vector<32x256xf32>
    %c0_45 = arith.constant 0 : index
    %c0_46 = arith.constant 0 : index
    %93 = vector.load %arg9[%c0_45, %c0_46] : memref<32x1xf32, #tpu.memory_space<vmem>>, vector<32x1xf32>
    %94 = vector.broadcast %93 : vector<32x1xf32> to vector<32x256xf32>
    %95 = arith.addf %92, %94 : vector<32x256xf32>
    %cst_47 = arith.constant 0.000000e+00 : f32
    %96 = vector.broadcast %cst_47 : f32 to vector<32x256xf32>
    %97 = arith.maximumf %95, %96 : vector<32x256xf32>
    %c1_i32_48 = arith.constant 1 : i32
    %98 = tpu.dynamic_rotate %97 by %c1_i32_48 dim 1 : vector<32x256xf32>, i32 -> vector<32x256xf32>
    %99 = vector.broadcast %1 : vector<1x256xf32> to vector<32x256xf32>
    %100 = arith.mulf %98, %99 : vector<32x256xf32>
    %c255_i32_49 = arith.constant 255 : i32
    %101 = tpu.dynamic_rotate %97 by %c255_i32_49 dim 1 : vector<32x256xf32>, i32 -> vector<32x256xf32>
    %102 = vector.broadcast %2 : vector<1x256xf32> to vector<32x256xf32>
    %103 = arith.mulf %101, %102 : vector<32x256xf32>
    %c0_50 = arith.constant 0 : index
    %c0_51 = arith.constant 0 : index
    %c0_52 = arith.constant 0 : index
    %104 = vector.load %arg10[%c0_50, %c0_51, %c0_52] : memref<9x32x1xf32, #tpu.memory_space<vmem>>, vector<1x32x1xf32>
    %105 = vector.shape_cast %104 : vector<1x32x1xf32> to vector<32x1xf32>
    %106 = vector.broadcast %105 : vector<32x1xf32> to vector<32x256xf32>
    %107 = arith.mulf %100, %106 : vector<32x256xf32>
    %c1_53 = arith.constant 1 : index
    %c0_54 = arith.constant 0 : index
    %c0_55 = arith.constant 0 : index
    %108 = vector.load %arg10[%c1_53, %c0_54, %c0_55] : memref<9x32x1xf32, #tpu.memory_space<vmem>>, vector<1x32x1xf32>
    %109 = vector.shape_cast %108 : vector<1x32x1xf32> to vector<32x1xf32>
    %110 = vector.broadcast %109 : vector<32x1xf32> to vector<32x256xf32>
    %111 = arith.mulf %97, %110 : vector<32x256xf32>
    %112 = arith.addf %107, %111 : vector<32x256xf32>
    %c2_56 = arith.constant 2 : index
    %c0_57 = arith.constant 0 : index
    %c0_58 = arith.constant 0 : index
    %113 = vector.load %arg10[%c2_56, %c0_57, %c0_58] : memref<9x32x1xf32, #tpu.memory_space<vmem>>, vector<1x32x1xf32>
    %114 = vector.shape_cast %113 : vector<1x32x1xf32> to vector<32x1xf32>
    %115 = vector.broadcast %114 : vector<32x1xf32> to vector<32x256xf32>
    %116 = arith.mulf %103, %115 : vector<32x256xf32>
    %117 = arith.addf %112, %116 : vector<32x256xf32>
    %c3_59 = arith.constant 3 : index
    %c0_60 = arith.constant 0 : index
    %c0_61 = arith.constant 0 : index
    %118 = vector.load %arg10[%c3_59, %c0_60, %c0_61] : memref<9x32x1xf32, #tpu.memory_space<vmem>>, vector<1x32x1xf32>
    %119 = vector.shape_cast %118 : vector<1x32x1xf32> to vector<32x1xf32>
    %120 = vector.broadcast %119 : vector<32x1xf32> to vector<32x256xf32>
    %121 = arith.mulf %100, %120 : vector<32x256xf32>
    %c4_62 = arith.constant 4 : index
    %c0_63 = arith.constant 0 : index
    %c0_64 = arith.constant 0 : index
    %122 = vector.load %arg10[%c4_62, %c0_63, %c0_64] : memref<9x32x1xf32, #tpu.memory_space<vmem>>, vector<1x32x1xf32>
    %123 = vector.shape_cast %122 : vector<1x32x1xf32> to vector<32x1xf32>
    %124 = vector.broadcast %123 : vector<32x1xf32> to vector<32x256xf32>
    %125 = arith.mulf %97, %124 : vector<32x256xf32>
    %126 = arith.addf %121, %125 : vector<32x256xf32>
    %c5_65 = arith.constant 5 : index
    %c0_66 = arith.constant 0 : index
    %c0_67 = arith.constant 0 : index
    %127 = vector.load %arg10[%c5_65, %c0_66, %c0_67] : memref<9x32x1xf32, #tpu.memory_space<vmem>>, vector<1x32x1xf32>
    %128 = vector.shape_cast %127 : vector<1x32x1xf32> to vector<32x1xf32>
    %129 = vector.broadcast %128 : vector<32x1xf32> to vector<32x256xf32>
    %130 = arith.mulf %103, %129 : vector<32x256xf32>
    %131 = arith.addf %126, %130 : vector<32x256xf32>
    %c6_68 = arith.constant 6 : index
    %c0_69 = arith.constant 0 : index
    %c0_70 = arith.constant 0 : index
    %132 = vector.load %arg10[%c6_68, %c0_69, %c0_70] : memref<9x32x1xf32, #tpu.memory_space<vmem>>, vector<1x32x1xf32>
    %133 = vector.shape_cast %132 : vector<1x32x1xf32> to vector<32x1xf32>
    %134 = vector.broadcast %133 : vector<32x1xf32> to vector<32x256xf32>
    %135 = arith.mulf %100, %134 : vector<32x256xf32>
    %c7_71 = arith.constant 7 : index
    %c0_72 = arith.constant 0 : index
    %c0_73 = arith.constant 0 : index
    %136 = vector.load %arg10[%c7_71, %c0_72, %c0_73] : memref<9x32x1xf32, #tpu.memory_space<vmem>>, vector<1x32x1xf32>
    %137 = vector.shape_cast %136 : vector<1x32x1xf32> to vector<32x1xf32>
    %138 = vector.broadcast %137 : vector<32x1xf32> to vector<32x256xf32>
    %139 = arith.mulf %97, %138 : vector<32x256xf32>
    %140 = arith.addf %135, %139 : vector<32x256xf32>
    %c8_74 = arith.constant 8 : index
    %c0_75 = arith.constant 0 : index
    %c0_76 = arith.constant 0 : index
    %141 = vector.load %arg10[%c8_74, %c0_75, %c0_76] : memref<9x32x1xf32, #tpu.memory_space<vmem>>, vector<1x32x1xf32>
    %142 = vector.shape_cast %141 : vector<1x32x1xf32> to vector<32x1xf32>
    %143 = vector.broadcast %142 : vector<32x1xf32> to vector<32x256xf32>
    %144 = arith.mulf %103, %143 : vector<32x256xf32>
    %145 = arith.addf %140, %144 : vector<32x256xf32>
    %c16_i32_77 = arith.constant 16 : i32
    %146 = tpu.dynamic_rotate %117 by %c16_i32_77 dim 1 : vector<32x256xf32>, i32 -> vector<32x256xf32>
    %147 = vector.broadcast %3 : vector<1x256xf32> to vector<32x256xf32>
    %148 = arith.mulf %146, %147 : vector<32x256xf32>
    %149 = arith.addf %148, %131 : vector<32x256xf32>
    %c240_i32_78 = arith.constant 240 : i32
    %150 = tpu.dynamic_rotate %145 by %c240_i32_78 dim 1 : vector<32x256xf32>, i32 -> vector<32x256xf32>
    %151 = vector.broadcast %4 : vector<1x256xf32> to vector<32x256xf32>
    %152 = arith.mulf %150, %151 : vector<32x256xf32>
    %153 = arith.addf %149, %152 : vector<32x256xf32>
    %c0_79 = arith.constant 0 : index
    %c0_80 = arith.constant 0 : index
    %154 = vector.load %arg11[%c0_79, %c0_80] : memref<32x32xbf16, #tpu.memory_space<vmem>>, vector<32x32xbf16>
    %155 = arith.truncf %153 : vector<32x256xf32> to vector<32x256xbf16>
    %cst_81 = arith.constant dense<0.000000e+00> : vector<32x256xf32>
    %156 = tpu.matmul %154, %155, %cst_81 {dimension_numbers = #tpu.dot_dimension_numbers<[1], [0], [0], [1], [0, 0, 1, 1], [], []>} : vector<32x32xbf16>, vector<32x256xbf16>, vector<32x256xf32> -> vector<32x256xf32>
    %c0_82 = arith.constant 0 : index
    %c0_83 = arith.constant 0 : index
    %157 = vector.load %arg12[%c0_82, %c0_83] : memref<32x1xf32, #tpu.memory_space<vmem>>, vector<32x1xf32>
    %158 = vector.broadcast %157 : vector<32x1xf32> to vector<32x256xf32>
    %159 = arith.mulf %156, %158 : vector<32x256xf32>
    %c0_84 = arith.constant 0 : index
    %c0_85 = arith.constant 0 : index
    %160 = vector.load %arg13[%c0_84, %c0_85] : memref<32x1xf32, #tpu.memory_space<vmem>>, vector<32x1xf32>
    %161 = vector.broadcast %160 : vector<32x1xf32> to vector<32x256xf32>
    %162 = arith.addf %159, %161 : vector<32x256xf32>
    %c1_86 = arith.constant 1 : index
    %c0_87 = arith.constant 0 : index
    %c0_88 = arith.constant 0 : index
    %163 = vector.load %arg23[%c1_86, %c0_87, %c0_88] : memref<6x32x256xf32, #tpu.memory_space<vmem>>, vector<1x32x256xf32>
    %164 = vector.shape_cast %163 : vector<1x32x256xf32> to vector<32x256xf32>
    %165 = arith.addf %162, %164 : vector<32x256xf32>
    %c2_89 = arith.constant 2 : index
    %c0_90 = arith.constant 0 : index
    %c0_91 = arith.constant 0 : index
    %166 = vector.load %arg23[%c2_89, %c0_90, %c0_91] : memref<6x32x256xf32, #tpu.memory_space<vmem>>, vector<1x32x256xf32>
    %167 = vector.shape_cast %166 : vector<1x32x256xf32> to vector<32x256xf32>
    %168 = vector.shape_cast %165 : vector<32x256xf32> to vector<1x32x256xf32>
    tpu.vector_store %arg23[%c2_89, %c0_90, %c0_91], %168 {strides = array<i32>} : memref<6x32x256xf32, #tpu.memory_space<vmem>>, vector<1x32x256xf32>,
    %c0_92 = arith.constant 0 : index
    %c0_93 = arith.constant 0 : index
    %c0_94 = arith.constant 0 : index
    %169 = vector.load %arg23[%c0_92, %c0_93, %c0_94] : memref<6x32x256xf32, #tpu.memory_space<vmem>>, vector<1x32x256xf32>
    %170 = vector.shape_cast %169 : vector<1x32x256xf32> to vector<32x256xf32>
    %cst_95 = arith.constant 5.000000e-01 : f32
    %171 = vector.broadcast %cst_95 : f32 to vector<1x256xf32>
    %172 = arith.cmpf ogt, %1, %171 : vector<1x256xf32>
    %cst_96 = arith.constant 5.000000e-01 : f32
    %173 = vector.broadcast %cst_96 : f32 to vector<1x256xf32>
    %174 = arith.cmpf ogt, %2, %173 : vector<1x256xf32>
    %cst_97 = arith.constant 5.000000e-01 : f32
    %175 = vector.broadcast %cst_97 : f32 to vector<1x256xf32>
    %176 = arith.cmpf ogt, %3, %175 : vector<1x256xf32>
    %cst_98 = arith.constant 5.000000e-01 : f32
    %177 = vector.broadcast %cst_98 : f32 to vector<1x256xf32>
    %178 = arith.cmpf ogt, %4, %177 : vector<1x256xf32>
    %c1_i32_99 = arith.constant 1 : i32
    %179 = tpu.dynamic_rotate %170 by %c1_i32_99 dim 1 : vector<32x256xf32>, i32 -> vector<32x256xf32>
    %cst_100 = arith.constant -1.000000e+30 : f32
    %180 = vector.shape_cast %172 : vector<1x256xi1> to vector<1x256xi1>
    %181 = vector.broadcast %180 : vector<1x256xi1> to vector<32x256xi1>
    %182 = vector.broadcast %cst_100 : f32 to vector<32x256xf32>
    %183 = arith.select %181, %179, %182 : vector<32x256xi1>, vector<32x256xf32>
    %184 = arith.maximumf %183, %170 : vector<32x256xf32>
    %c255_i32_101 = arith.constant 255 : i32
    %185 = tpu.dynamic_rotate %170 by %c255_i32_101 dim 1 : vector<32x256xf32>, i32 -> vector<32x256xf32>
    %cst_102 = arith.constant -1.000000e+30 : f32
    %186 = vector.shape_cast %174 : vector<1x256xi1> to vector<1x256xi1>
    %187 = vector.broadcast %186 : vector<1x256xi1> to vector<32x256xi1>
    %188 = vector.broadcast %cst_102 : f32 to vector<32x256xf32>
    %189 = arith.select %187, %185, %188 : vector<32x256xi1>, vector<32x256xf32>
    %190 = arith.maximumf %184, %189 : vector<32x256xf32>
    %c16_i32_103 = arith.constant 16 : i32
    %191 = tpu.dynamic_rotate %190 by %c16_i32_103 dim 1 : vector<32x256xf32>, i32 -> vector<32x256xf32>
    %cst_104 = arith.constant -1.000000e+30 : f32
    %192 = vector.shape_cast %176 : vector<1x256xi1> to vector<1x256xi1>
    %193 = vector.broadcast %192 : vector<1x256xi1> to vector<32x256xi1>
    %194 = vector.broadcast %cst_104 : f32 to vector<32x256xf32>
    %195 = arith.select %193, %191, %194 : vector<32x256xi1>, vector<32x256xf32>
    %196 = arith.maximumf %195, %190 : vector<32x256xf32>
    %c240_i32_105 = arith.constant 240 : i32
    %197 = tpu.dynamic_rotate %190 by %c240_i32_105 dim 1 : vector<32x256xf32>, i32 -> vector<32x256xf32>
    %cst_106 = arith.constant -1.000000e+30 : f32
    %198 = vector.shape_cast %178 : vector<1x256xi1> to vector<1x256xi1>
    %199 = vector.broadcast %198 : vector<1x256xi1> to vector<32x256xi1>
    %200 = vector.broadcast %cst_106 : f32 to vector<32x256xf32>
    %201 = arith.select %199, %197, %200 : vector<32x256xi1>, vector<32x256xf32>
    %202 = arith.maximumf %196, %201 : vector<32x256xf32>
    %c1_107 = arith.constant 1 : index
    %c0_108 = arith.constant 0 : index
    %c0_109 = arith.constant 0 : index
    %203 = vector.load %arg23[%c1_107, %c0_108, %c0_109] : memref<6x32x256xf32, #tpu.memory_space<vmem>>, vector<1x32x256xf32>
    %204 = vector.shape_cast %203 : vector<1x32x256xf32> to vector<32x256xf32>
    %c1_i32_110 = arith.constant 1 : i32
    %205 = tpu.dynamic_rotate %204 by %c1_i32_110 dim 1 : vector<32x256xf32>, i32 -> vector<32x256xf32>
    %206 = vector.broadcast %1 : vector<1x256xf32> to vector<32x256xf32>
    %207 = arith.mulf %205, %206 : vector<32x256xf32>
    %c255_i32_111 = arith.constant 255 : i32
    %208 = tpu.dynamic_rotate %204 by %c255_i32_111 dim 1 : vector<32x256xf32>, i32 -> vector<32x256xf32>
    %209 = vector.broadcast %2 : vector<1x256xf32> to vector<32x256xf32>
    %210 = arith.mulf %208, %209 : vector<32x256xf32>
    %211 = arith.addf %207, %204 : vector<32x256xf32>
    %212 = arith.addf %211, %210 : vector<32x256xf32>
    %c16_i32_112 = arith.constant 16 : i32
    %213 = tpu.dynamic_rotate %212 by %c16_i32_112 dim 1 : vector<32x256xf32>, i32 -> vector<32x256xf32>
    %214 = vector.broadcast %3 : vector<1x256xf32> to vector<32x256xf32>
    %215 = arith.mulf %213, %214 : vector<32x256xf32>
    %216 = arith.addf %215, %212 : vector<32x256xf32>
    %c240_i32_113 = arith.constant 240 : i32
    %217 = tpu.dynamic_rotate %212 by %c240_i32_113 dim 1 : vector<32x256xf32>, i32 -> vector<32x256xf32>
    %218 = vector.broadcast %4 : vector<1x256xf32> to vector<32x256xf32>
    %219 = arith.mulf %217, %218 : vector<32x256xf32>
    %220 = arith.addf %216, %219 : vector<32x256xf32>
    %221 = vector.broadcast %5 : vector<1x256xf32> to vector<32x256xf32>
    %222 = arith.mulf %220, %221 : vector<32x256xf32>
    %223 = arith.addf %202, %222 : vector<32x256xf32>
    %c3_114 = arith.constant 3 : index
    %c0_115 = arith.constant 0 : index
    %c0_116 = arith.constant 0 : index
    %224 = vector.load %arg23[%c3_114, %c0_115, %c0_116] : memref<6x32x256xf32, #tpu.memory_space<vmem>>, vector<1x32x256xf32>
    %225 = vector.shape_cast %224 : vector<1x32x256xf32> to vector<32x256xf32>
    %226 = vector.shape_cast %223 : vector<32x256xf32> to vector<1x32x256xf32>
    tpu.vector_store %arg23[%c3_114, %c0_115, %c0_116], %226 {strides = array<i32>} : memref<6x32x256xf32, #tpu.memory_space<vmem>>, vector<1x32x256xf32>,
    %c0_117 = arith.constant 0 : index
    %c0_118 = arith.constant 0 : index
    %c0_119 = arith.constant 0 : index
    %227 = vector.load %arg23[%c0_117, %c0_118, %c0_119] : memref<6x32x256xf32, #tpu.memory_space<vmem>>, vector<1x32x256xf32>
    %228 = vector.shape_cast %227 : vector<1x32x256xf32> to vector<32x256xf32>
    %c2_120 = arith.constant 2 : index
    %c0_121 = arith.constant 0 : index
    %c0_122 = arith.constant 0 : index
    %229 = vector.load %arg23[%c2_120, %c0_121, %c0_122] : memref<6x32x256xf32, #tpu.memory_space<vmem>>, vector<1x32x256xf32>
    %230 = vector.shape_cast %229 : vector<1x32x256xf32> to vector<32x256xf32>
    %cst_123 = arith.constant 0.000000e+00 : f32
    %231 = vector.broadcast %cst_123 : f32 to vector<32x256xf32>
    %232 = arith.maximumf %230, %231 : vector<32x256xf32>
    %c1_i32_124 = arith.constant 1 : i32
    %233 = tpu.dynamic_rotate %232 by %c1_i32_124 dim 1 : vector<32x256xf32>, i32 -> vector<32x256xf32>
    %234 = vector.broadcast %1 : vector<1x256xf32> to vector<32x256xf32>
    %235 = arith.mulf %233, %234 : vector<32x256xf32>
    %c255_i32_125 = arith.constant 255 : i32
    %236 = tpu.dynamic_rotate %232 by %c255_i32_125 dim 1 : vector<32x256xf32>, i32 -> vector<32x256xf32>
    %237 = vector.broadcast %2 : vector<1x256xf32> to vector<32x256xf32>
    %238 = arith.mulf %236, %237 : vector<32x256xf32>
    %c0_126 = arith.constant 0 : index
    %c0_127 = arith.constant 0 : index
    %c0_128 = arith.constant 0 : index
    %239 = vector.load %arg14[%c0_126, %c0_127, %c0_128] : memref<9x32x1xf32, #tpu.memory_space<vmem>>, vector<1x32x1xf32>
    %240 = vector.shape_cast %239 : vector<1x32x1xf32> to vector<32x1xf32>
    %241 = vector.broadcast %240 : vector<32x1xf32> to vector<32x256xf32>
    %242 = arith.mulf %235, %241 : vector<32x256xf32>
    %c1_129 = arith.constant 1 : index
    %c0_130 = arith.constant 0 : index
    %c0_131 = arith.constant 0 : index
    %243 = vector.load %arg14[%c1_129, %c0_130, %c0_131] : memref<9x32x1xf32, #tpu.memory_space<vmem>>, vector<1x32x1xf32>
    %244 = vector.shape_cast %243 : vector<1x32x1xf32> to vector<32x1xf32>
    %245 = vector.broadcast %244 : vector<32x1xf32> to vector<32x256xf32>
    %246 = arith.mulf %232, %245 : vector<32x256xf32>
    %247 = arith.addf %242, %246 : vector<32x256xf32>
    %c2_132 = arith.constant 2 : index
    %c0_133 = arith.constant 0 : index
    %c0_134 = arith.constant 0 : index
    %248 = vector.load %arg14[%c2_132, %c0_133, %c0_134] : memref<9x32x1xf32, #tpu.memory_space<vmem>>, vector<1x32x1xf32>
    %249 = vector.shape_cast %248 : vector<1x32x1xf32> to vector<32x1xf32>
    %250 = vector.broadcast %249 : vector<32x1xf32> to vector<32x256xf32>
    %251 = arith.mulf %238, %250 : vector<32x256xf32>
    %252 = arith.addf %247, %251 : vector<32x256xf32>
    %c3_135 = arith.constant 3 : index
    %c0_136 = arith.constant 0 : index
    %c0_137 = arith.constant 0 : index
    %253 = vector.load %arg14[%c3_135, %c0_136, %c0_137] : memref<9x32x1xf32, #tpu.memory_space<vmem>>, vector<1x32x1xf32>
    %254 = vector.shape_cast %253 : vector<1x32x1xf32> to vector<32x1xf32>
    %255 = vector.broadcast %254 : vector<32x1xf32> to vector<32x256xf32>
    %256 = arith.mulf %235, %255 : vector<32x256xf32>
    %c4_138 = arith.constant 4 : index
    %c0_139 = arith.constant 0 : index
    %c0_140 = arith.constant 0 : index
    %257 = vector.load %arg14[%c4_138, %c0_139, %c0_140] : memref<9x32x1xf32, #tpu.memory_space<vmem>>, vector<1x32x1xf32>
    %258 = vector.shape_cast %257 : vector<1x32x1xf32> to vector<32x1xf32>
    %259 = vector.broadcast %258 : vector<32x1xf32> to vector<32x256xf32>
    %260 = arith.mulf %232, %259 : vector<32x256xf32>
    %261 = arith.addf %256, %260 : vector<32x256xf32>
    %c5_141 = arith.constant 5 : index
    %c0_142 = arith.constant 0 : index
    %c0_143 = arith.constant 0 : index
    %262 = vector.load %arg14[%c5_141, %c0_142, %c0_143] : memref<9x32x1xf32, #tpu.memory_space<vmem>>, vector<1x32x1xf32>
    %263 = vector.shape_cast %262 : vector<1x32x1xf32> to vector<32x1xf32>
    %264 = vector.broadcast %263 : vector<32x1xf32> to vector<32x256xf32>
    %265 = arith.mulf %238, %264 : vector<32x256xf32>
    %266 = arith.addf %261, %265 : vector<32x256xf32>
    %c6_144 = arith.constant 6 : index
    %c0_145 = arith.constant 0 : index
    %c0_146 = arith.constant 0 : index
    %267 = vector.load %arg14[%c6_144, %c0_145, %c0_146] : memref<9x32x1xf32, #tpu.memory_space<vmem>>, vector<1x32x1xf32>
    %268 = vector.shape_cast %267 : vector<1x32x1xf32> to vector<32x1xf32>
    %269 = vector.broadcast %268 : vector<32x1xf32> to vector<32x256xf32>
    %270 = arith.mulf %235, %269 : vector<32x256xf32>
    %c7_147 = arith.constant 7 : index
    %c0_148 = arith.constant 0 : index
    %c0_149 = arith.constant 0 : index
    %271 = vector.load %arg14[%c7_147, %c0_148, %c0_149] : memref<9x32x1xf32, #tpu.memory_space<vmem>>, vector<1x32x1xf32>
    %272 = vector.shape_cast %271 : vector<1x32x1xf32> to vector<32x1xf32>
    %273 = vector.broadcast %272 : vector<32x1xf32> to vector<32x256xf32>
    %274 = arith.mulf %232, %273 : vector<32x256xf32>
    %275 = arith.addf %270, %274 : vector<32x256xf32>
    %c8_150 = arith.constant 8 : index
    %c0_151 = arith.constant 0 : index
    %c0_152 = arith.constant 0 : index
    %276 = vector.load %arg14[%c8_150, %c0_151, %c0_152] : memref<9x32x1xf32, #tpu.memory_space<vmem>>, vector<1x32x1xf32>
    %277 = vector.shape_cast %276 : vector<1x32x1xf32> to vector<32x1xf32>
    %278 = vector.broadcast %277 : vector<32x1xf32> to vector<32x256xf32>
    %279 = arith.mulf %238, %278 : vector<32x256xf32>
    %280 = arith.addf %275, %279 : vector<32x256xf32>
    %c16_i32_153 = arith.constant 16 : i32
    %281 = tpu.dynamic_rotate %252 by %c16_i32_153 dim 1 : vector<32x256xf32>, i32 -> vector<32x256xf32>
    %282 = vector.broadcast %3 : vector<1x256xf32> to vector<32x256xf32>
    %283 = arith.mulf %281, %282 : vector<32x256xf32>
    %284 = arith.addf %283, %266 : vector<32x256xf32>
    %c240_i32_154 = arith.constant 240 : i32
    %285 = tpu.dynamic_rotate %280 by %c240_i32_154 dim 1 : vector<32x256xf32>, i32 -> vector<32x256xf32>
    %286 = vector.broadcast %4 : vector<1x256xf32> to vector<32x256xf32>
    %287 = arith.mulf %285, %286 : vector<32x256xf32>
    %288 = arith.addf %284, %287 : vector<32x256xf32>
    %c0_155 = arith.constant 0 : index
    %c0_156 = arith.constant 0 : index
    %289 = vector.load %arg15[%c0_155, %c0_156] : memref<32x32xbf16, #tpu.memory_space<vmem>>, vector<32x32xbf16>
    %290 = arith.truncf %288 : vector<32x256xf32> to vector<32x256xbf16>
    %cst_157 = arith.constant dense<0.000000e+00> : vector<32x256xf32>
    %291 = tpu.matmul %289, %290, %cst_157 {dimension_numbers = #tpu.dot_dimension_numbers<[1], [0], [0], [1], [0, 0, 1, 1], [], []>} : vector<32x32xbf16>, vector<32x256xbf16>, vector<32x256xf32> -> vector<32x256xf32>
    %c0_158 = arith.constant 0 : index
    %c0_159 = arith.constant 0 : index
    %292 = vector.load %arg16[%c0_158, %c0_159] : memref<32x1xf32, #tpu.memory_space<vmem>>, vector<32x1xf32>
    %293 = vector.broadcast %292 : vector<32x1xf32> to vector<32x256xf32>
    %294 = arith.mulf %291, %293 : vector<32x256xf32>
    %c0_160 = arith.constant 0 : index
    %c0_161 = arith.constant 0 : index
    %295 = vector.load %arg17[%c0_160, %c0_161] : memref<32x1xf32, #tpu.memory_space<vmem>>, vector<32x1xf32>
    %296 = vector.broadcast %295 : vector<32x1xf32> to vector<32x256xf32>
    %297 = arith.addf %294, %296 : vector<32x256xf32>
    %cst_162 = arith.constant 0.000000e+00 : f32
    %298 = vector.broadcast %cst_162 : f32 to vector<32x256xf32>
    %299 = arith.maximumf %297, %298 : vector<32x256xf32>
    %c1_i32_163 = arith.constant 1 : i32
    %300 = tpu.dynamic_rotate %299 by %c1_i32_163 dim 1 : vector<32x256xf32>, i32 -> vector<32x256xf32>
    %301 = vector.broadcast %1 : vector<1x256xf32> to vector<32x256xf32>
    %302 = arith.mulf %300, %301 : vector<32x256xf32>
    %c255_i32_164 = arith.constant 255 : i32
    %303 = tpu.dynamic_rotate %299 by %c255_i32_164 dim 1 : vector<32x256xf32>, i32 -> vector<32x256xf32>
    %304 = vector.broadcast %2 : vector<1x256xf32> to vector<32x256xf32>
    %305 = arith.mulf %303, %304 : vector<32x256xf32>
    %c0_165 = arith.constant 0 : index
    %c0_166 = arith.constant 0 : index
    %c0_167 = arith.constant 0 : index
    %306 = vector.load %arg18[%c0_165, %c0_166, %c0_167] : memref<9x32x1xf32, #tpu.memory_space<vmem>>, vector<1x32x1xf32>
    %307 = vector.shape_cast %306 : vector<1x32x1xf32> to vector<32x1xf32>
    %308 = vector.broadcast %307 : vector<32x1xf32> to vector<32x256xf32>
    %309 = arith.mulf %302, %308 : vector<32x256xf32>
    %c1_168 = arith.constant 1 : index
    %c0_169 = arith.constant 0 : index
    %c0_170 = arith.constant 0 : index
    %310 = vector.load %arg18[%c1_168, %c0_169, %c0_170] : memref<9x32x1xf32, #tpu.memory_space<vmem>>, vector<1x32x1xf32>
    %311 = vector.shape_cast %310 : vector<1x32x1xf32> to vector<32x1xf32>
    %312 = vector.broadcast %311 : vector<32x1xf32> to vector<32x256xf32>
    %313 = arith.mulf %299, %312 : vector<32x256xf32>
    %314 = arith.addf %309, %313 : vector<32x256xf32>
    %c2_171 = arith.constant 2 : index
    %c0_172 = arith.constant 0 : index
    %c0_173 = arith.constant 0 : index
    %315 = vector.load %arg18[%c2_171, %c0_172, %c0_173] : memref<9x32x1xf32, #tpu.memory_space<vmem>>, vector<1x32x1xf32>
    %316 = vector.shape_cast %315 : vector<1x32x1xf32> to vector<32x1xf32>
    %317 = vector.broadcast %316 : vector<32x1xf32> to vector<32x256xf32>
    %318 = arith.mulf %305, %317 : vector<32x256xf32>
    %319 = arith.addf %314, %318 : vector<32x256xf32>
    %c3_174 = arith.constant 3 : index
    %c0_175 = arith.constant 0 : index
    %c0_176 = arith.constant 0 : index
    %320 = vector.load %arg18[%c3_174, %c0_175, %c0_176] : memref<9x32x1xf32, #tpu.memory_space<vmem>>, vector<1x32x1xf32>
    %321 = vector.shape_cast %320 : vector<1x32x1xf32> to vector<32x1xf32>
    %322 = vector.broadcast %321 : vector<32x1xf32> to vector<32x256xf32>
    %323 = arith.mulf %302, %322 : vector<32x256xf32>
    %c4_177 = arith.constant 4 : index
    %c0_178 = arith.constant 0 : index
    %c0_179 = arith.constant 0 : index
    %324 = vector.load %arg18[%c4_177, %c0_178, %c0_179] : memref<9x32x1xf32, #tpu.memory_space<vmem>>, vector<1x32x1xf32>
    %325 = vector.shape_cast %324 : vector<1x32x1xf32> to vector<32x1xf32>
    %326 = vector.broadcast %325 : vector<32x1xf32> to vector<32x256xf32>
    %327 = arith.mulf %299, %326 : vector<32x256xf32>
    %328 = arith.addf %323, %327 : vector<32x256xf32>
    %c5_180 = arith.constant 5 : index
    %c0_181 = arith.constant 0 : index
    %c0_182 = arith.constant 0 : index
    %329 = vector.load %arg18[%c5_180, %c0_181, %c0_182] : memref<9x32x1xf32, #tpu.memory_space<vmem>>, vector<1x32x1xf32>
    %330 = vector.shape_cast %329 : vector<1x32x1xf32> to vector<32x1xf32>
    %331 = vector.broadcast %330 : vector<32x1xf32> to vector<32x256xf32>
    %332 = arith.mulf %305, %331 : vector<32x256xf32>
    %333 = arith.addf %328, %332 : vector<32x256xf32>
    %c6_183 = arith.constant 6 : index
    %c0_184 = arith.constant 0 : index
    %c0_185 = arith.constant 0 : index
    %334 = vector.load %arg18[%c6_183, %c0_184, %c0_185] : memref<9x32x1xf32, #tpu.memory_space<vmem>>, vector<1x32x1xf32>
    %335 = vector.shape_cast %334 : vector<1x32x1xf32> to vector<32x1xf32>
    %336 = vector.broadcast %335 : vector<32x1xf32> to vector<32x256xf32>
    %337 = arith.mulf %302, %336 : vector<32x256xf32>
    %c7_186 = arith.constant 7 : index
    %c0_187 = arith.constant 0 : index
    %c0_188 = arith.constant 0 : index
    %338 = vector.load %arg18[%c7_186, %c0_187, %c0_188] : memref<9x32x1xf32, #tpu.memory_space<vmem>>, vector<1x32x1xf32>
    %339 = vector.shape_cast %338 : vector<1x32x1xf32> to vector<32x1xf32>
    %340 = vector.broadcast %339 : vector<32x1xf32> to vector<32x256xf32>
    %341 = arith.mulf %299, %340 : vector<32x256xf32>
    %342 = arith.addf %337, %341 : vector<32x256xf32>
    %c8_189 = arith.constant 8 : index
    %c0_190 = arith.constant 0 : index
    %c0_191 = arith.constant 0 : index
    %343 = vector.load %arg18[%c8_189, %c0_190, %c0_191] : memref<9x32x1xf32, #tpu.memory_space<vmem>>, vector<1x32x1xf32>
    %344 = vector.shape_cast %343 : vector<1x32x1xf32> to vector<32x1xf32>
    %345 = vector.broadcast %344 : vector<32x1xf32> to vector<32x256xf32>
    %346 = arith.mulf %305, %345 : vector<32x256xf32>
    %347 = arith.addf %342, %346 : vector<32x256xf32>
    %c16_i32_192 = arith.constant 16 : i32
    %348 = tpu.dynamic_rotate %319 by %c16_i32_192 dim 1 : vector<32x256xf32>, i32 -> vector<32x256xf32>
    %349 = vector.broadcast %3 : vector<1x256xf32> to vector<32x256xf32>
    %350 = arith.mulf %348, %349 : vector<32x256xf32>
    %351 = arith.addf %350, %333 : vector<32x256xf32>
    %c240_i32_193 = arith.constant 240 : i32
    %352 = tpu.dynamic_rotate %347 by %c240_i32_193 dim 1 : vector<32x256xf32>, i32 -> vector<32x256xf32>
    %353 = vector.broadcast %4 : vector<1x256xf32> to vector<32x256xf32>
    %354 = arith.mulf %352, %353 : vector<32x256xf32>
    %355 = arith.addf %351, %354 : vector<32x256xf32>
    %c0_194 = arith.constant 0 : index
    %c0_195 = arith.constant 0 : index
    %356 = vector.load %arg19[%c0_194, %c0_195] : memref<32x32xbf16, #tpu.memory_space<vmem>>, vector<32x32xbf16>
    %357 = arith.truncf %355 : vector<32x256xf32> to vector<32x256xbf16>
    %cst_196 = arith.constant dense<0.000000e+00> : vector<32x256xf32>
    %358 = tpu.matmul %356, %357, %cst_196 {dimension_numbers = #tpu.dot_dimension_numbers<[1], [0], [0], [1], [0, 0, 1, 1], [], []>} : vector<32x32xbf16>, vector<32x256xbf16>, vector<32x256xf32> -> vector<32x256xf32>
    %c0_197 = arith.constant 0 : index
    %c0_198 = arith.constant 0 : index
    %359 = vector.load %arg20[%c0_197, %c0_198] : memref<32x1xf32, #tpu.memory_space<vmem>>, vector<32x1xf32>
    %360 = vector.broadcast %359 : vector<32x1xf32> to vector<32x256xf32>
    %361 = arith.mulf %358, %360 : vector<32x256xf32>
    %c0_199 = arith.constant 0 : index
    %c0_200 = arith.constant 0 : index
    %362 = vector.load %arg21[%c0_199, %c0_200] : memref<32x1xf32, #tpu.memory_space<vmem>>, vector<32x1xf32>
    %363 = vector.broadcast %362 : vector<32x1xf32> to vector<32x256xf32>
    %364 = arith.addf %361, %363 : vector<32x256xf32>
    %365 = arith.addf %228, %364 : vector<32x256xf32>
    %c4_201 = arith.constant 4 : index
    %c0_202 = arith.constant 0 : index
    %c0_203 = arith.constant 0 : index
    %366 = vector.load %arg23[%c4_201, %c0_202, %c0_203] : memref<6x32x256xf32, #tpu.memory_space<vmem>>, vector<1x32x256xf32>
    %367 = vector.shape_cast %366 : vector<1x32x256xf32> to vector<32x256xf32>
    %368 = vector.shape_cast %365 : vector<32x256xf32> to vector<1x32x256xf32>
    tpu.vector_store %arg23[%c4_201, %c0_202, %c0_203], %368 {strides = array<i32>} : memref<6x32x256xf32, #tpu.memory_space<vmem>>, vector<1x32x256xf32>,
    %c2_204 = arith.constant 2 : index
    %c0_205 = arith.constant 0 : index
    %c0_206 = arith.constant 0 : index
    %369 = vector.load %arg23[%c2_204, %c0_205, %c0_206] : memref<6x32x256xf32, #tpu.memory_space<vmem>>, vector<1x32x256xf32>
    %370 = vector.shape_cast %369 : vector<1x32x256xf32> to vector<32x256xf32>
    %c3_207 = arith.constant 3 : index
    %c0_208 = arith.constant 0 : index
    %c0_209 = arith.constant 0 : index
    %371 = vector.load %arg23[%c3_207, %c0_208, %c0_209] : memref<6x32x256xf32, #tpu.memory_space<vmem>>, vector<1x32x256xf32>
    %372 = vector.shape_cast %371 : vector<1x32x256xf32> to vector<32x256xf32>
    %cst_210 = arith.constant 5.000000e-01 : f32
    %373 = vector.broadcast %cst_210 : f32 to vector<1x256xf32>
    %374 = arith.cmpf ogt, %1, %373 : vector<1x256xf32>
    %cst_211 = arith.constant 5.000000e-01 : f32
    %375 = vector.broadcast %cst_211 : f32 to vector<1x256xf32>
    %376 = arith.cmpf ogt, %2, %375 : vector<1x256xf32>
    %cst_212 = arith.constant 5.000000e-01 : f32
    %377 = vector.broadcast %cst_212 : f32 to vector<1x256xf32>
    %378 = arith.cmpf ogt, %3, %377 : vector<1x256xf32>
    %cst_213 = arith.constant 5.000000e-01 : f32
    %379 = vector.broadcast %cst_213 : f32 to vector<1x256xf32>
    %380 = arith.cmpf ogt, %4, %379 : vector<1x256xf32>
    %c1_i32_214 = arith.constant 1 : i32
    %381 = tpu.dynamic_rotate %372 by %c1_i32_214 dim 1 : vector<32x256xf32>, i32 -> vector<32x256xf32>
    %cst_215 = arith.constant -1.000000e+30 : f32
    %382 = vector.shape_cast %374 : vector<1x256xi1> to vector<1x256xi1>
    %383 = vector.broadcast %382 : vector<1x256xi1> to vector<32x256xi1>
    %384 = vector.broadcast %cst_215 : f32 to vector<32x256xf32>
    %385 = arith.select %383, %381, %384 : vector<32x256xi1>, vector<32x256xf32>
    %386 = arith.maximumf %385, %372 : vector<32x256xf32>
    %c255_i32_216 = arith.constant 255 : i32
    %387 = tpu.dynamic_rotate %372 by %c255_i32_216 dim 1 : vector<32x256xf32>, i32 -> vector<32x256xf32>
    %cst_217 = arith.constant -1.000000e+30 : f32
    %388 = vector.shape_cast %376 : vector<1x256xi1> to vector<1x256xi1>
    %389 = vector.broadcast %388 : vector<1x256xi1> to vector<32x256xi1>
    %390 = vector.broadcast %cst_217 : f32 to vector<32x256xf32>
    %391 = arith.select %389, %387, %390 : vector<32x256xi1>, vector<32x256xf32>
    %392 = arith.maximumf %386, %391 : vector<32x256xf32>
    %c16_i32_218 = arith.constant 16 : i32
    %393 = tpu.dynamic_rotate %392 by %c16_i32_218 dim 1 : vector<32x256xf32>, i32 -> vector<32x256xf32>
    %cst_219 = arith.constant -1.000000e+30 : f32
    %394 = vector.shape_cast %378 : vector<1x256xi1> to vector<1x256xi1>
    %395 = vector.broadcast %394 : vector<1x256xi1> to vector<32x256xi1>
    %396 = vector.broadcast %cst_219 : f32 to vector<32x256xf32>
    %397 = arith.select %395, %393, %396 : vector<32x256xi1>, vector<32x256xf32>
    %398 = arith.maximumf %397, %392 : vector<32x256xf32>
    %c240_i32_220 = arith.constant 240 : i32
    %399 = tpu.dynamic_rotate %392 by %c240_i32_220 dim 1 : vector<32x256xf32>, i32 -> vector<32x256xf32>
    %cst_221 = arith.constant -1.000000e+30 : f32
    %400 = vector.shape_cast %380 : vector<1x256xi1> to vector<1x256xi1>
    %401 = vector.broadcast %400 : vector<1x256xi1> to vector<32x256xi1>
    %402 = vector.broadcast %cst_221 : f32 to vector<32x256xf32>
    %403 = arith.select %401, %399, %402 : vector<32x256xi1>, vector<32x256xf32>
    %404 = arith.maximumf %398, %403 : vector<32x256xf32>
    %405 = arith.addf %370, %404 : vector<32x256xf32>
    %c5_222 = arith.constant 5 : index
    %c0_223 = arith.constant 0 : index
    %c0_224 = arith.constant 0 : index
    %406 = vector.load %arg23[%c5_222, %c0_223, %c0_224] : memref<6x32x256xf32, #tpu.memory_space<vmem>>, vector<1x32x256xf32>
    %407 = vector.shape_cast %406 : vector<1x32x256xf32> to vector<32x256xf32>
    %408 = vector.shape_cast %405 : vector<32x256xf32> to vector<1x32x256xf32>
    tpu.vector_store %arg23[%c5_222, %c0_223, %c0_224], %408 {strides = array<i32>} : memref<6x32x256xf32, #tpu.memory_space<vmem>>, vector<1x32x256xf32>,
    %c2_225 = arith.constant 2 : index
    %c0_226 = arith.constant 0 : index
    %c0_227 = arith.constant 0 : index
    %409 = vector.load %arg23[%c2_225, %c0_226, %c0_227] : memref<6x32x256xf32, #tpu.memory_space<vmem>>, vector<1x32x256xf32>
    %410 = vector.shape_cast %409 : vector<1x32x256xf32> to vector<32x256xf32>
    %c3_228 = arith.constant 3 : index
    %c0_229 = arith.constant 0 : index
    %c0_230 = arith.constant 0 : index
    %411 = vector.load %arg23[%c3_228, %c0_229, %c0_230] : memref<6x32x256xf32, #tpu.memory_space<vmem>>, vector<1x32x256xf32>
    %412 = vector.shape_cast %411 : vector<1x32x256xf32> to vector<32x256xf32>
    %c4_231 = arith.constant 4 : index
    %c0_232 = arith.constant 0 : index
    %c0_233 = arith.constant 0 : index
    %413 = vector.load %arg23[%c4_231, %c0_232, %c0_233] : memref<6x32x256xf32, #tpu.memory_space<vmem>>, vector<1x32x256xf32>
    %414 = vector.shape_cast %413 : vector<1x32x256xf32> to vector<32x256xf32>
    %c5_234 = arith.constant 5 : index
    %c0_235 = arith.constant 0 : index
    %c0_236 = arith.constant 0 : index
    %415 = vector.load %arg23[%c5_234, %c0_235, %c0_236] : memref<6x32x256xf32, #tpu.memory_space<vmem>>, vector<1x32x256xf32>
    %416 = vector.shape_cast %415 : vector<1x32x256xf32> to vector<32x256xf32>
    %417 = tpu.concatenate %410, %412, %414, %416 in 0 : vector<32x256xf32>, vector<32x256xf32>, vector<32x256xf32>, vector<32x256xf32> -> vector<128x256xf32>
    %c0_237 = arith.constant 0 : index
    %c0_238 = arith.constant 0 : index
    %c0_239 = arith.constant 0 : index
    %418 = vector.load %arg22[%c0_237, %c0_238, %c0_239] : memref<1x128x256xf32, #tpu.memory_space<vmem>>, vector<1x128x256xf32>
    %419 = vector.shape_cast %418 : vector<1x128x256xf32> to vector<128x256xf32>
    %420 = vector.shape_cast %417 : vector<128x256xf32> to vector<1x128x256xf32>
    tpu.vector_store %arg22[%c0_237, %c0_238, %c0_239], %420 {strides = array<i32>} : memref<1x128x256xf32, #tpu.memory_space<vmem>>, vector<1x128x256xf32>,
    return
  }
  func.func @transform_0(%arg0: i32) -> (i32, i32, i32) {
    %c0_i32 = arith.constant 0 : i32
    %c0_i32_0 = arith.constant 0 : i32
    %c0_i32_1 = arith.constant 0 : i32
    return %arg0, %c0_i32, %c0_i32_0 : i32, i32, i32
  }
  func.func @transform_1(%arg0: i32) -> (i32, i32) {
    %c0_i32 = arith.constant 0 : i32
    %c0_i32_0 = arith.constant 0 : i32
    %c0_i32_1 = arith.constant 0 : i32
    return %c0_i32, %c0_i32_0 : i32, i32
  }
  func.func @transform_2(%arg0: i32) -> (i32, i32) {
    %c0_i32 = arith.constant 0 : i32
    %c0_i32_0 = arith.constant 0 : i32
    %c0_i32_1 = arith.constant 0 : i32
    return %c0_i32, %c0_i32_0 : i32, i32
  }
  func.func @transform_3(%arg0: i32) -> (i32, i32) {
    %c0_i32 = arith.constant 0 : i32
    %c0_i32_0 = arith.constant 0 : i32
    %c0_i32_1 = arith.constant 0 : i32
    return %c0_i32, %c0_i32_0 : i32, i32
  }
  func.func @transform_4(%arg0: i32) -> (i32, i32) {
    %c0_i32 = arith.constant 0 : i32
    %c0_i32_0 = arith.constant 0 : i32
    %c0_i32_1 = arith.constant 0 : i32
    return %c0_i32, %c0_i32_0 : i32, i32
  }
  func.func @transform_5(%arg0: i32) -> (i32, i32, i32) {
    %c0_i32 = arith.constant 0 : i32
    %c0_i32_0 = arith.constant 0 : i32
    %c0_i32_1 = arith.constant 0 : i32
    %c0_i32_2 = arith.constant 0 : i32
    return %c0_i32, %c0_i32_0, %c0_i32_1 : i32, i32, i32
  }
  func.func @transform_6(%arg0: i32) -> (i32, i32) {
    %c0_i32 = arith.constant 0 : i32
    %c0_i32_0 = arith.constant 0 : i32
    %c0_i32_1 = arith.constant 0 : i32
    return %c0_i32, %c0_i32_0 : i32, i32
  }
  func.func @transform_7(%arg0: i32) -> (i32, i32) {
    %c0_i32 = arith.constant 0 : i32
    %c0_i32_0 = arith.constant 0 : i32
    %c0_i32_1 = arith.constant 0 : i32
    return %c0_i32, %c0_i32_0 : i32, i32
  }
  func.func @transform_8(%arg0: i32) -> (i32, i32) {
    %c0_i32 = arith.constant 0 : i32
    %c0_i32_0 = arith.constant 0 : i32
    %c0_i32_1 = arith.constant 0 : i32
    return %c0_i32, %c0_i32_0 : i32, i32
  }
  func.func @transform_9(%arg0: i32) -> (i32, i32, i32) {
    %c0_i32 = arith.constant 0 : i32
    %c0_i32_0 = arith.constant 0 : i32
    %c0_i32_1 = arith.constant 0 : i32
    %c0_i32_2 = arith.constant 0 : i32
    return %c0_i32, %c0_i32_0, %c0_i32_1 : i32, i32, i32
  }
  func.func @transform_10(%arg0: i32) -> (i32, i32) {
    %c0_i32 = arith.constant 0 : i32
    %c0_i32_0 = arith.constant 0 : i32
    %c0_i32_1 = arith.constant 0 : i32
    return %c0_i32, %c0_i32_0 : i32, i32
  }
  func.func @transform_11(%arg0: i32) -> (i32, i32) {
    %c0_i32 = arith.constant 0 : i32
    %c0_i32_0 = arith.constant 0 : i32
    %c0_i32_1 = arith.constant 0 : i32
    return %c0_i32, %c0_i32_0 : i32, i32
  }
  func.func @transform_12(%arg0: i32) -> (i32, i32) {
    %c0_i32 = arith.constant 0 : i32
    %c0_i32_0 = arith.constant 0 : i32
    %c0_i32_1 = arith.constant 0 : i32
    return %c0_i32, %c0_i32_0 : i32, i32
  }
  func.func @transform_13(%arg0: i32) -> (i32, i32, i32) {
    %c0_i32 = arith.constant 0 : i32
    %c0_i32_0 = arith.constant 0 : i32
    %c0_i32_1 = arith.constant 0 : i32
    %c0_i32_2 = arith.constant 0 : i32
    return %c0_i32, %c0_i32_0, %c0_i32_1 : i32, i32, i32
  }
  func.func @transform_14(%arg0: i32) -> (i32, i32) {
    %c0_i32 = arith.constant 0 : i32
    %c0_i32_0 = arith.constant 0 : i32
    %c0_i32_1 = arith.constant 0 : i32
    return %c0_i32, %c0_i32_0 : i32, i32
  }
  func.func @transform_15(%arg0: i32) -> (i32, i32) {
    %c0_i32 = arith.constant 0 : i32
    %c0_i32_0 = arith.constant 0 : i32
    %c0_i32_1 = arith.constant 0 : i32
    return %c0_i32, %c0_i32_0 : i32, i32
  }
  func.func @transform_16(%arg0: i32) -> (i32, i32) {
    %c0_i32 = arith.constant 0 : i32
    %c0_i32_0 = arith.constant 0 : i32
    %c0_i32_1 = arith.constant 0 : i32
    return %c0_i32, %c0_i32_0 : i32, i32
  }
  func.func @transform_17(%arg0: i32) -> (i32, i32, i32) {
    %c0_i32 = arith.constant 0 : i32
    %c0_i32_0 = arith.constant 0 : i32
    %c0_i32_1 = arith.constant 0 : i32
    %c0_i32_2 = arith.constant 0 : i32
    return %c0_i32, %c0_i32_0, %c0_i32_1 : i32, i32, i32
  }
  func.func @transform_18(%arg0: i32) -> (i32, i32) {
    %c0_i32 = arith.constant 0 : i32
    %c0_i32_0 = arith.constant 0 : i32
    %c0_i32_1 = arith.constant 0 : i32
    return %c0_i32, %c0_i32_0 : i32, i32
  }
  func.func @transform_19(%arg0: i32) -> (i32, i32) {
    %c0_i32 = arith.constant 0 : i32
    %c0_i32_0 = arith.constant 0 : i32
    %c0_i32_1 = arith.constant 0 : i32
    return %c0_i32, %c0_i32_0 : i32, i32
  }
  func.func @transform_20(%arg0: i32) -> (i32, i32) {
    %c0_i32 = arith.constant 0 : i32
    %c0_i32_0 = arith.constant 0 : i32
    %c0_i32_1 = arith.constant 0 : i32
    return %c0_i32, %c0_i32_0 : i32, i32
  }
  func.func @transform_21(%arg0: i32) -> (i32, i32, i32) {
    %c0_i32 = arith.constant 0 : i32
    %c0_i32_0 = arith.constant 0 : i32
    %c0_i32_1 = arith.constant 0 : i32
    return %arg0, %c0_i32, %c0_i32_0 : i32, i32, i32
  }
}

</mosaic_0001>

<llo_original>
// kernel: tpu_custom_call.1
$region0: #{tpu_custom_call.1}
  #allocation0 [shape = 'u32[]', space=smem, size = 0x4, offset = 0x4, fixed_abs, tag = 'smem constant byte address 0x4 - core index']
  #allocation1 [shape = 'u32[144,128]{1,0:T(1,128)}', space=vmem, size = 0x12000, scoped, tag = 'internal scratch']
  #allocation2 [shape = 'f32[6,32,256]{2,1,0:T(8,128)}', space=vmem, size = 0x30000, scoped, tag = 'scratch operand']
  %s0 = inlined_call_operand.vmem [shape: f32[2,32,256], index: 0, kind: input, shape index: {}]
  %s1 = inlined_call_operand.vmem [shape: f32[8,256], index: 1, kind: input, shape index: {}]
  %s2 = inlined_call_operand.vmem [shape: bf16[64,32], index: 2, kind: input, shape index: {}]
  %s3 = inlined_call_operand.vmem [shape: f32[64,1], index: 3, kind: input, shape index: {}]
  %s4 = inlined_call_operand.vmem [shape: f32[64,1], index: 4, kind: input, shape index: {}]
  %s5 = inlined_call_operand.vmem [shape: f32[9,32,1], index: 5, kind: input, shape index: {}]
  %s6 = inlined_call_operand.vmem [shape: bf16[32,32], index: 6, kind: input, shape index: {}]
  %s7 = inlined_call_operand.vmem [shape: f32[32,1], index: 7, kind: input, shape index: {}]
  %s8 = inlined_call_operand.vmem [shape: f32[32,1], index: 8, kind: input, shape index: {}]
  %s9 = inlined_call_operand.vmem [shape: f32[9,32,1], index: 9, kind: input, shape index: {}]
  %s10 = inlined_call_operand.vmem [shape: bf16[32,32], index: 10, kind: input, shape index: {}]
  %s11 = inlined_call_operand.vmem [shape: f32[32,1], index: 11, kind: input, shape index: {}]
  %s12 = inlined_call_operand.vmem [shape: f32[32,1], index: 12, kind: input, shape index: {}]
  %s13 = inlined_call_operand.vmem [shape: f32[9,32,1], index: 13, kind: input, shape index: {}]
  %s14 = inlined_call_operand.vmem [shape: bf16[32,32], index: 14, kind: input, shape index: {}]
  %s15 = inlined_call_operand.vmem [shape: f32[32,1], index: 15, kind: input, shape index: {}]
  %s16 = inlined_call_operand.vmem [shape: f32[32,1], index: 16, kind: input, shape index: {}]
  %s17 = inlined_call_operand.vmem [shape: f32[9,32,1], index: 17, kind: input, shape index: {}]
  %s18 = inlined_call_operand.vmem [shape: bf16[32,32], index: 18, kind: input, shape index: {}]
  %s19 = inlined_call_operand.vmem [shape: f32[32,1], index: 19, kind: input, shape index: {}]
  %s20 = inlined_call_operand.vmem [shape: f32[32,1], index: 20, kind: input, shape index: {}]
  %s21 = inlined_call_operand.hbm [shape: f32[2,128,256], index: 21, kind: output, shape index: {}]
  %s22 = sld [smem:[#allocation0]]
  $region117: #{tpu_custom_call.1} parent=0
    _
  %s24 = ssub.s32 1, %s22
  %s25 = scalar_select 0, %s24, %s22
  $region1: #{tpu_custom_call.1} parent=0
    #allocation3 [shape = 'u8[262144]{0}', space=vmem, size = 0x40000, scoped, tag = 'output window, operand 0']
    #allocation4 [shape = 's32[2]{0}', space=sflag, size = 0x8, scoped, tag = 'scoped memory for tpu_custom_call.1']
    %26 = vsyncpa [#allocation4], 0
    %s27 = scalar_lea.sflag [#allocation4], 1
    %28 = vsyncpa %s27, 0
    loop: start=0, step=1, limit=4
    $region2: #{tpu_custom_call.1} parent=1 // loop_pre_header
      _
    $region3: #{tpu_custom_call.1} parent=1 // loop_header
      %s30 = sphi 0, %s34
      %p31 = scmp.ge.s32.totalorder %s30, 4
      %s40 = sphi 0, %s42
      %s43 = sphi 0, %s40
      %s44 = sphi 0, %s43
      %s60 = sphi 0, %s44
      %s64 = sphi 0, %s64
      %s66 = sphi 0, %s64
      %s67 = sphi 0, %s66
      %s81 = sphi 0, %s67
      %s85 = sphi 0, %s85
      %s87 = sphi 0, %s85
      %s88 = sphi 0, %s87
      %s102 = sphi 0, %s88
      %s106 = sphi 0, %s106
      %s108 = sphi 0, %s106
      %s109 = sphi 0, %s108
      %s123 = sphi 0, %s109
      %s127 = sphi 0, %s127
      %s129 = sphi 0, %s127
      %s130 = sphi 0, %s129
      %s144 = sphi 0, %s130
      %s148 = sphi 0, %s148
      %s150 = sphi 0, %s148
      %s151 = sphi 0, %s150
      %s165 = sphi 0, %s151
      %s169 = sphi 0, %s169
      %s171 = sphi 0, %s169
      %s172 = sphi 0, %s171
      %s186 = sphi 0, %s172
      %s190 = sphi 0, %s190
      %s192 = sphi 0, %s190
      %s193 = sphi 0, %s192
      %s207 = sphi 0, %s193
      %s211 = sphi 0, %s211
      %s213 = sphi 0, %s211
      %s214 = sphi 0, %s213
      %s228 = sphi 0, %s214
      %s232 = sphi 0, %s232
      %s234 = sphi 0, %s232
      %s235 = sphi 0, %s234
      %s249 = sphi 0, %s235
      %s253 = sphi 0, %s253
      %s255 = sphi 0, %s253
      %s256 = sphi 0, %s255
      %s270 = sphi 0, %s256
      %s274 = sphi 0, %s274
      %s276 = sphi 0, %s274
      %s277 = sphi 0, %s276
      %s291 = sphi 0, %s277
      %s295 = sphi 0, %s295
      %s297 = sphi 0, %s295
      %s298 = sphi 0, %s297
      %s312 = sphi 0, %s298
      %s316 = sphi 0, %s316
      %s318 = sphi 0, %s316
      %s319 = sphi 0, %s318
      %s333 = sphi 0, %s319
      %s337 = sphi 0, %s337
      %s339 = sphi 0, %s337
      %s340 = sphi 0, %s339
      %s354 = sphi 0, %s340
      %s358 = sphi 0, %s358
      %s360 = sphi 0, %s358
      %s361 = sphi 0, %s360
      %s375 = sphi 0, %s361
      %s379 = sphi 0, %s379
      %s381 = sphi 0, %s379
      %s382 = sphi 0, %s381
      %s396 = sphi 0, %s382
      %s400 = sphi 0, %s400
      %s402 = sphi 0, %s400
      %s403 = sphi 0, %s402
      %s417 = sphi 0, %s403
      %s421 = sphi 0, %s421
      %s423 = sphi 0, %s421
      %s424 = sphi 0, %s423
      %s438 = sphi 0, %s424
      %s442 = sphi 0, %s442
      %s444 = sphi 0, %s442
      %s445 = sphi 0, %s444
      %s459 = sphi 0, %s445
      %s463 = sphi 0, %s463
      %s465 = sphi 0, %s463
      %s466 = sphi 0, %s465
      %s480 = sphi 0, %s466
      %s486 = sphi 0, %s488
      %s489 = sphi 0, %s486
      %s490 = sphi 0, %s489
      %s506 = sphi 0, %s490
    $region4: #{tpu_custom_call.1} parent=1 // loop_header_branch
      %33 = sbr.rel (%p31) target = $region8
    $region5: #{tpu_custom_call.1} parent=1 // loop_body
      %s35 = ssub.s32 %s30, 1
      %s36 = ssub.s32 %s30, 2
      %s37 = sadd.s32 %s30, 1
      %s38 = ssub.s32 %s30, %s37
      %p39 = scmp.eq.s32.totalorder %s38, 0
      %s41 = sadd.s32 %s40, 1
      %s42 = scalar_select %p39, %s40, %s41
      %p45 = pneg %p39
      %p46 = scmp.eq.s32.totalorder %s30, 1
      %p47 = por %p45, %p46
      %p48 = scmp.ne.s32.totalorder %s40, %s43
      %p49 = scmp.eq.s32.totalorder %s30, 0
      %p50 = por %p48, %p49
      %p51 = scmp.ne.s32.totalorder %s40, %s43
      %p52 = scmp.eq.s32.totalorder %s35, 1
      %p53 = por %p51, %p52
      %p54 = scmp.ne.s32.totalorder %s43, %s44
      %p55 = scmp.eq.s32.totalorder %s35, 0
      %p56 = por %p54, %p55
      %p57 = scmp.ne.s32.totalorder %s43, %s44
      %p58 = scmp.eq.s32.totalorder %s36, 1
      %p59 = por %p57, %p58
      %p61 = scmp.ne.s32.totalorder %s44, %s60
      %p62 = scmp.eq.s32.totalorder %s36, 0
      %p63 = por %p61, %p62
      %s65 = sadd.s32 %s64, 1
      %p68 = scmp.eq.s32.totalorder %s30, 1
      %p69 = scmp.ne.s32.totalorder %s64, %s66
      %p70 = scmp.eq.s32.totalorder %s30, 0
      %p71 = por %p69, %p70
      %p72 = scmp.ne.s32.totalorder %s64, %s66
      %p73 = scmp.eq.s32.totalorder %s35, 1
      %p74 = por %p72, %p73
      %p75 = scmp.ne.s32.totalorder %s66, %s67
      %p76 = scmp.eq.s32.totalorder %s35, 0
      %p77 = por %p75, %p76
      %p78 = scmp.ne.s32.totalorder %s66, %s67
      %p79 = scmp.eq.s32.totalorder %s36, 1
      %p80 = por %p78, %p79
      %p82 = scmp.ne.s32.totalorder %s67, %s81
      %p83 = scmp.eq.s32.totalorder %s36, 0
      %p84 = por %p82, %p83
      %s86 = sadd.s32 %s85, 1
      %p89 = scmp.eq.s32.totalorder %s30, 1
      %p90 = scmp.ne.s32.totalorder %s85, %s87
      %p91 = scmp.eq.s32.totalorder %s30, 0
      %p92 = por %p90, %p91
      %p93 = scmp.ne.s32.totalorder %s85, %s87
      %p94 = scmp.eq.s32.totalorder %s35, 1
      %p95 = por %p93, %p94
      %p96 = scmp.ne.s32.totalorder %s87, %s88
      %p97 = scmp.eq.s32.totalorder %s35, 0
      %p98 = por %p96, %p97
      %p99 = scmp.ne.s32.totalorder %s87, %s88
      %p100 = scmp.eq.s32.totalorder %s36, 1
      %p101 = por %p99, %p100
      %p103 = scmp.ne.s32.totalorder %s88, %s102
      %p104 = scmp.eq.s32.totalorder %s36, 0
      %p105 = por %p103, %p104
      %s107 = sadd.s32 %s106, 1
      %p110 = scmp.eq.s32.totalorder %s30, 1
      %p111 = scmp.ne.s32.totalorder %s106, %s108
      %p112 = scmp.eq.s32.totalorder %s30, 0
      %p113 = por %p111, %p112
      %p114 = scmp.ne.s32.totalorder %s106, %s108
      %p115 = scmp.eq.s32.totalorder %s35, 1
      %p116 = por %p114, %p115
      %p117 = scmp.ne.s32.totalorder %s108, %s109
      %p118 = scmp.eq.s32.totalorder %s35, 0
      %p119 = por %p117, %p118
      %p120 = scmp.ne.s32.totalorder %s108, %s109
      %p121 = scmp.eq.s32.totalorder %s36, 1
      %p122 = por %p120, %p121
      %p124 = scmp.ne.s32.totalorder %s109, %s123
      %p125 = scmp.eq.s32.totalorder %s36, 0
      %p126 = por %p124, %p125
      %s128 = sadd.s32 %s127, 1
      %p131 = scmp.eq.s32.totalorder %s30, 1
      %p132 = scmp.ne.s32.totalorder %s127, %s129
      %p133 = scmp.eq.s32.totalorder %s30, 0
      %p134 = por %p132, %p133
      %p135 = scmp.ne.s32.totalorder %s127, %s129
      %p136 = scmp.eq.s32.totalorder %s35, 1
      %p137 = por %p135, %p136
      %p138 = scmp.ne.s32.totalorder %s129, %s130
      %p139 = scmp.eq.s32.totalorder %s35, 0
      %p140 = por %p138, %p139
      %p141 = scmp.ne.s32.totalorder %s129, %s130
      %p142 = scmp.eq.s32.totalorder %s36, 1
      %p143 = por %p141, %p142
      %p145 = scmp.ne.s32.totalorder %s130, %s144
      %p146 = scmp.eq.s32.totalorder %s36, 0
      %p147 = por %p145, %p146
      %s149 = sadd.s32 %s148, 1
      %p152 = scmp.eq.s32.totalorder %s30, 1
      %p153 = scmp.ne.s32.totalorder %s148, %s150
      %p154 = scmp.eq.s32.totalorder %s30, 0
      %p155 = por %p153, %p154
      %p156 = scmp.ne.s32.totalorder %s148, %s150
      %p157 = scmp.eq.s32.totalorder %s35, 1
      %p158 = por %p156, %p157
      %p159 = scmp.ne.s32.totalorder %s150, %s151
      %p160 = scmp.eq.s32.totalorder %s35, 0
      %p161 = por %p159, %p160
      %p162 = scmp.ne.s32.totalorder %s150, %s151
      %p163 = scmp.eq.s32.totalorder %s36, 1
      %p164 = por %p162, %p163
      %p166 = scmp.ne.s32.totalorder %s151, %s165
      %p167 = scmp.eq.s32.totalorder %s36, 0
      %p168 = por %p166, %p167
      %s170 = sadd.s32 %s169, 1
      %p173 = scmp.eq.s32.totalorder %s30, 1
      %p174 = scmp.ne.s32.totalorder %s169, %s171
      %p175 = scmp.eq.s32.totalorder %s30, 0
      %p176 = por %p174, %p175
      %p177 = scmp.ne.s32.totalorder %s169, %s171
      %p178 = scmp.eq.s32.totalorder %s35, 1
      %p179 = por %p177, %p178
      %p180 = scmp.ne.s32.totalorder %s171, %s172
      %p181 = scmp.eq.s32.totalorder %s35, 0
      %p182 = por %p180, %p181
      %p183 = scmp.ne.s32.totalorder %s171, %s172
      %p184 = scmp.eq.s32.totalorder %s36, 1
      %p185 = por %p183, %p184
      %p187 = scmp.ne.s32.totalorder %s172, %s186
      %p188 = scmp.eq.s32.totalorder %s36, 0
      %p189 = por %p187, %p188
      %s191 = sadd.s32 %s190, 1
      %p194 = scmp.eq.s32.totalorder %s30, 1
      %p195 = scmp.ne.s32.totalorder %s190, %s192
      %p196 = scmp.eq.s32.totalorder %s30, 0
      %p197 = por %p195, %p196
      %p198 = scmp.ne.s32.totalorder %s190, %s192
      %p199 = scmp.eq.s32.totalorder %s35, 1
      %p200 = por %p198, %p199
      %p201 = scmp.ne.s32.totalorder %s192, %s193
      %p202 = scmp.eq.s32.totalorder %s35, 0
      %p203 = por %p201, %p202
      %p204 = scmp.ne.s32.totalorder %s192, %s193
      %p205 = scmp.eq.s32.totalorder %s36, 1
      %p206 = por %p204, %p205
      %p208 = scmp.ne.s32.totalorder %s193, %s207
      %p209 = scmp.eq.s32.totalorder %s36, 0
      %p210 = por %p208, %p209
      %s212 = sadd.s32 %s211, 1
      %p215 = scmp.eq.s32.totalorder %s30, 1
      %p216 = scmp.ne.s32.totalorder %s211, %s213
      %p217 = scmp.eq.s32.totalorder %s30, 0
      %p218 = por %p216, %p217
      %p219 = scmp.ne.s32.totalorder %s211, %s213
      %p220 = scmp.eq.s32.totalorder %s35, 1
      %p221 = por %p219, %p220
      %p222 = scmp.ne.s32.totalorder %s213, %s214
      %p223 = scmp.eq.s32.totalorder %s35, 0
      %p224 = por %p222, %p223
      %p225 = scmp.ne.s32.totalorder %s213, %s214
      %p226 = scmp.eq.s32.totalorder %s36, 1
      %p227 = por %p225, %p226
      %p229 = scmp.ne.s32.totalorder %s214, %s228
      %p230 = scmp.eq.s32.totalorder %s36, 0
      %p231 = por %p229, %p230
      %s233 = sadd.s32 %s232, 1
      %p236 = scmp.eq.s32.totalorder %s30, 1
      %p237 = scmp.ne.s32.totalorder %s232, %s234
      %p238 = scmp.eq.s32.totalorder %s30, 0
      %p239 = por %p237, %p238
      %p240 = scmp.ne.s32.totalorder %s232, %s234
      %p241 = scmp.eq.s32.totalorder %s35, 1
      %p242 = por %p240, %p241
      %p243 = scmp.ne.s32.totalorder %s234, %s235
      %p244 = scmp.eq.s32.totalorder %s35, 0
      %p245 = por %p243, %p244
      %p246 = scmp.ne.s32.totalorder %s234, %s235
      %p247 = scmp.eq.s32.totalorder %s36, 1
      %p248 = por %p246, %p247
      %p250 = scmp.ne.s32.totalorder %s235, %s249
      %p251 = scmp.eq.s32.totalorder %s36, 0
      %p252 = por %p250, %p251
      %s254 = sadd.s32 %s253, 1
      %p257 = scmp.eq.s32.totalorder %s30, 1
      %p258 = scmp.ne.s32.totalorder %s253, %s255
      %p259 = scmp.eq.s32.totalorder %s30, 0
      %p260 = por %p258, %p259
      %p261 = scmp.ne.s32.totalorder %s253, %s255
      %p262 = scmp.eq.s32.totalorder %s35, 1
      %p263 = por %p261, %p262
      %p264 = scmp.ne.s32.totalorder %s255, %s256
      %p265 = scmp.eq.s32.totalorder %s35, 0
      %p266 = por %p264, %p265
      %p267 = scmp.ne.s32.totalorder %s255, %s256
      %p268 = scmp.eq.s32.totalorder %s36, 1
      %p269 = por %p267, %p268
      %p271 = scmp.ne.s32.totalorder %s256, %s270
      %p272 = scmp.eq.s32.totalorder %s36, 0
      %p273 = por %p271, %p272
      %s275 = sadd.s32 %s274, 1
      %p278 = scmp.eq.s32.totalorder %s30, 1
      %p279 = scmp.ne.s32.totalorder %s274, %s276
      %p280 = scmp.eq.s32.totalorder %s30, 0
      %p281 = por %p279, %p280
      %p282 = scmp.ne.s32.totalorder %s274, %s276
      %p283 = scmp.eq.s32.totalorder %s35, 1
      %p284 = por %p282, %p283
      %p285 = scmp.ne.s32.totalorder %s276, %s277
      %p286 = scmp.eq.s32.totalorder %s35, 0
      %p287 = por %p285, %p286
      %p288 = scmp.ne.s32.totalorder %s276, %s277
      %p289 = scmp.eq.s32.totalorder %s36, 1
      %p290 = por %p288, %p289
      %p292 = scmp.ne.s32.totalorder %s277, %s291
      %p293 = scmp.eq.s32.totalorder %s36, 0
      %p294 = por %p292, %p293
      %s296 = sadd.s32 %s295, 1
      %p299 = scmp.eq.s32.totalorder %s30, 1
      %p300 = scmp.ne.s32.totalorder %s295, %s297
      %p301 = scmp.eq.s32.totalorder %s30, 0
      %p302 = por %p300, %p301
      %p303 = scmp.ne.s32.totalorder %s295, %s297
      %p304 = scmp.eq.s32.totalorder %s35, 1
      %p305 = por %p303, %p304
      %p306 = scmp.ne.s32.totalorder %s297, %s298
      %p307 = scmp.eq.s32.totalorder %s35, 0
      %p308 = por %p306, %p307
      %p309 = scmp.ne.s32.totalorder %s297, %s298
      %p310 = scmp.eq.s32.totalorder %s36, 1
      %p311 = por %p309, %p310
      %p313 = scmp.ne.s32.totalorder %s298, %s312
      %p314 = scmp.eq.s32.totalorder %s36, 0
      %p315 = por %p313, %p314
      %s317 = sadd.s32 %s316, 1
      %p320 = scmp.eq.s32.totalorder %s30, 1
      %p321 = scmp.ne.s32.totalorder %s316, %s318
      %p322 = scmp.eq.s32.totalorder %s30, 0
      %p323 = por %p321, %p322
      %p324 = scmp.ne.s32.totalorder %s316, %s318
      %p325 = scmp.eq.s32.totalorder %s35, 1
      %p326 = por %p324, %p325
      %p327 = scmp.ne.s32.totalorder %s318, %s319
      %p328 = scmp.eq.s32.totalorder %s35, 0
      %p329 = por %p327, %p328
      %p330 = scmp.ne.s32.totalorder %s318, %s319
      %p331 = scmp.eq.s32.totalorder %s36, 1
      %p332 = por %p330, %p331
      %p334 = scmp.ne.s32.totalorder %s319, %s333
      %p335 = scmp.eq.s32.totalorder %s36, 0
      %p336 = por %p334, %p335
      %s338 = sadd.s32 %s337, 1
      %p341 = scmp.eq.s32.totalorder %s30, 1
      %p342 = scmp.ne.s32.totalorder %s337, %s339
      %p343 = scmp.eq.s32.totalorder %s30, 0
      %p344 = por %p342, %p343
      %p345 = scmp.ne.s32.totalorder %s337, %s339
      %p346 = scmp.eq.s32.totalorder %s35, 1
      %p347 = por %p345, %p346
      %p348 = scmp.ne.s32.totalorder %s339, %s340
      %p349 = scmp.eq.s32.totalorder %s35, 0
      %p350 = por %p348, %p349
      %p351 = scmp.ne.s32.totalorder %s339, %s340
      %p352 = scmp.eq.s32.totalorder %s36, 1
      %p353 = por %p351, %p352
      %p355 = scmp.ne.s32.totalorder %s340, %s354
      %p356 = scmp.eq.s32.totalorder %s36, 0
      %p357 = por %p355, %p356
      %s359 = sadd.s32 %s358, 1
      %p362 = scmp.eq.s32.totalorder %s30, 1
      %p363 = scmp.ne.s32.totalorder %s358, %s360
      %p364 = scmp.eq.s32.totalorder %s30, 0
      %p365 = por %p363, %p364
      %p366 = scmp.ne.s32.totalorder %s358, %s360
      %p367 = scmp.eq.s32.totalorder %s35, 1
      %p368 = por %p366, %p367
      %p369 = scmp.ne.s32.totalorder %s360, %s361
      %p370 = scmp.eq.s32.totalorder %s35, 0
      %p371 = por %p369, %p370
      %p372 = scmp.ne.s32.totalorder %s360, %s361
      %p373 = scmp.eq.s32.totalorder %s36, 1
      %p374 = por %p372, %p373
      %p376 = scmp.ne.s32.totalorder %s361, %s375
      %p377 = scmp.eq.s32.totalorder %s36, 0
      %p378 = por %p376, %p377
      %s380 = sadd.s32 %s379, 1
      %p383 = scmp.eq.s32.totalorder %s30, 1
      %p384 = scmp.ne.s32.totalorder %s379, %s381
      %p385 = scmp.eq.s32.totalorder %s30, 0
      %p386 = por %p384, %p385
      %p387 = scmp.ne.s32.totalorder %s379, %s381
      %p388 = scmp.eq.s32.totalorder %s35, 1
      %p389 = por %p387, %p388
      %p390 = scmp.ne.s32.totalorder %s381, %s382
      %p391 = scmp.eq.s32.totalorder %s35, 0
      %p392 = por %p390, %p391
      %p393 = scmp.ne.s32.totalorder %s381, %s382
      %p394 = scmp.eq.s32.totalorder %s36, 1
      %p395 = por %p393, %p394
      %p397 = scmp.ne.s32.totalorder %s382, %s396
      %p398 = scmp.eq.s32.totalorder %s36, 0
      %p399 = por %p397, %p398
      %s401 = sadd.s32 %s400, 1
      %p404 = scmp.eq.s32.totalorder %s30, 1
      %p405 = scmp.ne.s32.totalorder %s400, %s402
      %p406 = scmp.eq.s32.totalorder %s30, 0
      %p407 = por %p405, %p406
      %p408 = scmp.ne.s32.totalorder %s400, %s402
      %p409 = scmp.eq.s32.totalorder %s35, 1
      %p410 = por %p408, %p409
      %p411 = scmp.ne.s32.totalorder %s402, %s403
      %p412 = scmp.eq.s32.totalorder %s35, 0
      %p413 = por %p411, %p412
      %p414 = scmp.ne.s32.totalorder %s402, %s403
      %p415 = scmp.eq.s32.totalorder %s36, 1
      %p416 = por %p414, %p415
      %p418 = scmp.ne.s32.totalorder %s403, %s417
      %p419 = scmp.eq.s32.totalorder %s36, 0
      %p420 = por %p418, %p419
      %s422 = sadd.s32 %s421, 1
      %p425 = scmp.eq.s32.totalorder %s30, 1
      %p426 = scmp.ne.s32.totalorder %s421, %s423
      %p427 = scmp.eq.s32.totalorder %s30, 0
      %p428 = por %p426, %p427
      %p429 = scmp.ne.s32.totalorder %s421, %s423
      %p430 = scmp.eq.s32.totalorder %s35, 1
      %p431 = por %p429, %p430
      %p432 = scmp.ne.s32.totalorder %s423, %s424
      %p433 = scmp.eq.s32.totalorder %s35, 0
      %p434 = por %p432, %p433
      %p435 = scmp.ne.s32.totalorder %s423, %s424
      %p436 = scmp.eq.s32.totalorder %s36, 1
      %p437 = por %p435, %p436
      %p439 = scmp.ne.s32.totalorder %s424, %s438
      %p440 = scmp.eq.s32.totalorder %s36, 0
      %p441 = por %p439, %p440
      %s443 = sadd.s32 %s442, 1
      %p446 = scmp.eq.s32.totalorder %s30, 1
      %p447 = scmp.ne.s32.totalorder %s442, %s444
      %p448 = scmp.eq.s32.totalorder %s30, 0
      %p449 = por %p447, %p448
      %p450 = scmp.ne.s32.totalorder %s442, %s444
      %p451 = scmp.eq.s32.totalorder %s35, 1
      %p452 = por %p450, %p451
      %p453 = scmp.ne.s32.totalorder %s444, %s445
      %p454 = scmp.eq.s32.totalorder %s35, 0
      %p455 = por %p453, %p454
      %p456 = scmp.ne.s32.totalorder %s444, %s445
      %p457 = scmp.eq.s32.totalorder %s36, 1
      %p458 = por %p456, %p457
      %p460 = scmp.ne.s32.totalorder %s445, %s459
      %p461 = scmp.eq.s32.totalorder %s36, 0
      %p462 = por %p460, %p461
      %s464 = sadd.s32 %s463, 1
      %p467 = scmp.eq.s32.totalorder %s30, 1
      %p468 = scmp.ne.s32.totalorder %s463, %s465
      %p469 = scmp.eq.s32.totalorder %s30, 0
      %p470 = por %p468, %p469
      %p471 = scmp.ne.s32.totalorder %s463, %s465
      %p472 = scmp.eq.s32.totalorder %s35, 1
      %p473 = por %p471, %p472
      %p474 = scmp.ne.s32.totalorder %s465, %s466
      %p475 = scmp.eq.s32.totalorder %s35, 0
      %p476 = por %p474, %p475
      %p477 = scmp.ne.s32.totalorder %s465, %s466
      %p478 = scmp.eq.s32.totalorder %s36, 1
      %p479 = por %p477, %p478
      %p481 = scmp.ne.s32.totalorder %s466, %s480
      %p482 = scmp.eq.s32.totalorder %s36, 0
      %p483 = por %p481, %p482
      %s484 = ssub.s32 %s30, %s37
      %p485 = scmp.eq.s32.totalorder %s484, 0
      %s487 = sadd.s32 %s486, 1
      %s488 = scalar_select %p485, %s486, %s487
      %p491 = pneg %p485
      %p492 = scmp.eq.s32.totalorder %s30, 1
      %p493 = por %p491, %p492
      %p494 = scmp.ne.s32.totalorder %s486, %s489
      %p495 = scmp.eq.s32.totalorder %s30, 0
      %p496 = por %p494, %p495
      %p497 = scmp.ne.s32.totalorder %s486, %s489
      %p498 = scmp.eq.s32.totalorder %s35, 1
      %p499 = por %p497, %p498
      %p500 = scmp.ne.s32.totalorder %s489, %s490
      %p501 = scmp.eq.s32.totalorder %s35, 0
      %p502 = por %p500, %p501
      %p503 = scmp.ne.s32.totalorder %s489, %s490
      %p504 = scmp.eq.s32.totalorder %s36, 1
      %p505 = por %p503, %p504
      %p507 = scmp.ne.s32.totalorder %s490, %s506
      %p508 = scmp.eq.s32.totalorder %s36, 0
      %p509 = por %p507, %p508
      %p510 = scmp.le.s32.totalorder 1, %s30
      %p511 = scmp.lt.s32.totalorder %s30, 3
      %p512 = pnand %p510, %p511
      %p513 = pneg %p512
      // Predicated region
      $region9: #{tpu_custom_call.1} parent=5 // pred_check
        _
      $region10: #{tpu_custom_call.1} parent=5 // pred_check_branch
        %515 = sbr.rel (%p512) target = $region12
      $region11: #{tpu_custom_call.1} parent=5 // pred_region
        %s516 = ssub.s32 %s30, 1
        // Predicated region
        $region13: #{tpu_custom_call.1} parent=11 // pred_check
          %p517 = pneg %p77
        $region14: #{tpu_custom_call.1} parent=11 // pred_check_branch
          %519 = sbr.rel (%p517) target = $region16
        $region15: #{tpu_custom_call.1} parent=11 // pred_region
          _
        $region16: #{tpu_custom_call.1} parent=11 // pred_fallthru
          _
        // Predicated region
        $region17: #{tpu_custom_call.1} parent=11 // pred_check
          %p520 = pneg %p98
        $region18: #{tpu_custom_call.1} parent=11 // pred_check_branch
          %522 = sbr.rel (%p520) target = $region20
        $region19: #{tpu_custom_call.1} parent=11 // pred_region
          _
        $region20: #{tpu_custom_call.1} parent=11 // pred_fallthru
          _
        // Predicated region
        $region21: #{tpu_custom_call.1} parent=11 // pred_check
          %p523 = pneg %p119
        $region22: #{tpu_custom_call.1} parent=11 // pred_check_branch
          %525 = sbr.rel (%p523) target = $region24
        $region23: #{tpu_custom_call.1} parent=11 // pred_region
          _
        $region24: #{tpu_custom_call.1} parent=11 // pred_fallthru
          _
        // Predicated region
        $region25: #{tpu_custom_call.1} parent=11 // pred_check
          %p526 = pneg %p140
        $region26: #{tpu_custom_call.1} parent=11 // pred_check_branch
          %528 = sbr.rel (%p526) target = $region28
        $region27: #{tpu_custom_call.1} parent=11 // pred_region
          _
        $region28: #{tpu_custom_call.1} parent=11 // pred_fallthru
          _
        // Predicated region
        $region29: #{tpu_custom_call.1} parent=11 // pred_check
          %p529 = pneg %p161
        $region30: #{tpu_custom_call.1} parent=11 // pred_check_branch
          %531 = sbr.rel (%p529) target = $region32
        $region31: #{tpu_custom_call.1} parent=11 // pred_region
          _
        $region32: #{tpu_custom_call.1} parent=11 // pred_fallthru
          _
        // Predicated region
        $region33: #{tpu_custom_call.1} parent=11 // pred_check
          %p532 = pneg %p182
        $region34: #{tpu_custom_call.1} parent=11 // pred_check_branch
          %534 = sbr.rel (%p532) target = $region36
        $region35: #{tpu_custom_call.1} parent=11 // pred_region
          _
        $region36: #{tpu_custom_call.1} parent=11 // pred_fallthru
          _
        // Predicated region
        $region37: #{tpu_custom_call.1} parent=11 // pred_check
          %p535 = pneg %p203
        $region38: #{tpu_custom_call.1} parent=11 // pred_check_branch
          %537 = sbr.rel (%p535) target = $region40
        $region39: #{tpu_custom_call.1} parent=11 // pred_region
          _
        $region40: #{tpu_custom_call.1} parent=11 // pred_fallthru
          _
        // Predicated region
        $region41: #{tpu_custom_call.1} parent=11 // pred_check
          %p538 = pneg %p224
        $region42: #{tpu_custom_call.1} parent=11 // pred_check_branch
          %540 = sbr.rel (%p538) target = $region44
        $region43: #{tpu_custom_call.1} parent=11 // pred_region
          _
        $region44: #{tpu_custom_call.1} parent=11 // pred_fallthru
          _
        // Predicated region
        $region45: #{tpu_custom_call.1} parent=11 // pred_check
          %p541 = pneg %p245
        $region46: #{tpu_custom_call.1} parent=11 // pred_check_branch
          %543 = sbr.rel (%p541) target = $region48
        $region47: #{tpu_custom_call.1} parent=11 // pred_region
          _
        $region48: #{tpu_custom_call.1} parent=11 // pred_fallthru
          _
        // Predicated region
        $region49: #{tpu_custom_call.1} parent=11 // pred_check
          %p544 = pneg %p266
        $region50: #{tpu_custom_call.1} parent=11 // pred_check_branch
          %546 = sbr.rel (%p544) target = $region52
        $region51: #{tpu_custom_call.1} parent=11 // pred_region
          _
        $region52: #{tpu_custom_call.1} parent=11 // pred_fallthru
          _
        // Predicated region
        $region53: #{tpu_custom_call.1} parent=11 // pred_check
          %p547 = pneg %p287
        $region54: #{tpu_custom_call.1} parent=11 // pred_check_branch
          %549 = sbr.rel (%p547) target = $region56
        $region55: #{tpu_custom_call.1} parent=11 // pred_region
          _
        $region56: #{tpu_custom_call.1} parent=11 // pred_fallthru
          _
        // Predicated region
        $region57: #{tpu_custom_call.1} parent=11 // pred_check
          %p550 = pneg %p308
        $region58: #{tpu_custom_call.1} parent=11 // pred_check_branch
          %552 = sbr.rel (%p550) target = $region60
        $region59: #{tpu_custom_call.1} parent=11 // pred_region
          _
        $region60: #{tpu_custom_call.1} parent=11 // pred_fallthru
          _
        // Predicated region
        $region61: #{tpu_custom_call.1} parent=11 // pred_check
          %p553 = pneg %p329
        $region62: #{tpu_custom_call.1} parent=11 // pred_check_branch
          %555 = sbr.rel (%p553) target = $region64
        $region63: #{tpu_custom_call.1} parent=11 // pred_region
          _
        $region64: #{tpu_custom_call.1} parent=11 // pred_fallthru
          _
        // Predicated region
        $region65: #{tpu_custom_call.1} parent=11 // pred_check
          %p556 = pneg %p350
        $region66: #{tpu_custom_call.1} parent=11 // pred_check_branch
          %558 = sbr.rel (%p556) target = $region68
        $region67: #{tpu_custom_call.1} parent=11 // pred_region
          _
        $region68: #{tpu_custom_call.1} parent=11 // pred_fallthru
          _
        // Predicated region
        $region69: #{tpu_custom_call.1} parent=11 // pred_check
          %p559 = pneg %p371
        $region70: #{tpu_custom_call.1} parent=11 // pred_check_branch
          %561 = sbr.rel (%p559) target = $region72
        $region71: #{tpu_custom_call.1} parent=11 // pred_region
          _
        $region72: #{tpu_custom_call.1} parent=11 // pred_fallthru
          _
        // Predicated region
        $region73: #{tpu_custom_call.1} parent=11 // pred_check
          %p562 = pneg %p392
        $region74: #{tpu_custom_call.1} parent=11 // pred_check_branch
          %564 = sbr.rel (%p562) target = $region76
        $region75: #{tpu_custom_call.1} parent=11 // pred_region
          _
        $region76: #{tpu_custom_call.1} parent=11 // pred_fallthru
          _
        // Predicated region
        $region77: #{tpu_custom_call.1} parent=11 // pred_check
          %p565 = pneg %p413
        $region78: #{tpu_custom_call.1} parent=11 // pred_check_branch
          %567 = sbr.rel (%p565) target = $region80
        $region79: #{tpu_custom_call.1} parent=11 // pred_region
          _
        $region80: #{tpu_custom_call.1} parent=11 // pred_fallthru
          _
        // Predicated region
        $region81: #{tpu_custom_call.1} parent=11 // pred_check
          %p568 = pneg %p434
        $region82: #{tpu_custom_call.1} parent=11 // pred_check_branch
          %570 = sbr.rel (%p568) target = $region84
        $region83: #{tpu_custom_call.1} parent=11 // pred_region
          _
        $region84: #{tpu_custom_call.1} parent=11 // pred_fallthru
          _
        // Predicated region
        $region85: #{tpu_custom_call.1} parent=11 // pred_check
          %p571 = pneg %p455
        $region86: #{tpu_custom_call.1} parent=11 // pred_check_branch
          %573 = sbr.rel (%p571) target = $region88
        $region87: #{tpu_custom_call.1} parent=11 // pred_region
          _
        $region88: #{tpu_custom_call.1} parent=11 // pred_fallthru
          _
        // Predicated region
        $region89: #{tpu_custom_call.1} parent=11 // pred_check
          %p574 = pneg %p476
        $region90: #{tpu_custom_call.1} parent=11 // pred_check_branch
          %576 = sbr.rel (%p574) target = $region92
        $region91: #{tpu_custom_call.1} parent=11 // pred_region
          _
        $region92: #{tpu_custom_call.1} parent=11 // pred_fallthru
          _
      $region12: #{tpu_custom_call.1} parent=5 // pred_fallthru
        _
      %p577 = scmp.lt.s32.totalorder %s30, 2
      // Predicated region
      $region93: #{tpu_custom_call.1} parent=5 // pred_check
        %p578 = pneg %p577
      $region94: #{tpu_custom_call.1} parent=5 // pred_check_branch
        %580 = sbr.rel (%p578) target = $region96
      $region95: #{tpu_custom_call.1} parent=5 // pred_region
        // Predicated region
        $region97: #{tpu_custom_call.1} parent=95 // pred_check
          %p581 = pneg %p50
        $region98: #{tpu_custom_call.1} parent=95 // pred_check_branch
          %583 = sbr.rel (%p581) target = $region100
        $region99: #{tpu_custom_call.1} parent=95 // pred_region
          %p584 = scmp.lt.s32.totalorder %s30, 1
          %s585 = scalar_select %p584, %s30, 1
          %s586 = smul.addr %s585, 8
          %s587 = smul.addr %s586, 8
          %s588 = scalar_lea.vmem %s0, %s587
        $region100: #{tpu_custom_call.1} parent=95 // pred_fallthru
          _
      $region96: #{tpu_custom_call.1} parent=5 // pred_fallthru
        _
      %p589 = scmp.le.s32.totalorder 1, %s30
      %p590 = scmp.lt.s32.totalorder %s30, 3
      %p591 = pnand %p589, %p590
      %p592 = pneg %p591
      // Predicated region
      $region101: #{tpu_custom_call.1} parent=5 // pred_check
        _
      $region102: #{tpu_custom_call.1} parent=5 // pred_check_branch
        %594 = sbr.rel (%p591) target = $region104
      $region103: #{tpu_custom_call.1} parent=5 // pred_region
        %s595 = ssub.s32 %s30, 1
        %p596 = scmp.lt.s32.totalorder %s35, 1
        %s597 = scalar_select %p596, %s35, 1
        %s598 = smul.addr %s597, 8
        %s599 = smul.addr %s598, 8
        %s600 = scalar_lea.vmem %s0, %s599
        %p601 = pneg %p56
        %p602 = pneg %p53
        %p603 = pneg %p77
        %p604 = pneg %p74
        %p605 = pneg %p98
        %p606 = pneg %p95
        %p607 = pneg %p119
        %p608 = pneg %p116
        %p609 = pneg %p140
        %p610 = pneg %p137
        %p611 = pneg %p161
        %p612 = pneg %p158
        %p613 = pneg %p182
        %p614 = pneg %p179
        %p615 = pneg %p203
        %p616 = pneg %p200
        %p617 = pneg %p224
        %p618 = pneg %p221
        %p619 = pneg %p245
        %p620 = pneg %p242
        %p621 = pneg %p266
        %p622 = pneg %p263
        %p623 = pneg %p287
        %p624 = pneg %p284
        %p625 = pneg %p308
        %p626 = pneg %p305
        %p627 = pneg %p329
        %p628 = pneg %p326
        %p629 = pneg %p350
        %p630 = pneg %p347
        %p631 = pneg %p371
        %p632 = pneg %p368
        %p633 = pneg %p392
        %p634 = pneg %p389
        %p635 = pneg %p413
        %p636 = pneg %p410
        %p637 = pneg %p434
        %p638 = pneg %p431
        %p639 = pneg %p455
        %p640 = pneg %p452
        %p641 = pneg %p476
        %p642 = pneg %p473
        %p643 = pneg %p502
        %p644 = pneg %p499
        %s645 = sand.u32 %s489, 1
        %s646 = scalar_lea.sflag [#allocation4], %s645
        %s647 = sand.u32 %s489, 1
        %s648 = smul.addr %s647, 256
        %s649 = scalar_lea.vmem [#allocation3], %s648
        %p650 = scmp.lt.s32.totalorder %s35, 1
        %s651 = scalar_select %p650, %s35, 1
        %s652 = smul.addr %s651, 8
        %s653 = smul.addr %s652, 8
        %s654 = scalar_lea.vmem %s0, %s653
        %v656 = vld [vmem:[%s1] sm:$0xff]
        %v657 = vld [vmem:[%s1 + $0x8] sm:$0xff]
        %v658 = vld [vmem:[%s654] sm:$0xff]
        %v659 = vld [vmem:[%s654 + $0x8] sm:$0xff]
        %v660 = vld [vmem:[%s654 + $0x10] sm:$0xff]
        %v661 = vld [vmem:[%s654 + $0x18] sm:$0xff]
        %v662 = vld [vmem:[%s654 + $0x20] sm:$0xff]
        %v663 = vld [vmem:[%s654 + $0x28] sm:$0xff]
        %v664 = vld [vmem:[%s654 + $0x30] sm:$0xff]
        %v665 = vld [vmem:[%s654 + $0x38] sm:$0xff]
        %v666 = vmax.f32 %v658, 0.0
        %v667 = vmax.f32 %v659, 0.0
        %v668 = vmax.f32 %v660, 0.0
        %v669 = vmax.f32 %v661, 0.0
        %v670 = vmax.f32 %v662, 0.0
        %v671 = vmax.f32 %v663, 0.0
        %v672 = vmax.f32 %v664, 0.0
        %v673 = vmax.f32 %v665, 0.0
        %v674 = vld [vmem:[%s2] sm:$0xf]
        %v675 = vld [vmem:[%s2 + $0x4] sm:$0xf]
        %v676 = vld [vmem:[%s2 + $0x8] sm:$0xf]
        %v677 = vld [vmem:[%s2 + $0xc] sm:$0xf]
        %v678 = vld [vmem:[%s2 + $0x10] sm:$0xf]
        %v679 = vld [vmem:[%s2 + $0x14] sm:$0xf]
        %v680 = vld [vmem:[%s2 + $0x18] sm:$0xf]
        %v681 = vld [vmem:[%s2 + $0x1c] sm:$0xf]
        %v682 = vpack.c.bf16 %v668, %v666
        %v683 = vpack.c.bf16 %v669, %v667
        %v684 = vpack.c.bf16 %v672, %v670
        %v685 = vpack.c.bf16 %v673, %v671
        %v694 = vunpack.c.l.b16 %v674
        %v695 = vunpack.c.l.b16 %v675
        %v696 = vunpack.c.l.b16 %v676
        %v697 = vunpack.c.l.b16 %v677
        %v698 = vunpack.c.l.b16 %v678
        %v699 = vunpack.c.l.b16 %v679
        %v700 = vunpack.c.l.b16 %v680
        %v701 = vunpack.c.l.b16 %v681
        %v702 = vpack.c.b16 %v695, %v694
        %v703 = vpack.c.b16 %v697, %v696
        %v704 = vpack.c.b16 %v699, %v698
        %v705 = vpack.c.b16 %v701, %v700
        %vm706 = vcmask 261120
        %v708 = vsel %vm706, %v702, 0
        %v711 = vsel %vm706, %v703, 0
        %v714 = vsel %vm706, %v704, 0
        %v717 = vsel %vm706, %v705, 0
        %719 = vmatprep.subr.bf16.mxu0 %v683
        %720 = vmatpush1.bf16.msra.mxu0 %v682
        %721 = vmatprep.subr.bf16.mxu0 %v685
        %722 = vmatpush1.bf16.msra.mxu0 %v684
        %723 = vmatprep.subr.bf16.mxu0 0
        %724 = vmatpush1.bf16.msra.mxu0 0
        %725 = vmatprep.subr.bf16.mxu0 0
        %726 = vmatpush1.bf16.msra.mxu0 0
        %727 = vmatprep.subr.bf16.mxu0 0
        %728 = vmatpush1.bf16.msra.mxu0 0
        %729 = vmatprep.subr.bf16.mxu0 0
        %730 = vmatpush1.bf16.msra.mxu0 0
        %731 = vmatprep.subr.bf16.mxu0 0
        %732 = vmatpush1.bf16.msra.mxu0 0
        %733 = vmatprep.subr.bf16.mxu0 0
        %734 = vmatpush1.bf16.msra.mxu0 0
        %735 = vmatprep.subr.bf16.mxu0 0
        %736 = vmatpush1.bf16.msra.mxu0 0
        %737 = vmatprep.subr.bf16.mxu0 0
        %738 = vmatpush1.bf16.msra.mxu0 0
        %739 = vmatprep.subr.bf16.mxu0 0
        %740 = vmatpush1.bf16.msra.mxu0 0
        %741 = vmatprep.subr.bf16.mxu0 0
        %742 = vmatpush1.bf16.msra.mxu0 0
        %743 = vmatprep.subr.bf16.mxu0 0
        %744 = vmatpush1.bf16.msra.mxu0 0
        %745 = vmatprep.subr.bf16.mxu0 0
        %746 = vmatpush1.bf16.msra.mxu0 0
        %747 = vmatprep.subr.bf16.mxu0 0
        %748 = vmatpush1.bf16.msra.mxu0 0
        %749 = vmatprep.subr.bf16.mxu0 0
        %750 = vmatpush1.bf16.msra.mxu0 0
        %751 = vmatprep.mubr.bf16.mxu0 0
        %752 = vmatmul.mubr.bf16.gmra.mrb[0].mxu0 %v708
        %v753 = vpop.f32.mrb[0].mxu0
        %v754 = vadd.f32 0.0, %v753
        %v755 = vpop.f32.mrb[0].mxu0
        %v756 = vadd.f32 0.0, %v755
        %v757 = vpop.f32.mrb[0].mxu0
        %v758 = vadd.f32 0.0, %v757
        %v759 = vpop.f32.mrb[0].mxu0
        %v760 = vadd.f32 0.0, %v759
        %761 = vmatprep.mubr.bf16.mxu0 0
        %762 = vmatmul.mubr.bf16.gmra.mrb[0].mxu0 %v711
        %v763 = vpop.f32.mrb[0].mxu0
        %v764 = vadd.f32 0.0, %v763
        %v765 = vpop.f32.mrb[0].mxu0
        %v766 = vadd.f32 0.0, %v765
        %v767 = vpop.f32.mrb[0].mxu0
        %v768 = vadd.f32 0.0, %v767
        %v769 = vpop.f32.mrb[0].mxu0
        %v770 = vadd.f32 0.0, %v769
        %771 = vmatprep.mubr.bf16.mxu0 0
        %772 = vmatmul.mubr.bf16.gmra.mrb[0].mxu0 %v714
        %v773 = vpop.f32.mrb[0].mxu0
        %v774 = vadd.f32 0.0, %v773
        %v775 = vpop.f32.mrb[0].mxu0
        %v776 = vadd.f32 0.0, %v775
        %v777 = vpop.f32.mrb[0].mxu0
        %v778 = vadd.f32 0.0, %v777
        %v779 = vpop.f32.mrb[0].mxu0
        %v780 = vadd.f32 0.0, %v779
        %781 = vmatprep.mubr.bf16.mxu0 0
        %782 = vmatmul.mubr.bf16.gmra.mrb[0].mxu0 %v717
        %v783 = vpop.f32.mrb[0].mxu0
        %v784 = vadd.f32 0.0, %v783
        %v785 = vpop.f32.mrb[0].mxu0
        %v786 = vadd.f32 0.0, %v785
        %v787 = vpop.f32.mrb[0].mxu0
        %v788 = vadd.f32 0.0, %v787
        %v789 = vpop.f32.mrb[0].mxu0
        %v790 = vadd.f32 0.0, %v789
        %791 = vdwg.mxu0
        %v792 = vld [vmem:[%s3] sm:$0xff]
        %v793 = vld [vmem:[%s3 + $0x8] sm:$0xff]
        %v794 = vld [vmem:[%s3 + $0x10] sm:$0xff]
        %v795 = vld [vmem:[%s3 + $0x18] sm:$0xff]
        %v796 = vld [vmem:[%s3 + $0x20] sm:$0xff]
        %v797 = vld [vmem:[%s3 + $0x28] sm:$0xff]
        %v798 = vld [vmem:[%s3 + $0x30] sm:$0xff]
        %v799 = vld [vmem:[%s3 + $0x38] sm:$0xff]
        %801 = vset.pattern.permute.xlu0 0
        %802 = vperm.xlu0 %801, %v792
        %v803 = vpop.permute.xlu0 %802
        %806 = vset.pattern.permute.xlu0 0
        %807 = vperm.xlu0 %806, %v793
        %v808 = vpop.permute.xlu0 %807
        %811 = vset.pattern.permute.xlu0 0
        %812 = vperm.xlu0 %811, %v794
        %v813 = vpop.permute.xlu0 %812
        %816 = vset.pattern.permute.xlu0 0
        %817 = vperm.xlu0 %816, %v795
        %v818 = vpop.permute.xlu0 %817
        %821 = vset.pattern.permute.xlu0 0
        %822 = vperm.xlu0 %821, %v796
        %v823 = vpop.permute.xlu0 %822
        %826 = vset.pattern.permute.xlu0 0
        %827 = vperm.xlu0 %826, %v797
        %v828 = vpop.permute.xlu0 %827
        %831 = vset.pattern.permute.xlu0 0
        %832 = vperm.xlu0 %831, %v798
        %v833 = vpop.permute.xlu0 %832
        %836 = vset.pattern.permute.xlu0 0
        %837 = vperm.xlu0 %836, %v799
        %v838 = vpop.permute.xlu0 %837
        %v840 = vmul.f32 %v754, %v803
        %v841 = vmul.f32 %v756, %v803
        %v842 = vmul.f32 %v758, %v808
        %v843 = vmul.f32 %v760, %v808
        %v844 = vmul.f32 %v764, %v813
        %v845 = vmul.f32 %v766, %v813
        %v846 = vmul.f32 %v768, %v818
        %v847 = vmul.f32 %v770, %v818
        %v848 = vmul.f32 %v774, %v823
        %v849 = vmul.f32 %v776, %v823
        %v850 = vmul.f32 %v778, %v828
        %v851 = vmul.f32 %v780, %v828
        %v852 = vmul.f32 %v784, %v833
        %v853 = vmul.f32 %v786, %v833
        %v854 = vmul.f32 %v788, %v838
        %v855 = vmul.f32 %v790, %v838
        %v856 = vld [vmem:[%s4] sm:$0xff]
        %v857 = vld [vmem:[%s4 + $0x8] sm:$0xff]
        %v858 = vld [vmem:[%s4 + $0x10] sm:$0xff]
        %v859 = vld [vmem:[%s4 + $0x18] sm:$0xff]
        %v860 = vld [vmem:[%s4 + $0x20] sm:$0xff]
        %v861 = vld [vmem:[%s4 + $0x28] sm:$0xff]
        %v862 = vld [vmem:[%s4 + $0x30] sm:$0xff]
        %v863 = vld [vmem:[%s4 + $0x38] sm:$0xff]
        %865 = vset.pattern.permute.xlu0 0
        %866 = vperm.xlu0 %865, %v856
        %v867 = vpop.permute.xlu0 %866
        %870 = vset.pattern.permute.xlu0 0
        %871 = vperm.xlu0 %870, %v857
        %v872 = vpop.permute.xlu0 %871
        %875 = vset.pattern.permute.xlu0 0
        %876 = vperm.xlu0 %875, %v858
        %v877 = vpop.permute.xlu0 %876
        %880 = vset.pattern.permute.xlu0 0
        %881 = vperm.xlu0 %880, %v859
        %v882 = vpop.permute.xlu0 %881
        %885 = vset.pattern.permute.xlu0 0
        %886 = vperm.xlu0 %885, %v860
        %v887 = vpop.permute.xlu0 %886
        %890 = vset.pattern.permute.xlu0 0
        %891 = vperm.xlu0 %890, %v861
        %v892 = vpop.permute.xlu0 %891
        %895 = vset.pattern.permute.xlu0 0
        %896 = vperm.xlu0 %895, %v862
        %v897 = vpop.permute.xlu0 %896
        %900 = vset.pattern.permute.xlu0 0
        %901 = vperm.xlu0 %900, %v863
        %v902 = vpop.permute.xlu0 %901
        %v904 = vadd.f32 %v840, %v867
        %v905 = vadd.f32 %v841, %v867
        %v906 = vadd.f32 %v842, %v872
        %v907 = vadd.f32 %v843, %v872
        %v908 = vadd.f32 %v844, %v877
        %v909 = vadd.f32 %v845, %v877
        %v910 = vadd.f32 %v846, %v882
        %v911 = vadd.f32 %v847, %v882
        %v912 = vadd.f32 %v848, %v887
        %v913 = vadd.f32 %v849, %v887
        %v914 = vadd.f32 %v850, %v892
        %v915 = vadd.f32 %v851, %v892
        %v916 = vadd.f32 %v852, %v897
        %v917 = vadd.f32 %v853, %v897
        %v918 = vadd.f32 %v854, %v902
        %v919 = vadd.f32 %v855, %v902
        %920 = vst [vmem:[#allocation2] sm:$0xff] %v904
        %921 = vst [vmem:[#allocation2 + $0x8] sm:$0xff] %v905
        %922 = vst [vmem:[#allocation2 + $0x10] sm:$0xff] %v906
        %923 = vst [vmem:[#allocation2 + $0x18] sm:$0xff] %v907
        %924 = vst [vmem:[#allocation2 + $0x20] sm:$0xff] %v908
        %925 = vst [vmem:[#allocation2 + $0x28] sm:$0xff] %v909
        %926 = vst [vmem:[#allocation2 + $0x30] sm:$0xff] %v910
        %927 = vst [vmem:[#allocation2 + $0x38] sm:$0xff] %v911
        %s928 = scalar_lea.vmem [#allocation2], 64
        %929 = vst [vmem:[%s928] sm:$0xff] %v912
        %930 = vst [vmem:[%s928 + $0x8] sm:$0xff] %v913
        %931 = vst [vmem:[%s928 + $0x10] sm:$0xff] %v914
        %932 = vst [vmem:[%s928 + $0x18] sm:$0xff] %v915
        %933 = vst [vmem:[%s928 + $0x20] sm:$0xff] %v916
        %934 = vst [vmem:[%s928 + $0x28] sm:$0xff] %v917
        %935 = vst [vmem:[%s928 + $0x30] sm:$0xff] %v918
        %936 = vst [vmem:[%s928 + $0x38] sm:$0xff] %v919
        %v937 = vld [vmem:[#allocation2] sm:$0xff]
        %v938 = vld [vmem:[#allocation2 + $0x8] sm:$0xff]
        %v939 = vld [vmem:[#allocation2 + $0x10] sm:$0xff]
        %v940 = vld [vmem:[#allocation2 + $0x18] sm:$0xff]
        %v941 = vld [vmem:[#allocation2 + $0x20] sm:$0xff]
        %v942 = vld [vmem:[#allocation2 + $0x28] sm:$0xff]
        %v943 = vld [vmem:[#allocation2 + $0x30] sm:$0xff]
        %v944 = vld [vmem:[#allocation2 + $0x38] sm:$0xff]
        %v945 = vmax.f32 %v937, 0.0
        %v946 = vmax.f32 %v938, 0.0
        %v947 = vmax.f32 %v939, 0.0
        %v948 = vmax.f32 %v940, 0.0
        %v949 = vmax.f32 %v941, 0.0
        %v950 = vmax.f32 %v942, 0.0
        %v951 = vmax.f32 %v943, 0.0
        %v952 = vmax.f32 %v944, 0.0
        %953 = vrot.lane.b32.xlu0 %v945, 1
        %v954 = vpop.permute.xlu0 %953
        %955 = vrot.lane.b32.xlu0 %v947, 1
        %v956 = vpop.permute.xlu0 %955
        %957 = vrot.lane.b32.xlu0 %v949, 1
        %v958 = vpop.permute.xlu0 %957
        %959 = vrot.lane.b32.xlu0 %v951, 1
        %v960 = vpop.permute.xlu0 %959
        %961 = vrot.lane.b32.xlu0 %v946, 1
        %v962 = vpop.permute.xlu0 %961
        %963 = vrot.lane.b32.xlu0 %v948, 1
        %v964 = vpop.permute.xlu0 %963
        %965 = vrot.lane.b32.xlu0 %v950, 1
        %v966 = vpop.permute.xlu0 %965
        %967 = vrot.lane.b32.xlu0 %v952, 1
        %v968 = vpop.permute.xlu0 %967
        %v969 = vlaneseq
        %v970 = vand.u32 %v969, 127
        %vm971 = vcmp.lt.s32.totalorder %v970, 1
        %v972 = vsel %vm971, %v954, %v962
        %v973 = vsel %vm971, %v956, %v964
        %v974 = vsel %vm971, %v958, %v966
        %v975 = vsel %vm971, %v960, %v968
        %v976 = vsel %vm971, %v962, %v954
        %v977 = vsel %vm971, %v964, %v956
        %v978 = vsel %vm971, %v966, %v958
        %v979 = vsel %vm971, %v968, %v960
        %v980 = vlaneseq
        %v981 = vshrl.u32 %v980, 7
        %v982 = vsub.s32 0, %v981
        %v983 = vrot.slane %v656, %v982
        %v984 = vlaneseq
        %v985 = vshrl.u32 %v984, 7
        %v986 = vsub.s32 0, %v985
        %v987 = vrot.slane %v657, %v986
        %v988 = vmul.f32 %v976, %v983
        %v989 = vmul.f32 %v972, %v987
        %v990 = vmul.f32 %v977, %v983
        %v991 = vmul.f32 %v973, %v987
        %v992 = vmul.f32 %v978, %v983
        %v993 = vmul.f32 %v974, %v987
        %v994 = vmul.f32 %v979, %v983
        %v995 = vmul.f32 %v975, %v987
        %996 = vrot.lane.b32.xlu0 %v945, 127
        %v997 = vpop.permute.xlu0 %996
        %998 = vrot.lane.b32.xlu0 %v947, 127
        %v999 = vpop.permute.xlu0 %998
        %1000 = vrot.lane.b32.xlu0 %v949, 127
        %v1001 = vpop.permute.xlu0 %1000
        %1002 = vrot.lane.b32.xlu0 %v951, 127
        %v1003 = vpop.permute.xlu0 %1002
        %1004 = vrot.lane.b32.xlu0 %v946, 127
        %v1005 = vpop.permute.xlu0 %1004
        %1006 = vrot.lane.b32.xlu0 %v948, 127
        %v1007 = vpop.permute.xlu0 %1006
        %1008 = vrot.lane.b32.xlu0 %v950, 127
        %v1009 = vpop.permute.xlu0 %1008
        %1010 = vrot.lane.b32.xlu0 %v952, 127
        %v1011 = vpop.permute.xlu0 %1010
        %vm1012 = vcmp.lt.s32.totalorder %v970, 127
        %v1013 = vsel %vm1012, %v997, %v1005
        %v1014 = vsel %vm1012, %v999, %v1007
        %v1015 = vsel %vm1012, %v1001, %v1009
        %v1016 = vsel %vm1012, %v1003, %v1011
        %v1017 = vsel %vm1012, %v1005, %v997
        %v1018 = vsel %vm1012, %v1007, %v999
        %v1019 = vsel %vm1012, %v1009, %v1001
        %v1020 = vsel %vm1012, %v1011, %v1003
        %v1021 = vlaneseq
        %v1022 = vshrl.u32 %v1021, 7
        %v1023 = vsub.s32 1, %v1022
        %v1024 = vrot.slane %v656, %v1023
        %v1025 = vlaneseq
        %v1026 = vshrl.u32 %v1025, 7
        %v1027 = vsub.s32 1, %v1026
        %v1028 = vrot.slane %v657, %v1027
        %v1029 = vmul.f32 %v1013, %v1024
        %v1030 = vmul.f32 %v1017, %v1028
        %v1031 = vmul.f32 %v1014, %v1024
        %v1032 = vmul.f32 %v1018, %v1028
        %v1033 = vmul.f32 %v1015, %v1024
        %v1034 = vmul.f32 %v1019, %v1028
        %v1035 = vmul.f32 %v1016, %v1024
        %v1036 = vmul.f32 %v1020, %v1028
        %v1037 = vld [vmem:[%s5] sm:$0xff]
        %v1038 = vld [vmem:[%s5 + $0x8] sm:$0xff]
        %v1039 = vld [vmem:[%s5 + $0x10] sm:$0xff]
        %v1040 = vld [vmem:[%s5 + $0x18] sm:$0xff]
        %1042 = vset.pattern.permute.xlu0 0
        %1043 = vperm.xlu0 %1042, %v1037
        %v1044 = vpop.permute.xlu0 %1043
        %1047 = vset.pattern.permute.xlu0 0
        %1048 = vperm.xlu0 %1047, %v1038
        %v1049 = vpop.permute.xlu0 %1048
        %1052 = vset.pattern.permute.xlu0 0
        %1053 = vperm.xlu0 %1052, %v1039
        %v1054 = vpop.permute.xlu0 %1053
        %1057 = vset.pattern.permute.xlu0 0
        %1058 = vperm.xlu0 %1057, %v1040
        %v1059 = vpop.permute.xlu0 %1058
        %v1061 = vmul.f32 %v988, %v1044
        %v1062 = vmul.f32 %v989, %v1044
        %v1063 = vmul.f32 %v990, %v1049
        %v1064 = vmul.f32 %v991, %v1049
        %v1065 = vmul.f32 %v992, %v1054
        %v1066 = vmul.f32 %v993, %v1054
        %v1067 = vmul.f32 %v994, %v1059
        %v1068 = vmul.f32 %v995, %v1059
        %s1069 = scalar_lea.vmem %s5, 32
        %v1070 = vld [vmem:[%s1069] sm:$0xff]
        %v1071 = vld [vmem:[%s1069 + $0x8] sm:$0xff]
        %v1072 = vld [vmem:[%s1069 + $0x10] sm:$0xff]
        %v1073 = vld [vmem:[%s1069 + $0x18] sm:$0xff]
        %1075 = vset.pattern.permute.xlu0 0
        %1076 = vperm.xlu0 %1075, %v1070
        %v1077 = vpop.permute.xlu0 %1076
        %1080 = vset.pattern.permute.xlu0 0
        %1081 = vperm.xlu0 %1080, %v1071
        %v1082 = vpop.permute.xlu0 %1081
        %1085 = vset.pattern.permute.xlu0 0
        %1086 = vperm.xlu0 %1085, %v1072
        %v1087 = vpop.permute.xlu0 %1086
        %1090 = vset.pattern.permute.xlu0 0
        %1091 = vperm.xlu0 %1090, %v1073
        %v1092 = vpop.permute.xlu0 %1091
        %v1094 = vmul.f32 %v945, %v1077
        %v1095 = vmul.f32 %v946, %v1077
        %v1096 = vmul.f32 %v947, %v1082
        %v1097 = vmul.f32 %v948, %v1082
        %v1098 = vmul.f32 %v949, %v1087
        %v1099 = vmul.f32 %v950, %v1087
        %v1100 = vmul.f32 %v951, %v1092
        %v1101 = vmul.f32 %v952, %v1092
        %v1102 = vadd.f32 %v1061, %v1094
        %v1103 = vadd.f32 %v1062, %v1095
        %v1104 = vadd.f32 %v1063, %v1096
        %v1105 = vadd.f32 %v1064, %v1097
        %v1106 = vadd.f32 %v1065, %v1098
        %v1107 = vadd.f32 %v1066, %v1099
        %v1108 = vadd.f32 %v1067, %v1100
        %v1109 = vadd.f32 %v1068, %v1101
        %s1110 = scalar_lea.vmem %s5, 64
        %v1111 = vld [vmem:[%s1110] sm:$0xff]
        %v1112 = vld [vmem:[%s1110 + $0x8] sm:$0xff]
        %v1113 = vld [vmem:[%s1110 + $0x10] sm:$0xff]
        %v1114 = vld [vmem:[%s1110 + $0x18] sm:$0xff]
        %1116 = vset.pattern.permute.xlu0 0
        %1117 = vperm.xlu0 %1116, %v1111
        %v1118 = vpop.permute.xlu0 %1117
        %1121 = vset.pattern.permute.xlu0 0
        %1122 = vperm.xlu0 %1121, %v1112
        %v1123 = vpop.permute.xlu0 %1122
        %1126 = vset.pattern.permute.xlu0 0
        %1127 = vperm.xlu0 %1126, %v1113
        %v1128 = vpop.permute.xlu0 %1127
        %1131 = vset.pattern.permute.xlu0 0
        %1132 = vperm.xlu0 %1131, %v1114
        %v1133 = vpop.permute.xlu0 %1132
        %v1135 = vmul.f32 %v1029, %v1118
        %v1136 = vmul.f32 %v1030, %v1118
        %v1137 = vmul.f32 %v1031, %v1123
        %v1138 = vmul.f32 %v1032, %v1123
        %v1139 = vmul.f32 %v1033, %v1128
        %v1140 = vmul.f32 %v1034, %v1128
        %v1141 = vmul.f32 %v1035, %v1133
        %v1142 = vmul.f32 %v1036, %v1133
        %v1143 = vadd.f32 %v1102, %v1135
        %v1144 = vadd.f32 %v1103, %v1136
        %v1145 = vadd.f32 %v1104, %v1137
        %v1146 = vadd.f32 %v1105, %v1138
        %v1147 = vadd.f32 %v1106, %v1139
        %v1148 = vadd.f32 %v1107, %v1140
        %v1149 = vadd.f32 %v1108, %v1141
        %v1150 = vadd.f32 %v1109, %v1142
        %s1151 = scalar_lea.vmem %s5, 96
        %v1152 = vld [vmem:[%s1151] sm:$0xff]
        %v1153 = vld [vmem:[%s1151 + $0x8] sm:$0xff]
        %v1154 = vld [vmem:[%s1151 + $0x10] sm:$0xff]
        %v1155 = vld [vmem:[%s1151 + $0x18] sm:$0xff]
        %1157 = vset.pattern.permute.xlu0 0
        %1158 = vperm.xlu0 %1157, %v1152
        %v1159 = vpop.permute.xlu0 %1158
        %1162 = vset.pattern.permute.xlu0 0
        %1163 = vperm.xlu0 %1162, %v1153
        %v1164 = vpop.permute.xlu0 %1163
        %1167 = vset.pattern.permute.xlu0 0
        %1168 = vperm.xlu0 %1167, %v1154
        %v1169 = vpop.permute.xlu0 %1168
        %1172 = vset.pattern.permute.xlu0 0
        %1173 = vperm.xlu0 %1172, %v1155
        %v1174 = vpop.permute.xlu0 %1173
        %v1176 = vmul.f32 %v988, %v1159
        %v1177 = vmul.f32 %v989, %v1159
        %v1178 = vmul.f32 %v990, %v1164
        %v1179 = vmul.f32 %v991, %v1164
        %v1180 = vmul.f32 %v992, %v1169
        %v1181 = vmul.f32 %v993, %v1169
        %v1182 = vmul.f32 %v994, %v1174
        %v1183 = vmul.f32 %v995, %v1174
        %s1184 = scalar_lea.vmem %s5, 128
        %v1185 = vld [vmem:[%s1184] sm:$0xff]
        %v1186 = vld [vmem:[%s1184 + $0x8] sm:$0xff]
        %v1187 = vld [vmem:[%s1184 + $0x10] sm:$0xff]
        %v1188 = vld [vmem:[%s1184 + $0x18] sm:$0xff]
        %1190 = vset.pattern.permute.xlu0 0
        %1191 = vperm.xlu0 %1190, %v1185
        %v1192 = vpop.permute.xlu0 %1191
        %1195 = vset.pattern.permute.xlu0 0
        %1196 = vperm.xlu0 %1195, %v1186
        %v1197 = vpop.permute.xlu0 %1196
        %1200 = vset.pattern.permute.xlu0 0
        %1201 = vperm.xlu0 %1200, %v1187
        %v1202 = vpop.permute.xlu0 %1201
        %1205 = vset.pattern.permute.xlu0 0
        %1206 = vperm.xlu0 %1205, %v1188
        %v1207 = vpop.permute.xlu0 %1206
        %v1209 = vmul.f32 %v945, %v1192
        %v1210 = vmul.f32 %v946, %v1192
        %v1211 = vmul.f32 %v947, %v1197
        %v1212 = vmul.f32 %v948, %v1197
        %v1213 = vmul.f32 %v949, %v1202
        %v1214 = vmul.f32 %v950, %v1202
        %v1215 = vmul.f32 %v951, %v1207
        %v1216 = vmul.f32 %v952, %v1207
        %v1217 = vadd.f32 %v1176, %v1209
        %v1218 = vadd.f32 %v1177, %v1210
        %v1219 = vadd.f32 %v1178, %v1211
        %v1220 = vadd.f32 %v1179, %v1212
        %v1221 = vadd.f32 %v1180, %v1213
        %v1222 = vadd.f32 %v1181, %v1214
        %v1223 = vadd.f32 %v1182, %v1215
        %v1224 = vadd.f32 %v1183, %v1216
        %s1225 = scalar_lea.vmem %s5, 160
        %v1226 = vld [vmem:[%s1225] sm:$0xff]
        %v1227 = vld [vmem:[%s1225 + $0x8] sm:$0xff]
        %v1228 = vld [vmem:[%s1225 + $0x10] sm:$0xff]
        %v1229 = vld [vmem:[%s1225 + $0x18] sm:$0xff]
        %1231 = vset.pattern.permute.xlu0 0
        %1232 = vperm.xlu0 %1231, %v1226
        %v1233 = vpop.permute.xlu0 %1232
        %1236 = vset.pattern.permute.xlu0 0
        %1237 = vperm.xlu0 %1236, %v1227
        %v1238 = vpop.permute.xlu0 %1237
        %1241 = vset.pattern.permute.xlu0 0
        %1242 = vperm.xlu0 %1241, %v1228
        %v1243 = vpop.permute.xlu0 %1242
        %1246 = vset.pattern.permute.xlu0 0
        %1247 = vperm.xlu0 %1246, %v1229
        %v1248 = vpop.permute.xlu0 %1247
        %v1250 = vmul.f32 %v1029, %v1233
        %v1251 = vmul.f32 %v1030, %v1233
        %v1252 = vmul.f32 %v1031, %v1238
        %v1253 = vmul.f32 %v1032, %v1238
        %v1254 = vmul.f32 %v1033, %v1243
        %v1255 = vmul.f32 %v1034, %v1243
        %v1256 = vmul.f32 %v1035, %v1248
        %v1257 = vmul.f32 %v1036, %v1248
        %v1258 = vadd.f32 %v1217, %v1250
        %v1259 = vadd.f32 %v1218, %v1251
        %v1260 = vadd.f32 %v1219, %v1252
        %v1261 = vadd.f32 %v1220, %v1253
        %v1262 = vadd.f32 %v1221, %v1254
        %v1263 = vadd.f32 %v1222, %v1255
        %v1264 = vadd.f32 %v1223, %v1256
        %v1265 = vadd.f32 %v1224, %v1257
        %s1266 = scalar_lea.vmem %s5, 192
        %v1267 = vld [vmem:[%s1266] sm:$0xff]
        %v1268 = vld [vmem:[%s1266 + $0x8] sm:$0xff]
        %v1269 = vld [vmem:[%s1266 + $0x10] sm:$0xff]
        %v1270 = vld [vmem:[%s1266 + $0x18] sm:$0xff]
        %1272 = vset.pattern.permute.xlu0 0
        %1273 = vperm.xlu0 %1272, %v1267
        %v1274 = vpop.permute.xlu0 %1273
        %1277 = vset.pattern.permute.xlu0 0
        %1278 = vperm.xlu0 %1277, %v1268
        %v1279 = vpop.permute.xlu0 %1278
        %1282 = vset.pattern.permute.xlu0 0
        %1283 = vperm.xlu0 %1282, %v1269
        %v1284 = vpop.permute.xlu0 %1283
        %1287 = vset.pattern.permute.xlu0 0
        %1288 = vperm.xlu0 %1287, %v1270
        %v1289 = vpop.permute.xlu0 %1288
        %v1291 = vmul.f32 %v988, %v1274
        %v1292 = vmul.f32 %v989, %v1274
        %v1293 = vmul.f32 %v990, %v1279
        %v1294 = vmul.f32 %v991, %v1279
        %v1295 = vmul.f32 %v992, %v1284
        %v1296 = vmul.f32 %v993, %v1284
        %v1297 = vmul.f32 %v994, %v1289
        %v1298 = vmul.f32 %v995, %v1289
        %s1299 = scalar_lea.vmem %s5, 224
        %v1300 = vld [vmem:[%s1299] sm:$0xff]
        %v1301 = vld [vmem:[%s1299 + $0x8] sm:$0xff]
        %v1302 = vld [vmem:[%s1299 + $0x10] sm:$0xff]
        %v1303 = vld [vmem:[%s1299 + $0x18] sm:$0xff]
        %1305 = vset.pattern.permute.xlu0 0
        %1306 = vperm.xlu0 %1305, %v1300
        %v1307 = vpop.permute.xlu0 %1306
        %1310 = vset.pattern.permute.xlu0 0
        %1311 = vperm.xlu0 %1310, %v1301
        %v1312 = vpop.permute.xlu0 %1311
        %1315 = vset.pattern.permute.xlu0 0
        %1316 = vperm.xlu0 %1315, %v1302
        %v1317 = vpop.permute.xlu0 %1316
        %1320 = vset.pattern.permute.xlu0 0
        %1321 = vperm.xlu0 %1320, %v1303
        %v1322 = vpop.permute.xlu0 %1321
        %v1324 = vmul.f32 %v945, %v1307
        %v1325 = vmul.f32 %v946, %v1307
        %v1326 = vmul.f32 %v947, %v1312
        %v1327 = vmul.f32 %v948, %v1312
        %v1328 = vmul.f32 %v949, %v1317
        %v1329 = vmul.f32 %v950, %v1317
        %v1330 = vmul.f32 %v951, %v1322
        %v1331 = vmul.f32 %v952, %v1322
        %v1332 = vadd.f32 %v1291, %v1324
        %v1333 = vadd.f32 %v1292, %v1325
        %v1334 = vadd.f32 %v1293, %v1326
        %v1335 = vadd.f32 %v1294, %v1327
        %v1336 = vadd.f32 %v1295, %v1328
        %v1337 = vadd.f32 %v1296, %v1329
        %v1338 = vadd.f32 %v1297, %v1330
        %v1339 = vadd.f32 %v1298, %v1331
        %s1340 = scalar_lea.vmem %s5, 256
        %v1341 = vld [vmem:[%s1340] sm:$0xff]
        %v1342 = vld [vmem:[%s1340 + $0x8] sm:$0xff]
        %v1343 = vld [vmem:[%s1340 + $0x10] sm:$0xff]
        %v1344 = vld [vmem:[%s1340 + $0x18] sm:$0xff]
        %1346 = vset.pattern.permute.xlu0 0
        %1347 = vperm.xlu0 %1346, %v1341
        %v1348 = vpop.permute.xlu0 %1347
        %1351 = vset.pattern.permute.xlu0 0
        %1352 = vperm.xlu0 %1351, %v1342
        %v1353 = vpop.permute.xlu0 %1352
        %1356 = vset.pattern.permute.xlu0 0
        %1357 = vperm.xlu0 %1356, %v1343
        %v1358 = vpop.permute.xlu0 %1357
        %1361 = vset.pattern.permute.xlu0 0
        %1362 = vperm.xlu0 %1361, %v1344
        %v1363 = vpop.permute.xlu0 %1362
        %v1365 = vmul.f32 %v1029, %v1348
        %v1366 = vmul.f32 %v1030, %v1348
        %v1367 = vmul.f32 %v1031, %v1353
        %v1368 = vmul.f32 %v1032, %v1353
        %v1369 = vmul.f32 %v1033, %v1358
        %v1370 = vmul.f32 %v1034, %v1358
        %v1371 = vmul.f32 %v1035, %v1363
        %v1372 = vmul.f32 %v1036, %v1363
        %v1373 = vadd.f32 %v1332, %v1365
        %v1374 = vadd.f32 %v1333, %v1366
        %v1375 = vadd.f32 %v1334, %v1367
        %v1376 = vadd.f32 %v1335, %v1368
        %v1377 = vadd.f32 %v1336, %v1369
        %v1378 = vadd.f32 %v1337, %v1370
        %v1379 = vadd.f32 %v1338, %v1371
        %v1380 = vadd.f32 %v1339, %v1372
        %1381 = vrot.lane.b32.xlu0 %v1143, 16
        %v1382 = vpop.permute.xlu0 %1381
        %1383 = vrot.lane.b32.xlu0 %v1145, 16
        %v1384 = vpop.permute.xlu0 %1383
        %1385 = vrot.lane.b32.xlu0 %v1147, 16
        %v1386 = vpop.permute.xlu0 %1385
        %1387 = vrot.lane.b32.xlu0 %v1149, 16
        %v1388 = vpop.permute.xlu0 %1387
        %1389 = vrot.lane.b32.xlu0 %v1144, 16
        %v1390 = vpop.permute.xlu0 %1389
        %1391 = vrot.lane.b32.xlu0 %v1146, 16
        %v1392 = vpop.permute.xlu0 %1391
        %1393 = vrot.lane.b32.xlu0 %v1148, 16
        %v1394 = vpop.permute.xlu0 %1393
        %1395 = vrot.lane.b32.xlu0 %v1150, 16
        %v1396 = vpop.permute.xlu0 %1395
        %vm1397 = vcmp.lt.s32.totalorder %v970, 16
        %v1398 = vsel %vm1397, %v1382, %v1390
        %v1399 = vsel %vm1397, %v1384, %v1392
        %v1400 = vsel %vm1397, %v1386, %v1394
        %v1401 = vsel %vm1397, %v1388, %v1396
        %v1402 = vsel %vm1397, %v1390, %v1382
        %v1403 = vsel %vm1397, %v1392, %v1384
        %v1404 = vsel %vm1397, %v1394, %v1386
        %v1405 = vsel %vm1397, %v1396, %v1388
        %v1406 = vlaneseq
        %v1407 = vshrl.u32 %v1406, 7
        %v1408 = vsub.s32 2, %v1407
        %v1409 = vrot.slane %v656, %v1408
        %v1410 = vlaneseq
        %v1411 = vshrl.u32 %v1410, 7
        %v1412 = vsub.s32 2, %v1411
        %v1413 = vrot.slane %v657, %v1412
        %v1414 = vmul.f32 %v1402, %v1409
        %v1415 = vmul.f32 %v1398, %v1413
        %v1416 = vmul.f32 %v1403, %v1409
        %v1417 = vmul.f32 %v1399, %v1413
        %v1418 = vmul.f32 %v1404, %v1409
        %v1419 = vmul.f32 %v1400, %v1413
        %v1420 = vmul.f32 %v1405, %v1409
        %v1421 = vmul.f32 %v1401, %v1413
        %v1422 = vadd.f32 %v1414, %v1258
        %v1423 = vadd.f32 %v1415, %v1259
        %v1424 = vadd.f32 %v1416, %v1260
        %v1425 = vadd.f32 %v1417, %v1261
        %v1426 = vadd.f32 %v1418, %v1262
        %v1427 = vadd.f32 %v1419, %v1263
        %v1428 = vadd.f32 %v1420, %v1264
        %v1429 = vadd.f32 %v1421, %v1265
        %1430 = vrot.lane.b32.xlu0 %v1373, 112
        %v1431 = vpop.permute.xlu0 %1430
        %1432 = vrot.lane.b32.xlu0 %v1375, 112
        %v1433 = vpop.permute.xlu0 %1432
        %1434 = vrot.lane.b32.xlu0 %v1377, 112
        %v1435 = vpop.permute.xlu0 %1434
        %1436 = vrot.lane.b32.xlu0 %v1379, 112
        %v1437 = vpop.permute.xlu0 %1436
        %1438 = vrot.lane.b32.xlu0 %v1374, 112
        %v1439 = vpop.permute.xlu0 %1438
        %1440 = vrot.lane.b32.xlu0 %v1376, 112
        %v1441 = vpop.permute.xlu0 %1440
        %1442 = vrot.lane.b32.xlu0 %v1378, 112
        %v1443 = vpop.permute.xlu0 %1442
        %1444 = vrot.lane.b32.xlu0 %v1380, 112
        %v1445 = vpop.permute.xlu0 %1444
        %vm1446 = vcmp.lt.s32.totalorder %v970, 112
        %v1447 = vsel %vm1446, %v1431, %v1439
        %v1448 = vsel %vm1446, %v1433, %v1441
        %v1449 = vsel %vm1446, %v1435, %v1443
        %v1450 = vsel %vm1446, %v1437, %v1445
        %v1451 = vsel %vm1446, %v1439, %v1431
        %v1452 = vsel %vm1446, %v1441, %v1433
        %v1453 = vsel %vm1446, %v1443, %v1435
        %v1454 = vsel %vm1446, %v1445, %v1437
        %v1455 = vlaneseq
        %v1456 = vshrl.u32 %v1455, 7
        %v1457 = vsub.s32 3, %v1456
        %v1458 = vrot.slane %v656, %v1457
        %v1459 = vlaneseq
        %v1460 = vshrl.u32 %v1459, 7
        %v1461 = vsub.s32 3, %v1460
        %v1462 = vrot.slane %v657, %v1461
        %v1463 = vmul.f32 %v1447, %v1458
        %v1464 = vmul.f32 %v1451, %v1462
        %v1465 = vmul.f32 %v1448, %v1458
        %v1466 = vmul.f32 %v1452, %v1462
        %v1467 = vmul.f32 %v1449, %v1458
        %v1468 = vmul.f32 %v1453, %v1462
        %v1469 = vmul.f32 %v1450, %v1458
        %v1470 = vmul.f32 %v1454, %v1462
        %v1471 = vadd.f32 %v1422, %v1463
        %v1472 = vadd.f32 %v1423, %v1464
        %v1473 = vadd.f32 %v1424, %v1465
        %v1474 = vadd.f32 %v1425, %v1466
        %v1475 = vadd.f32 %v1426, %v1467
        %v1476 = vadd.f32 %v1427, %v1468
        %v1477 = vadd.f32 %v1428, %v1469
        %v1478 = vadd.f32 %v1429, %v1470
        %v1479 = vld [vmem:[%s6] sm:$0xf]
        %v1480 = vld [vmem:[%s6 + $0x4] sm:$0xf]
        %v1481 = vld [vmem:[%s6 + $0x8] sm:$0xf]
        %v1482 = vld [vmem:[%s6 + $0xc] sm:$0xf]
        %v1483 = vpack.c.bf16 %v1473, %v1471
        %v1484 = vpack.c.bf16 %v1474, %v1472
        %v1485 = vpack.c.bf16 %v1477, %v1475
        %v1486 = vpack.c.bf16 %v1478, %v1476
        %v1491 = vunpack.c.l.b16 %v1479
        %v1492 = vunpack.c.l.b16 %v1480
        %v1493 = vunpack.c.l.b16 %v1481
        %v1494 = vunpack.c.l.b16 %v1482
        %v1495 = vpack.c.b16 %v1492, %v1491
        %v1496 = vpack.c.b16 %v1494, %v1493
        %v1498 = vsel %vm706, %v1495, 0
        %v1501 = vsel %vm706, %v1496, 0
        %1503 = vmatprep.subr.bf16.mxu0 %v1484
        %1504 = vmatpush1.bf16.msra.mxu0 %v1483
        %1505 = vmatprep.subr.bf16.mxu0 %v1486
        %1506 = vmatpush1.bf16.msra.mxu0 %v1485
        %1507 = vmatprep.subr.bf16.mxu0 0
        %1508 = vmatpush1.bf16.msra.mxu0 0
        %1509 = vmatprep.subr.bf16.mxu0 0
        %1510 = vmatpush1.bf16.msra.mxu0 0
        %1511 = vmatprep.subr.bf16.mxu0 0
        %1512 = vmatpush1.bf16.msra.mxu0 0
        %1513 = vmatprep.subr.bf16.mxu0 0
        %1514 = vmatpush1.bf16.msra.mxu0 0
        %1515 = vmatprep.subr.bf16.mxu0 0
        %1516 = vmatpush1.bf16.msra.mxu0 0
        %1517 = vmatprep.subr.bf16.mxu0 0
        %1518 = vmatpush1.bf16.msra.mxu0 0
        %1519 = vmatprep.subr.bf16.mxu0 0
        %1520 = vmatpush1.bf16.msra.mxu0 0
        %1521 = vmatprep.subr.bf16.mxu0 0
        %1522 = vmatpush1.bf16.msra.mxu0 0
        %1523 = vmatprep.subr.bf16.mxu0 0
        %1524 = vmatpush1.bf16.msra.mxu0 0
        %1525 = vmatprep.subr.bf16.mxu0 0
        %1526 = vmatpush1.bf16.msra.mxu0 0
        %1527 = vmatprep.subr.bf16.mxu0 0
        %1528 = vmatpush1.bf16.msra.mxu0 0
        %1529 = vmatprep.subr.bf16.mxu0 0
        %1530 = vmatpush1.bf16.msra.mxu0 0
        %1531 = vmatprep.subr.bf16.mxu0 0
        %1532 = vmatpush1.bf16.msra.mxu0 0
        %1533 = vmatprep.subr.bf16.mxu0 0
        %1534 = vmatpush1.bf16.msra.mxu0 0
        %1535 = vmatprep.mubr.bf16.mxu0 0
        %1536 = vmatmul.mubr.bf16.gmra.mrb[0].mxu0 %v1498
        %v1537 = vpop.f32.mrb[0].mxu0
        %v1538 = vadd.f32 0.0, %v1537
        %v1539 = vpop.f32.mrb[0].mxu0
        %v1540 = vadd.f32 0.0, %v1539
        %v1541 = vpop.f32.mrb[0].mxu0
        %v1542 = vadd.f32 0.0, %v1541
        %v1543 = vpop.f32.mrb[0].mxu0
        %v1544 = vadd.f32 0.0, %v1543
        %1545 = vmatprep.mubr.bf16.mxu0 0
        %1546 = vmatmul.mubr.bf16.gmra.mrb[0].mxu0 %v1501
        %v1547 = vpop.f32.mrb[0].mxu0
        %v1548 = vadd.f32 0.0, %v1547
        %v1549 = vpop.f32.mrb[0].mxu0
        %v1550 = vadd.f32 0.0, %v1549
        %v1551 = vpop.f32.mrb[0].mxu0
        %v1552 = vadd.f32 0.0, %v1551
        %v1553 = vpop.f32.mrb[0].mxu0
        %v1554 = vadd.f32 0.0, %v1553
        %1555 = vdwg.mxu0
        %v1556 = vld [vmem:[%s7] sm:$0xff]
        %v1557 = vld [vmem:[%s7 + $0x8] sm:$0xff]
        %v1558 = vld [vmem:[%s7 + $0x10] sm:$0xff]
        %v1559 = vld [vmem:[%s7 + $0x18] sm:$0xff]
        %1561 = vset.pattern.permute.xlu0 0
        %1562 = vperm.xlu0 %1561, %v1556
        %v1563 = vpop.permute.xlu0 %1562
        %1566 = vset.pattern.permute.xlu0 0
        %1567 = vperm.xlu0 %1566, %v1557
        %v1568 = vpop.permute.xlu0 %1567
        %1571 = vset.pattern.permute.xlu0 0
        %1572 = vperm.xlu0 %1571, %v1558
        %v1573 = vpop.permute.xlu0 %1572
        %1576 = vset.pattern.permute.xlu0 0
        %1577 = vperm.xlu0 %1576, %v1559
        %v1578 = vpop.permute.xlu0 %1577
        %v1580 = vmul.f32 %v1538, %v1563
        %v1581 = vmul.f32 %v1540, %v1563
        %v1582 = vmul.f32 %v1542, %v1568
        %v1583 = vmul.f32 %v1544, %v1568
        %v1584 = vmul.f32 %v1548, %v1573
        %v1585 = vmul.f32 %v1550, %v1573
        %v1586 = vmul.f32 %v1552, %v1578
        %v1587 = vmul.f32 %v1554, %v1578
        %v1588 = vld [vmem:[%s8] sm:$0xff]
        %v1589 = vld [vmem:[%s8 + $0x8] sm:$0xff]
        %v1590 = vld [vmem:[%s8 + $0x10] sm:$0xff]
        %v1591 = vld [vmem:[%s8 + $0x18] sm:$0xff]
        %1593 = vset.pattern.permute.xlu0 0
        %1594 = vperm.xlu0 %1593, %v1588
        %v1595 = vpop.permute.xlu0 %1594
        %1598 = vset.pattern.permute.xlu0 0
        %1599 = vperm.xlu0 %1598, %v1589
        %v1600 = vpop.permute.xlu0 %1599
        %1603 = vset.pattern.permute.xlu0 0
        %1604 = vperm.xlu0 %1603, %v1590
        %v1605 = vpop.permute.xlu0 %1604
        %1608 = vset.pattern.permute.xlu0 0
        %1609 = vperm.xlu0 %1608, %v1591
        %v1610 = vpop.permute.xlu0 %1609
        %v1612 = vadd.f32 %v1580, %v1595
        %v1613 = vadd.f32 %v1581, %v1595
        %v1614 = vadd.f32 %v1582, %v1600
        %v1615 = vadd.f32 %v1583, %v1600
        %v1616 = vadd.f32 %v1584, %v1605
        %v1617 = vadd.f32 %v1585, %v1605
        %v1618 = vadd.f32 %v1586, %v1610
        %v1619 = vadd.f32 %v1587, %v1610
        %v1620 = vmax.f32 %v1612, 0.0
        %v1621 = vmax.f32 %v1613, 0.0
        %v1622 = vmax.f32 %v1614, 0.0
        %v1623 = vmax.f32 %v1615, 0.0
        %v1624 = vmax.f32 %v1616, 0.0
        %v1625 = vmax.f32 %v1617, 0.0
        %v1626 = vmax.f32 %v1618, 0.0
        %v1627 = vmax.f32 %v1619, 0.0
        %1628 = vrot.lane.b32.xlu0 %v1620, 1
        %v1629 = vpop.permute.xlu0 %1628
        %1630 = vrot.lane.b32.xlu0 %v1622, 1
        %v1631 = vpop.permute.xlu0 %1630
        %1632 = vrot.lane.b32.xlu0 %v1624, 1
        %v1633 = vpop.permute.xlu0 %1632
        %1634 = vrot.lane.b32.xlu0 %v1626, 1
        %v1635 = vpop.permute.xlu0 %1634
        %1636 = vrot.lane.b32.xlu0 %v1621, 1
        %v1637 = vpop.permute.xlu0 %1636
        %1638 = vrot.lane.b32.xlu0 %v1623, 1
        %v1639 = vpop.permute.xlu0 %1638
        %1640 = vrot.lane.b32.xlu0 %v1625, 1
        %v1641 = vpop.permute.xlu0 %1640
        %1642 = vrot.lane.b32.xlu0 %v1627, 1
        %v1643 = vpop.permute.xlu0 %1642
        %v1644 = vsel %vm971, %v1629, %v1637
        %v1645 = vsel %vm971, %v1631, %v1639
        %v1646 = vsel %vm971, %v1633, %v1641
        %v1647 = vsel %vm971, %v1635, %v1643
        %v1648 = vsel %vm971, %v1637, %v1629
        %v1649 = vsel %vm971, %v1639, %v1631
        %v1650 = vsel %vm971, %v1641, %v1633
        %v1651 = vsel %vm971, %v1643, %v1635
        %v1652 = vmul.f32 %v1648, %v983
        %v1653 = vmul.f32 %v1644, %v987
        %v1654 = vmul.f32 %v1649, %v983
        %v1655 = vmul.f32 %v1645, %v987
        %v1656 = vmul.f32 %v1650, %v983
        %v1657 = vmul.f32 %v1646, %v987
        %v1658 = vmul.f32 %v1651, %v983
        %v1659 = vmul.f32 %v1647, %v987
        %1660 = vrot.lane.b32.xlu0 %v1620, 127
        %v1661 = vpop.permute.xlu0 %1660
        %1662 = vrot.lane.b32.xlu0 %v1622, 127
        %v1663 = vpop.permute.xlu0 %1662
        %1664 = vrot.lane.b32.xlu0 %v1624, 127
        %v1665 = vpop.permute.xlu0 %1664
        %1666 = vrot.lane.b32.xlu0 %v1626, 127
        %v1667 = vpop.permute.xlu0 %1666
        %1668 = vrot.lane.b32.xlu0 %v1621, 127
        %v1669 = vpop.permute.xlu0 %1668
        %1670 = vrot.lane.b32.xlu0 %v1623, 127
        %v1671 = vpop.permute.xlu0 %1670
        %1672 = vrot.lane.b32.xlu0 %v1625, 127
        %v1673 = vpop.permute.xlu0 %1672
        %1674 = vrot.lane.b32.xlu0 %v1627, 127
        %v1675 = vpop.permute.xlu0 %1674
        %v1676 = vsel %vm1012, %v1661, %v1669
        %v1677 = vsel %vm1012, %v1663, %v1671
        %v1678 = vsel %vm1012, %v1665, %v1673
        %v1679 = vsel %vm1012, %v1667, %v1675
        %v1680 = vsel %vm1012, %v1669, %v1661
        %v1681 = vsel %vm1012, %v1671, %v1663
        %v1682 = vsel %vm1012, %v1673, %v1665
        %v1683 = vsel %vm1012, %v1675, %v1667
        %v1684 = vmul.f32 %v1676, %v1024
        %v1685 = vmul.f32 %v1680, %v1028
        %v1686 = vmul.f32 %v1677, %v1024
        %v1687 = vmul.f32 %v1681, %v1028
        %v1688 = vmul.f32 %v1678, %v1024
        %v1689 = vmul.f32 %v1682, %v1028
        %v1690 = vmul.f32 %v1679, %v1024
        %v1691 = vmul.f32 %v1683, %v1028
        %v1692 = vld [vmem:[%s9] sm:$0xff]
        %v1693 = vld [vmem:[%s9 + $0x8] sm:$0xff]
        %v1694 = vld [vmem:[%s9 + $0x10] sm:$0xff]
        %v1695 = vld [vmem:[%s9 + $0x18] sm:$0xff]
        %1697 = vset.pattern.permute.xlu0 0
        %1698 = vperm.xlu0 %1697, %v1692
        %v1699 = vpop.permute.xlu0 %1698
        %1702 = vset.pattern.permute.xlu0 0
        %1703 = vperm.xlu0 %1702, %v1693
        %v1704 = vpop.permute.xlu0 %1703
        %1707 = vset.pattern.permute.xlu0 0
        %1708 = vperm.xlu0 %1707, %v1694
        %v1709 = vpop.permute.xlu0 %1708
        %1712 = vset.pattern.permute.xlu0 0
        %1713 = vperm.xlu0 %1712, %v1695
        %v1714 = vpop.permute.xlu0 %1713
        %v1716 = vmul.f32 %v1652, %v1699
        %v1717 = vmul.f32 %v1653, %v1699
        %v1718 = vmul.f32 %v1654, %v1704
        %v1719 = vmul.f32 %v1655, %v1704
        %v1720 = vmul.f32 %v1656, %v1709
        %v1721 = vmul.f32 %v1657, %v1709
        %v1722 = vmul.f32 %v1658, %v1714
        %v1723 = vmul.f32 %v1659, %v1714
        %s1724 = scalar_lea.vmem %s9, 32
        %v1725 = vld [vmem:[%s1724] sm:$0xff]
        %v1726 = vld [vmem:[%s1724 + $0x8] sm:$0xff]
        %v1727 = vld [vmem:[%s1724 + $0x10] sm:$0xff]
        %v1728 = vld [vmem:[%s1724 + $0x18] sm:$0xff]
        %1730 = vset.pattern.permute.xlu0 0
        %1731 = vperm.xlu0 %1730, %v1725
        %v1732 = vpop.permute.xlu0 %1731
        %1735 = vset.pattern.permute.xlu0 0
        %1736 = vperm.xlu0 %1735, %v1726
        %v1737 = vpop.permute.xlu0 %1736
        %1740 = vset.pattern.permute.xlu0 0
        %1741 = vperm.xlu0 %1740, %v1727
        %v1742 = vpop.permute.xlu0 %1741
        %1745 = vset.pattern.permute.xlu0 0
        %1746 = vperm.xlu0 %1745, %v1728
        %v1747 = vpop.permute.xlu0 %1746
        %v1749 = vmul.f32 %v1620, %v1732
        %v1750 = vmul.f32 %v1621, %v1732
        %v1751 = vmul.f32 %v1622, %v1737
        %v1752 = vmul.f32 %v1623, %v1737
        %v1753 = vmul.f32 %v1624, %v1742
        %v1754 = vmul.f32 %v1625, %v1742
        %v1755 = vmul.f32 %v1626, %v1747
        %v1756 = vmul.f32 %v1627, %v1747
        %v1757 = vadd.f32 %v1716, %v1749
        %v1758 = vadd.f32 %v1717, %v1750
        %v1759 = vadd.f32 %v1718, %v1751
        %v1760 = vadd.f32 %v1719, %v1752
        %v1761 = vadd.f32 %v1720, %v1753
        %v1762 = vadd.f32 %v1721, %v1754
        %v1763 = vadd.f32 %v1722, %v1755
        %v1764 = vadd.f32 %v1723, %v1756
        %s1765 = scalar_lea.vmem %s9, 64
        %v1766 = vld [vmem:[%s1765] sm:$0xff]
        %v1767 = vld [vmem:[%s1765 + $0x8] sm:$0xff]
        %v1768 = vld [vmem:[%s1765 + $0x10] sm:$0xff]
        %v1769 = vld [vmem:[%s1765 + $0x18] sm:$0xff]
        %1771 = vset.pattern.permute.xlu0 0
        %1772 = vperm.xlu0 %1771, %v1766
        %v1773 = vpop.permute.xlu0 %1772
        %1776 = vset.pattern.permute.xlu0 0
        %1777 = vperm.xlu0 %1776, %v1767
        %v1778 = vpop.permute.xlu0 %1777
        %1781 = vset.pattern.permute.xlu0 0
        %1782 = vperm.xlu0 %1781, %v1768
        %v1783 = vpop.permute.xlu0 %1782
        %1786 = vset.pattern.permute.xlu0 0
        %1787 = vperm.xlu0 %1786, %v1769
        %v1788 = vpop.permute.xlu0 %1787
        %v1790 = vmul.f32 %v1684, %v1773
        %v1791 = vmul.f32 %v1685, %v1773
        %v1792 = vmul.f32 %v1686, %v1778
        %v1793 = vmul.f32 %v1687, %v1778
        %v1794 = vmul.f32 %v1688, %v1783
        %v1795 = vmul.f32 %v1689, %v1783
        %v1796 = vmul.f32 %v1690, %v1788
        %v1797 = vmul.f32 %v1691, %v1788
        %v1798 = vadd.f32 %v1757, %v1790
        %v1799 = vadd.f32 %v1758, %v1791
        %v1800 = vadd.f32 %v1759, %v1792
        %v1801 = vadd.f32 %v1760, %v1793
        %v1802 = vadd.f32 %v1761, %v1794
        %v1803 = vadd.f32 %v1762, %v1795
        %v1804 = vadd.f32 %v1763, %v1796
        %v1805 = vadd.f32 %v1764, %v1797
        %s1806 = scalar_lea.vmem %s9, 96
        %v1807 = vld [vmem:[%s1806] sm:$0xff]
        %v1808 = vld [vmem:[%s1806 + $0x8] sm:$0xff]
        %v1809 = vld [vmem:[%s1806 + $0x10] sm:$0xff]
        %v1810 = vld [vmem:[%s1806 + $0x18] sm:$0xff]
        %1812 = vset.pattern.permute.xlu0 0
        %1813 = vperm.xlu0 %1812, %v1807
        %v1814 = vpop.permute.xlu0 %1813
        %1817 = vset.pattern.permute.xlu0 0
        %1818 = vperm.xlu0 %1817, %v1808
        %v1819 = vpop.permute.xlu0 %1818
        %1822 = vset.pattern.permute.xlu0 0
        %1823 = vperm.xlu0 %1822, %v1809
        %v1824 = vpop.permute.xlu0 %1823
        %1827 = vset.pattern.permute.xlu0 0
        %1828 = vperm.xlu0 %1827, %v1810
        %v1829 = vpop.permute.xlu0 %1828
        %v1831 = vmul.f32 %v1652, %v1814
        %v1832 = vmul.f32 %v1653, %v1814
        %v1833 = vmul.f32 %v1654, %v1819
        %v1834 = vmul.f32 %v1655, %v1819
        %v1835 = vmul.f32 %v1656, %v1824
        %v1836 = vmul.f32 %v1657, %v1824
        %v1837 = vmul.f32 %v1658, %v1829
        %v1838 = vmul.f32 %v1659, %v1829
        %s1839 = scalar_lea.vmem %s9, 128
        %v1840 = vld [vmem:[%s1839] sm:$0xff]
        %v1841 = vld [vmem:[%s1839 + $0x8] sm:$0xff]
        %v1842 = vld [vmem:[%s1839 + $0x10] sm:$0xff]
        %v1843 = vld [vmem:[%s1839 + $0x18] sm:$0xff]
        %1845 = vset.pattern.permute.xlu0 0
        %1846 = vperm.xlu0 %1845, %v1840
        %v1847 = vpop.permute.xlu0 %1846
        %1850 = vset.pattern.permute.xlu0 0
        %1851 = vperm.xlu0 %1850, %v1841
        %v1852 = vpop.permute.xlu0 %1851
        %1855 = vset.pattern.permute.xlu0 0
        %1856 = vperm.xlu0 %1855, %v1842
        %v1857 = vpop.permute.xlu0 %1856
        %1860 = vset.pattern.permute.xlu0 0
        %1861 = vperm.xlu0 %1860, %v1843
        %v1862 = vpop.permute.xlu0 %1861
        %v1864 = vmul.f32 %v1620, %v1847
        %v1865 = vmul.f32 %v1621, %v1847
        %v1866 = vmul.f32 %v1622, %v1852
        %v1867 = vmul.f32 %v1623, %v1852
        %v1868 = vmul.f32 %v1624, %v1857
        %v1869 = vmul.f32 %v1625, %v1857
        %v1870 = vmul.f32 %v1626, %v1862
        %v1871 = vmul.f32 %v1627, %v1862
        %v1872 = vadd.f32 %v1831, %v1864
        %v1873 = vadd.f32 %v1832, %v1865
        %v1874 = vadd.f32 %v1833, %v1866
        %v1875 = vadd.f32 %v1834, %v1867
        %v1876 = vadd.f32 %v1835, %v1868
        %v1877 = vadd.f32 %v1836, %v1869
        %v1878 = vadd.f32 %v1837, %v1870
        %v1879 = vadd.f32 %v1838, %v1871
        %s1880 = scalar_lea.vmem %s9, 160
        %v1881 = vld [vmem:[%s1880] sm:$0xff]
        %v1882 = vld [vmem:[%s1880 + $0x8] sm:$0xff]
        %v1883 = vld [vmem:[%s1880 + $0x10] sm:$0xff]
        %v1884 = vld [vmem:[%s1880 + $0x18] sm:$0xff]
        %1886 = vset.pattern.permute.xlu0 0
        %1887 = vperm.xlu0 %1886, %v1881
        %v1888 = vpop.permute.xlu0 %1887
        %1891 = vset.pattern.permute.xlu0 0
        %1892 = vperm.xlu0 %1891, %v1882
        %v1893 = vpop.permute.xlu0 %1892
        %1896 = vset.pattern.permute.xlu0 0
        %1897 = vperm.xlu0 %1896, %v1883
        %v1898 = vpop.permute.xlu0 %1897
        %1901 = vset.pattern.permute.xlu0 0
        %1902 = vperm.xlu0 %1901, %v1884
        %v1903 = vpop.permute.xlu0 %1902
        %v1905 = vmul.f32 %v1684, %v1888
        %v1906 = vmul.f32 %v1685, %v1888
        %v1907 = vmul.f32 %v1686, %v1893
        %v1908 = vmul.f32 %v1687, %v1893
        %v1909 = vmul.f32 %v1688, %v1898
        %v1910 = vmul.f32 %v1689, %v1898
        %v1911 = vmul.f32 %v1690, %v1903
        %v1912 = vmul.f32 %v1691, %v1903
        %v1913 = vadd.f32 %v1872, %v1905
        %v1914 = vadd.f32 %v1873, %v1906
        %v1915 = vadd.f32 %v1874, %v1907
        %v1916 = vadd.f32 %v1875, %v1908
        %v1917 = vadd.f32 %v1876, %v1909
        %v1918 = vadd.f32 %v1877, %v1910
        %v1919 = vadd.f32 %v1878, %v1911
        %v1920 = vadd.f32 %v1879, %v1912
        %s1921 = scalar_lea.vmem %s9, 192
        %v1922 = vld [vmem:[%s1921] sm:$0xff]
        %v1923 = vld [vmem:[%s1921 + $0x8] sm:$0xff]
        %v1924 = vld [vmem:[%s1921 + $0x10] sm:$0xff]
        %v1925 = vld [vmem:[%s1921 + $0x18] sm:$0xff]
        %1927 = vset.pattern.permute.xlu0 0
        %1928 = vperm.xlu0 %1927, %v1922
        %v1929 = vpop.permute.xlu0 %1928
        %1932 = vset.pattern.permute.xlu0 0
        %1933 = vperm.xlu0 %1932, %v1923
        %v1934 = vpop.permute.xlu0 %1933
        %1937 = vset.pattern.permute.xlu0 0
        %1938 = vperm.xlu0 %1937, %v1924
        %v1939 = vpop.permute.xlu0 %1938
        %1942 = vset.pattern.permute.xlu0 0
        %1943 = vperm.xlu0 %1942, %v1925
        %v1944 = vpop.permute.xlu0 %1943
        %v1946 = vmul.f32 %v1652, %v1929
        %v1947 = vmul.f32 %v1653, %v1929
        %v1948 = vmul.f32 %v1654, %v1934
        %v1949 = vmul.f32 %v1655, %v1934
        %v1950 = vmul.f32 %v1656, %v1939
        %v1951 = vmul.f32 %v1657, %v1939
        %v1952 = vmul.f32 %v1658, %v1944
        %v1953 = vmul.f32 %v1659, %v1944
        %s1954 = scalar_lea.vmem %s9, 224
        %v1955 = vld [vmem:[%s1954] sm:$0xff]
        %v1956 = vld [vmem:[%s1954 + $0x8] sm:$0xff]
        %v1957 = vld [vmem:[%s1954 + $0x10] sm:$0xff]
        %v1958 = vld [vmem:[%s1954 + $0x18] sm:$0xff]
        %1960 = vset.pattern.permute.xlu0 0
        %1961 = vperm.xlu0 %1960, %v1955
        %v1962 = vpop.permute.xlu0 %1961
        %1965 = vset.pattern.permute.xlu0 0
        %1966 = vperm.xlu0 %1965, %v1956
        %v1967 = vpop.permute.xlu0 %1966
        %1970 = vset.pattern.permute.xlu0 0
        %1971 = vperm.xlu0 %1970, %v1957
        %v1972 = vpop.permute.xlu0 %1971
        %1975 = vset.pattern.permute.xlu0 0
        %1976 = vperm.xlu0 %1975, %v1958
        %v1977 = vpop.permute.xlu0 %1976
        %v1979 = vmul.f32 %v1620, %v1962
        %v1980 = vmul.f32 %v1621, %v1962
        %v1981 = vmul.f32 %v1622, %v1967
        %v1982 = vmul.f32 %v1623, %v1967
        %v1983 = vmul.f32 %v1624, %v1972
        %v1984 = vmul.f32 %v1625, %v1972
        %v1985 = vmul.f32 %v1626, %v1977
        %v1986 = vmul.f32 %v1627, %v1977
        %v1987 = vadd.f32 %v1946, %v1979
        %v1988 = vadd.f32 %v1947, %v1980
        %v1989 = vadd.f32 %v1948, %v1981
        %v1990 = vadd.f32 %v1949, %v1982
        %v1991 = vadd.f32 %v1950, %v1983
        %v1992 = vadd.f32 %v1951, %v1984
        %v1993 = vadd.f32 %v1952, %v1985
        %v1994 = vadd.f32 %v1953, %v1986
        %s1995 = scalar_lea.vmem %s9, 256
        %v1996 = vld [vmem:[%s1995] sm:$0xff]
        %v1997 = vld [vmem:[%s1995 + $0x8] sm:$0xff]
        %v1998 = vld [vmem:[%s1995 + $0x10] sm:$0xff]
        %v1999 = vld [vmem:[%s1995 + $0x18] sm:$0xff]
        %2001 = vset.pattern.permute.xlu0 0
        %2002 = vperm.xlu0 %2001, %v1996
        %v2003 = vpop.permute.xlu0 %2002
        %2006 = vset.pattern.permute.xlu0 0
        %2007 = vperm.xlu0 %2006, %v1997
        %v2008 = vpop.permute.xlu0 %2007
        %2011 = vset.pattern.permute.xlu0 0
        %2012 = vperm.xlu0 %2011, %v1998
        %v2013 = vpop.permute.xlu0 %2012
        %2016 = vset.pattern.permute.xlu0 0
        %2017 = vperm.xlu0 %2016, %v1999
        %v2018 = vpop.permute.xlu0 %2017
        %v2020 = vmul.f32 %v1684, %v2003
        %v2021 = vmul.f32 %v1685, %v2003
        %v2022 = vmul.f32 %v1686, %v2008
        %v2023 = vmul.f32 %v1687, %v2008
        %v2024 = vmul.f32 %v1688, %v2013
        %v2025 = vmul.f32 %v1689, %v2013
        %v2026 = vmul.f32 %v1690, %v2018
        %v2027 = vmul.f32 %v1691, %v2018
        %v2028 = vadd.f32 %v1987, %v2020
        %v2029 = vadd.f32 %v1988, %v2021
        %v2030 = vadd.f32 %v1989, %v2022
        %v2031 = vadd.f32 %v1990, %v2023
        %v2032 = vadd.f32 %v1991, %v2024
        %v2033 = vadd.f32 %v1992, %v2025
        %v2034 = vadd.f32 %v1993, %v2026
        %v2035 = vadd.f32 %v1994, %v2027
        %2036 = vrot.lane.b32.xlu0 %v1798, 16
        %v2037 = vpop.permute.xlu0 %2036
        %2038 = vrot.lane.b32.xlu0 %v1800, 16
        %v2039 = vpop.permute.xlu0 %2038
        %2040 = vrot.lane.b32.xlu0 %v1802, 16
        %v2041 = vpop.permute.xlu0 %2040
        %2042 = vrot.lane.b32.xlu0 %v1804, 16
        %v2043 = vpop.permute.xlu0 %2042
        %2044 = vrot.lane.b32.xlu0 %v1799, 16
        %v2045 = vpop.permute.xlu0 %2044
        %2046 = vrot.lane.b32.xlu0 %v1801, 16
        %v2047 = vpop.permute.xlu0 %2046
        %2048 = vrot.lane.b32.xlu0 %v1803, 16
        %v2049 = vpop.permute.xlu0 %2048
        %2050 = vrot.lane.b32.xlu0 %v1805, 16
        %v2051 = vpop.permute.xlu0 %2050
        %v2052 = vsel %vm1397, %v2037, %v2045
        %v2053 = vsel %vm1397, %v2039, %v2047
        %v2054 = vsel %vm1397, %v2041, %v2049
        %v2055 = vsel %vm1397, %v2043, %v2051
        %v2056 = vsel %vm1397, %v2045, %v2037
        %v2057 = vsel %vm1397, %v2047, %v2039
        %v2058 = vsel %vm1397, %v2049, %v2041
        %v2059 = vsel %vm1397, %v2051, %v2043
        %v2060 = vmul.f32 %v2056, %v1409
        %v2061 = vmul.f32 %v2052, %v1413
        %v2062 = vmul.f32 %v2057, %v1409
        %v2063 = vmul.f32 %v2053, %v1413
        %v2064 = vmul.f32 %v2058, %v1409
        %v2065 = vmul.f32 %v2054, %v1413
        %v2066 = vmul.f32 %v2059, %v1409
        %v2067 = vmul.f32 %v2055, %v1413
        %v2068 = vadd.f32 %v2060, %v1913
        %v2069 = vadd.f32 %v2061, %v1914
        %v2070 = vadd.f32 %v2062, %v1915
        %v2071 = vadd.f32 %v2063, %v1916
        %v2072 = vadd.f32 %v2064, %v1917
        %v2073 = vadd.f32 %v2065, %v1918
        %v2074 = vadd.f32 %v2066, %v1919
        %v2075 = vadd.f32 %v2067, %v1920
        %2076 = vrot.lane.b32.xlu0 %v2028, 112
        %v2077 = vpop.permute.xlu0 %2076
        %2078 = vrot.lane.b32.xlu0 %v2030, 112
        %v2079 = vpop.permute.xlu0 %2078
        %2080 = vrot.lane.b32.xlu0 %v2032, 112
        %v2081 = vpop.permute.xlu0 %2080
        %2082 = vrot.lane.b32.xlu0 %v2034, 112
        %v2083 = vpop.permute.xlu0 %2082
        %2084 = vrot.lane.b32.xlu0 %v2029, 112
        %v2085 = vpop.permute.xlu0 %2084
        %2086 = vrot.lane.b32.xlu0 %v2031, 112
        %v2087 = vpop.permute.xlu0 %2086
        %2088 = vrot.lane.b32.xlu0 %v2033, 112
        %v2089 = vpop.permute.xlu0 %2088
        %2090 = vrot.lane.b32.xlu0 %v2035, 112
        %v2091 = vpop.permute.xlu0 %2090
        %v2092 = vsel %vm1446, %v2077, %v2085
        %v2093 = vsel %vm1446, %v2079, %v2087
        %v2094 = vsel %vm1446, %v2081, %v2089
        %v2095 = vsel %vm1446, %v2083, %v2091
        %v2096 = vsel %vm1446, %v2085, %v2077
        %v2097 = vsel %vm1446, %v2087, %v2079
        %v2098 = vsel %vm1446, %v2089, %v2081
        %v2099 = vsel %vm1446, %v2091, %v2083
        %v2100 = vmul.f32 %v2092, %v1458
        %v2101 = vmul.f32 %v2096, %v1462
        %v2102 = vmul.f32 %v2093, %v1458
        %v2103 = vmul.f32 %v2097, %v1462
        %v2104 = vmul.f32 %v2094, %v1458
        %v2105 = vmul.f32 %v2098, %v1462
        %v2106 = vmul.f32 %v2095, %v1458
        %v2107 = vmul.f32 %v2099, %v1462
        %v2108 = vadd.f32 %v2068, %v2100
        %v2109 = vadd.f32 %v2069, %v2101
        %v2110 = vadd.f32 %v2070, %v2102
        %v2111 = vadd.f32 %v2071, %v2103
        %v2112 = vadd.f32 %v2072, %v2104
        %v2113 = vadd.f32 %v2073, %v2105
        %v2114 = vadd.f32 %v2074, %v2106
        %v2115 = vadd.f32 %v2075, %v2107
        %v2116 = vld [vmem:[%s10] sm:$0xf]
        %v2117 = vld [vmem:[%s10 + $0x4] sm:$0xf]
        %v2118 = vld [vmem:[%s10 + $0x8] sm:$0xf]
        %v2119 = vld [vmem:[%s10 + $0xc] sm:$0xf]
        %v2120 = vpack.c.bf16 %v2110, %v2108
        %v2121 = vpack.c.bf16 %v2111, %v2109
        %v2122 = vpack.c.bf16 %v2114, %v2112
        %v2123 = vpack.c.bf16 %v2115, %v2113
        %v2128 = vunpack.c.l.b16 %v2116
        %v2129 = vunpack.c.l.b16 %v2117
        %v2130 = vunpack.c.l.b16 %v2118
        %v2131 = vunpack.c.l.b16 %v2119
        %v2132 = vpack.c.b16 %v2129, %v2128
        %v2133 = vpack.c.b16 %v2131, %v2130
        %v2135 = vsel %vm706, %v2132, 0
        %v2138 = vsel %vm706, %v2133, 0
        %2140 = vmatprep.subr.bf16.mxu0 %v2121
        %2141 = vmatpush1.bf16.msra.mxu0 %v2120
        %2142 = vmatprep.subr.bf16.mxu0 %v2123
        %2143 = vmatpush1.bf16.msra.mxu0 %v2122
        %2144 = vmatprep.subr.bf16.mxu0 0
        %2145 = vmatpush1.bf16.msra.mxu0 0
        %2146 = vmatprep.subr.bf16.mxu0 0
        %2147 = vmatpush1.bf16.msra.mxu0 0
        %2148 = vmatprep.subr.bf16.mxu0 0
        %2149 = vmatpush1.bf16.msra.mxu0 0
        %2150 = vmatprep.subr.bf16.mxu0 0
        %2151 = vmatpush1.bf16.msra.mxu0 0
        %2152 = vmatprep.subr.bf16.mxu0 0
        %2153 = vmatpush1.bf16.msra.mxu0 0
        %2154 = vmatprep.subr.bf16.mxu0 0
        %2155 = vmatpush1.bf16.msra.mxu0 0
        %2156 = vmatprep.subr.bf16.mxu0 0
        %2157 = vmatpush1.bf16.msra.mxu0 0
        %2158 = vmatprep.subr.bf16.mxu0 0
        %2159 = vmatpush1.bf16.msra.mxu0 0
        %2160 = vmatprep.subr.bf16.mxu0 0
        %2161 = vmatpush1.bf16.msra.mxu0 0
        %2162 = vmatprep.subr.bf16.mxu0 0
        %2163 = vmatpush1.bf16.msra.mxu0 0
        %2164 = vmatprep.subr.bf16.mxu0 0
        %2165 = vmatpush1.bf16.msra.mxu0 0
        %2166 = vmatprep.subr.bf16.mxu0 0
        %2167 = vmatpush1.bf16.msra.mxu0 0
        %2168 = vmatprep.subr.bf16.mxu0 0
        %2169 = vmatpush1.bf16.msra.mxu0 0
        %2170 = vmatprep.subr.bf16.mxu0 0
        %2171 = vmatpush1.bf16.msra.mxu0 0
        %2172 = vmatprep.mubr.bf16.mxu0 0
        %2173 = vmatmul.mubr.bf16.gmra.mrb[0].mxu0 %v2135
        %v2174 = vpop.f32.mrb[0].mxu0
        %v2175 = vadd.f32 0.0, %v2174
        %v2176 = vpop.f32.mrb[0].mxu0
        %v2177 = vadd.f32 0.0, %v2176
        %v2178 = vpop.f32.mrb[0].mxu0
        %v2179 = vadd.f32 0.0, %v2178
        %v2180 = vpop.f32.mrb[0].mxu0
        %v2181 = vadd.f32 0.0, %v2180
        %2182 = vmatprep.mubr.bf16.mxu0 0
        %2183 = vmatmul.mubr.bf16.gmra.mrb[0].mxu0 %v2138
        %v2184 = vpop.f32.mrb[0].mxu0
        %v2185 = vadd.f32 0.0, %v2184
        %v2186 = vpop.f32.mrb[0].mxu0
        %v2187 = vadd.f32 0.0, %v2186
        %v2188 = vpop.f32.mrb[0].mxu0
        %v2189 = vadd.f32 0.0, %v2188
        %v2190 = vpop.f32.mrb[0].mxu0
        %v2191 = vadd.f32 0.0, %v2190
        %2192 = vdwg.mxu0
        %v2193 = vld [vmem:[%s11] sm:$0xff]
        %v2194 = vld [vmem:[%s11 + $0x8] sm:$0xff]
        %v2195 = vld [vmem:[%s11 + $0x10] sm:$0xff]
        %v2196 = vld [vmem:[%s11 + $0x18] sm:$0xff]
        %2198 = vset.pattern.permute.xlu0 0
        %2199 = vperm.xlu0 %2198, %v2193
        %v2200 = vpop.permute.xlu0 %2199
        %2203 = vset.pattern.permute.xlu0 0
        %2204 = vperm.xlu0 %2203, %v2194
        %v2205 = vpop.permute.xlu0 %2204
        %2208 = vset.pattern.permute.xlu0 0
        %2209 = vperm.xlu0 %2208, %v2195
        %v2210 = vpop.permute.xlu0 %2209
        %2213 = vset.pattern.permute.xlu0 0
        %2214 = vperm.xlu0 %2213, %v2196
        %v2215 = vpop.permute.xlu0 %2214
        %v2217 = vmul.f32 %v2175, %v2200
        %v2218 = vmul.f32 %v2177, %v2200
        %v2219 = vmul.f32 %v2179, %v2205
        %v2220 = vmul.f32 %v2181, %v2205
        %v2221 = vmul.f32 %v2185, %v2210
        %v2222 = vmul.f32 %v2187, %v2210
        %v2223 = vmul.f32 %v2189, %v2215
        %v2224 = vmul.f32 %v2191, %v2215
        %v2225 = vld [vmem:[%s12] sm:$0xff]
        %v2226 = vld [vmem:[%s12 + $0x8] sm:$0xff]
        %v2227 = vld [vmem:[%s12 + $0x10] sm:$0xff]
        %v2228 = vld [vmem:[%s12 + $0x18] sm:$0xff]
        %2230 = vset.pattern.permute.xlu0 0
        %2231 = vperm.xlu0 %2230, %v2225
        %v2232 = vpop.permute.xlu0 %2231
        %2235 = vset.pattern.permute.xlu0 0
        %2236 = vperm.xlu0 %2235, %v2226
        %v2237 = vpop.permute.xlu0 %2236
        %2240 = vset.pattern.permute.xlu0 0
        %2241 = vperm.xlu0 %2240, %v2227
        %v2242 = vpop.permute.xlu0 %2241
        %2245 = vset.pattern.permute.xlu0 0
        %2246 = vperm.xlu0 %2245, %v2228
        %v2247 = vpop.permute.xlu0 %2246
        %v2249 = vadd.f32 %v2217, %v2232
        %v2250 = vadd.f32 %v2218, %v2232
        %v2251 = vadd.f32 %v2219, %v2237
        %v2252 = vadd.f32 %v2220, %v2237
        %v2253 = vadd.f32 %v2221, %v2242
        %v2254 = vadd.f32 %v2222, %v2242
        %v2255 = vadd.f32 %v2223, %v2247
        %v2256 = vadd.f32 %v2224, %v2247
        %v2257 = vld [vmem:[%s928] sm:$0xff]
        %v2258 = vld [vmem:[%s928 + $0x8] sm:$0xff]
        %v2259 = vld [vmem:[%s928 + $0x10] sm:$0xff]
        %v2260 = vld [vmem:[%s928 + $0x18] sm:$0xff]
        %v2261 = vld [vmem:[%s928 + $0x20] sm:$0xff]
        %v2262 = vld [vmem:[%s928 + $0x28] sm:$0xff]
        %v2263 = vld [vmem:[%s928 + $0x30] sm:$0xff]
        %v2264 = vld [vmem:[%s928 + $0x38] sm:$0xff]
        %v2265 = vadd.f32 %v2249, %v2257
        %v2266 = vadd.f32 %v2250, %v2258
        %v2267 = vadd.f32 %v2251, %v2259
        %v2268 = vadd.f32 %v2252, %v2260
        %v2269 = vadd.f32 %v2253, %v2261
        %v2270 = vadd.f32 %v2254, %v2262
        %v2271 = vadd.f32 %v2255, %v2263
        %v2272 = vadd.f32 %v2256, %v2264
        %s2273 = scalar_lea.vmem [#allocation2], 128
        %2274 = vst [vmem:[%s2273] sm:$0xff] %v2265
        %2275 = vst [vmem:[%s2273 + $0x8] sm:$0xff] %v2266
        %2276 = vst [vmem:[%s2273 + $0x10] sm:$0xff] %v2267
        %2277 = vst [vmem:[%s2273 + $0x18] sm:$0xff] %v2268
        %2278 = vst [vmem:[%s2273 + $0x20] sm:$0xff] %v2269
        %2279 = vst [vmem:[%s2273 + $0x28] sm:$0xff] %v2270
        %2280 = vst [vmem:[%s2273 + $0x30] sm:$0xff] %v2271
        %2281 = vst [vmem:[%s2273 + $0x38] sm:$0xff] %v2272
        %v2282 = vld [vmem:[#allocation2] sm:$0xff]
        %v2283 = vld [vmem:[#allocation2 + $0x8] sm:$0xff]
        %v2284 = vld [vmem:[#allocation2 + $0x10] sm:$0xff]
        %v2285 = vld [vmem:[#allocation2 + $0x18] sm:$0xff]
        %v2286 = vld [vmem:[#allocation2 + $0x20] sm:$0xff]
        %v2287 = vld [vmem:[#allocation2 + $0x28] sm:$0xff]
        %v2288 = vld [vmem:[#allocation2 + $0x30] sm:$0xff]
        %v2289 = vld [vmem:[#allocation2 + $0x38] sm:$0xff]
        %vm2290 = vcmp.gt.f32.partialorder %v656, 0.5
        %vm2291 = vcmp.gt.f32.partialorder %v657, 0.5
        %2292 = vrot.lane.b32.xlu0 %v2282, 1
        %v2293 = vpop.permute.xlu0 %2292
        %2294 = vrot.lane.b32.xlu0 %v2284, 1
        %v2295 = vpop.permute.xlu0 %2294
        %2296 = vrot.lane.b32.xlu0 %v2286, 1
        %v2297 = vpop.permute.xlu0 %2296
        %2298 = vrot.lane.b32.xlu0 %v2288, 1
        %v2299 = vpop.permute.xlu0 %2298
        %2300 = vrot.lane.b32.xlu0 %v2283, 1
        %v2301 = vpop.permute.xlu0 %2300
        %2302 = vrot.lane.b32.xlu0 %v2285, 1
        %v2303 = vpop.permute.xlu0 %2302
        %2304 = vrot.lane.b32.xlu0 %v2287, 1
        %v2305 = vpop.permute.xlu0 %2304
        %2306 = vrot.lane.b32.xlu0 %v2289, 1
        %v2307 = vpop.permute.xlu0 %2306
        %v2308 = vsel %vm971, %v2293, %v2301
        %v2309 = vsel %vm971, %v2295, %v2303
        %v2310 = vsel %vm971, %v2297, %v2305
        %v2311 = vsel %vm971, %v2299, %v2307
        %v2312 = vsel %vm971, %v2301, %v2293
        %v2313 = vsel %vm971, %v2303, %v2295
        %v2314 = vsel %vm971, %v2305, %v2297
        %v2315 = vsel %vm971, %v2307, %v2299
        %v2316 = vsel %vm2290, 1, 0
        %v2317 = vsel %vm2291, 1, 0
        %v2318 = vlaneseq
        %v2319 = vshrl.u32 %v2318, 7
        %v2320 = vsub.s32 0, %v2319
        %v2321 = vrot.slane %v2316, %v2320
        %v2322 = vlaneseq
        %v2323 = vshrl.u32 %v2322, 7
        %v2324 = vsub.s32 0, %v2323
        %v2325 = vrot.slane %v2317, %v2324
        %vm2326 = vcmp.eq.s32.totalorder %v2321, 1
        %vm2327 = vcmp.eq.s32.totalorder %v2325, 1
        %v2328 = vsel %vm2326, %v2312, -1e+30
        %v2329 = vsel %vm2327, %v2308, -1e+30
        %v2330 = vsel %vm2326, %v2313, -1e+30
        %v2331 = vsel %vm2327, %v2309, -1e+30
        %v2332 = vsel %vm2326, %v2314, -1e+30
        %v2333 = vsel %vm2327, %v2310, -1e+30
        %v2334 = vsel %vm2326, %v2315, -1e+30
        %v2335 = vsel %vm2327, %v2311, -1e+30
        %v2336 = vmax.f32 %v2328, %v2282
        %v2337 = vmax.f32 %v2329, %v2283
        %v2338 = vmax.f32 %v2330, %v2284
        %v2339 = vmax.f32 %v2331, %v2285
        %v2340 = vmax.f32 %v2332, %v2286
        %v2341 = vmax.f32 %v2333, %v2287
        %v2342 = vmax.f32 %v2334, %v2288
        %v2343 = vmax.f32 %v2335, %v2289
        %2344 = vrot.lane.b32.xlu0 %v2282, 127
        %v2345 = vpop.permute.xlu0 %2344
        %2346 = vrot.lane.b32.xlu0 %v2284, 127
        %v2347 = vpop.permute.xlu0 %2346
        %2348 = vrot.lane.b32.xlu0 %v2286, 127
        %v2349 = vpop.permute.xlu0 %2348
        %2350 = vrot.lane.b32.xlu0 %v2288, 127
        %v2351 = vpop.permute.xlu0 %2350
        %2352 = vrot.lane.b32.xlu0 %v2283, 127
        %v2353 = vpop.permute.xlu0 %2352
        %2354 = vrot.lane.b32.xlu0 %v2285, 127
        %v2355 = vpop.permute.xlu0 %2354
        %2356 = vrot.lane.b32.xlu0 %v2287, 127
        %v2357 = vpop.permute.xlu0 %2356
        %2358 = vrot.lane.b32.xlu0 %v2289, 127
        %v2359 = vpop.permute.xlu0 %2358
        %v2360 = vsel %vm1012, %v2345, %v2353
        %v2361 = vsel %vm1012, %v2347, %v2355
        %v2362 = vsel %vm1012, %v2349, %v2357
        %v2363 = vsel %vm1012, %v2351, %v2359
        %v2364 = vsel %vm1012, %v2353, %v2345
        %v2365 = vsel %vm1012, %v2355, %v2347
        %v2366 = vsel %vm1012, %v2357, %v2349
        %v2367 = vsel %vm1012, %v2359, %v2351
        %v2368 = vlaneseq
        %v2369 = vshrl.u32 %v2368, 7
        %v2370 = vsub.s32 1, %v2369
        %v2371 = vrot.slane %v2316, %v2370
        %v2372 = vlaneseq
        %v2373 = vshrl.u32 %v2372, 7
        %v2374 = vsub.s32 1, %v2373
        %v2375 = vrot.slane %v2317, %v2374
        %vm2376 = vcmp.eq.s32.totalorder %v2371, 1
        %vm2377 = vcmp.eq.s32.totalorder %v2375, 1
        %v2378 = vsel %vm2376, %v2360, -1e+30
        %v2379 = vsel %vm2377, %v2364, -1e+30
        %v2380 = vsel %vm2376, %v2361, -1e+30
        %v2381 = vsel %vm2377, %v2365, -1e+30
        %v2382 = vsel %vm2376, %v2362, -1e+30
        %v2383 = vsel %vm2377, %v2366, -1e+30
        %v2384 = vsel %vm2376, %v2363, -1e+30
        %v2385 = vsel %vm2377, %v2367, -1e+30
        %v2386 = vmax.f32 %v2336, %v2378
        %v2387 = vmax.f32 %v2337, %v2379
        %v2388 = vmax.f32 %v2338, %v2380
        %v2389 = vmax.f32 %v2339, %v2381
        %v2390 = vmax.f32 %v2340, %v2382
        %v2391 = vmax.f32 %v2341, %v2383
        %v2392 = vmax.f32 %v2342, %v2384
        %v2393 = vmax.f32 %v2343, %v2385
        %2394 = vrot.lane.b32.xlu0 %v2386, 16
        %v2395 = vpop.permute.xlu0 %2394
        %2396 = vrot.lane.b32.xlu0 %v2388, 16
        %v2397 = vpop.permute.xlu0 %2396
        %2398 = vrot.lane.b32.xlu0 %v2390, 16
        %v2399 = vpop.permute.xlu0 %2398
        %2400 = vrot.lane.b32.xlu0 %v2392, 16
        %v2401 = vpop.permute.xlu0 %2400
        %2402 = vrot.lane.b32.xlu0 %v2387, 16
        %v2403 = vpop.permute.xlu0 %2402
        %2404 = vrot.lane.b32.xlu0 %v2389, 16
        %v2405 = vpop.permute.xlu0 %2404
        %2406 = vrot.lane.b32.xlu0 %v2391, 16
        %v2407 = vpop.permute.xlu0 %2406
        %2408 = vrot.lane.b32.xlu0 %v2393, 16
        %v2409 = vpop.permute.xlu0 %2408
        %v2410 = vsel %vm1397, %v2395, %v2403
        %v2411 = vsel %vm1397, %v2397, %v2405
        %v2412 = vsel %vm1397, %v2399, %v2407
        %v2413 = vsel %vm1397, %v2401, %v2409
        %v2414 = vsel %vm1397, %v2403, %v2395
        %v2415 = vsel %vm1397, %v2405, %v2397
        %v2416 = vsel %vm1397, %v2407, %v2399
        %v2417 = vsel %vm1397, %v2409, %v2401
        %v2418 = vlaneseq
        %v2419 = vshrl.u32 %v2418, 7
        %v2420 = vsub.s32 2, %v2419
        %v2421 = vrot.slane %v2316, %v2420
        %v2422 = vlaneseq
        %v2423 = vshrl.u32 %v2422, 7
        %v2424 = vsub.s32 2, %v2423
        %v2425 = vrot.slane %v2317, %v2424
        %vm2426 = vcmp.eq.s32.totalorder %v2421, 1
        %vm2427 = vcmp.eq.s32.totalorder %v2425, 1
        %v2428 = vsel %vm2426, %v2414, -1e+30
        %v2429 = vsel %vm2427, %v2410, -1e+30
        %v2430 = vsel %vm2426, %v2415, -1e+30
        %v2431 = vsel %vm2427, %v2411, -1e+30
        %v2432 = vsel %vm2426, %v2416, -1e+30
        %v2433 = vsel %vm2427, %v2412, -1e+30
        %v2434 = vsel %vm2426, %v2417, -1e+30
        %v2435 = vsel %vm2427, %v2413, -1e+30
        %v2436 = vmax.f32 %v2428, %v2386
        %v2437 = vmax.f32 %v2429, %v2387
        %v2438 = vmax.f32 %v2430, %v2388
        %v2439 = vmax.f32 %v2431, %v2389
        %v2440 = vmax.f32 %v2432, %v2390
        %v2441 = vmax.f32 %v2433, %v2391
        %v2442 = vmax.f32 %v2434, %v2392
        %v2443 = vmax.f32 %v2435, %v2393
        %2444 = vrot.lane.b32.xlu0 %v2386, 112
        %v2445 = vpop.permute.xlu0 %2444
        %2446 = vrot.lane.b32.xlu0 %v2388, 112
        %v2447 = vpop.permute.xlu0 %2446
        %2448 = vrot.lane.b32.xlu0 %v2390, 112
        %v2449 = vpop.permute.xlu0 %2448
        %2450 = vrot.lane.b32.xlu0 %v2392, 112
        %v2451 = vpop.permute.xlu0 %2450
        %2452 = vrot.lane.b32.xlu0 %v2387, 112
        %v2453 = vpop.permute.xlu0 %2452
        %2454 = vrot.lane.b32.xlu0 %v2389, 112
        %v2455 = vpop.permute.xlu0 %2454
        %2456 = vrot.lane.b32.xlu0 %v2391, 112
        %v2457 = vpop.permute.xlu0 %2456
        %2458 = vrot.lane.b32.xlu0 %v2393, 112
        %v2459 = vpop.permute.xlu0 %2458
        %v2460 = vsel %vm1446, %v2445, %v2453
        %v2461 = vsel %vm1446, %v2447, %v2455
        %v2462 = vsel %vm1446, %v2449, %v2457
        %v2463 = vsel %vm1446, %v2451, %v2459
        %v2464 = vsel %vm1446, %v2453, %v2445
        %v2465 = vsel %vm1446, %v2455, %v2447
        %v2466 = vsel %vm1446, %v2457, %v2449
        %v2467 = vsel %vm1446, %v2459, %v2451
        %v2468 = vlaneseq
        %v2469 = vshrl.u32 %v2468, 7
        %v2470 = vsub.s32 3, %v2469
        %v2471 = vrot.slane %v2316, %v2470
        %v2472 = vlaneseq
        %v2473 = vshrl.u32 %v2472, 7
        %v2474 = vsub.s32 3, %v2473
        %v2475 = vrot.slane %v2317, %v2474
        %vm2476 = vcmp.eq.s32.totalorder %v2471, 1
        %vm2477 = vcmp.eq.s32.totalorder %v2475, 1
        %v2478 = vsel %vm2476, %v2460, -1e+30
        %v2479 = vsel %vm2477, %v2464, -1e+30
        %v2480 = vsel %vm2476, %v2461, -1e+30
        %v2481 = vsel %vm2477, %v2465, -1e+30
        %v2482 = vsel %vm2476, %v2462, -1e+30
        %v2483 = vsel %vm2477, %v2466, -1e+30
        %v2484 = vsel %vm2476, %v2463, -1e+30
        %v2485 = vsel %vm2477, %v2467, -1e+30
        %v2486 = vmax.f32 %v2436, %v2478
        %v2487 = vmax.f32 %v2437, %v2479
        %v2488 = vmax.f32 %v2438, %v2480
        %v2489 = vmax.f32 %v2439, %v2481
        %v2490 = vmax.f32 %v2440, %v2482
        %v2491 = vmax.f32 %v2441, %v2483
        %v2492 = vmax.f32 %v2442, %v2484
        %v2493 = vmax.f32 %v2443, %v2485
        %v2494 = vld [vmem:[%s928] sm:$0xff]
        %v2495 = vld [vmem:[%s928 + $0x8] sm:$0xff]
        %v2496 = vld [vmem:[%s928 + $0x10] sm:$0xff]
        %v2497 = vld [vmem:[%s928 + $0x18] sm:$0xff]
        %v2498 = vld [vmem:[%s928 + $0x20] sm:$0xff]
        %v2499 = vld [vmem:[%s928 + $0x28] sm:$0xff]
        %v2500 = vld [vmem:[%s928 + $0x30] sm:$0xff]
        %v2501 = vld [vmem:[%s928 + $0x38] sm:$0xff]
        %2502 = vrot.lane.b32.xlu0 %v2494, 1
        %v2503 = vpop.permute.xlu0 %2502
        %2504 = vrot.lane.b32.xlu0 %v2496, 1
        %v2505 = vpop.permute.xlu0 %2504
        %2506 = vrot.lane.b32.xlu0 %v2498, 1
        %v2507 = vpop.permute.xlu0 %2506
        %2508 = vrot.lane.b32.xlu0 %v2500, 1
        %v2509 = vpop.permute.xlu0 %2508
        %2510 = vrot.lane.b32.xlu0 %v2495, 1
        %v2511 = vpop.permute.xlu0 %2510
        %2512 = vrot.lane.b32.xlu0 %v2497, 1
        %v2513 = vpop.permute.xlu0 %2512
        %2514 = vrot.lane.b32.xlu0 %v2499, 1
        %v2515 = vpop.permute.xlu0 %2514
        %2516 = vrot.lane.b32.xlu0 %v2501, 1
        %v2517 = vpop.permute.xlu0 %2516
        %v2518 = vsel %vm971, %v2503, %v2511
        %v2519 = vsel %vm971, %v2505, %v2513
        %v2520 = vsel %vm971, %v2507, %v2515
        %v2521 = vsel %vm971, %v2509, %v2517
        %v2522 = vsel %vm971, %v2511, %v2503
        %v2523 = vsel %vm971, %v2513, %v2505
        %v2524 = vsel %vm971, %v2515, %v2507
        %v2525 = vsel %vm971, %v2517, %v2509
        %v2526 = vmul.f32 %v2522, %v983
        %v2527 = vmul.f32 %v2518, %v987
        %v2528 = vmul.f32 %v2523, %v983
        %v2529 = vmul.f32 %v2519, %v987
        %v2530 = vmul.f32 %v2524, %v983
        %v2531 = vmul.f32 %v2520, %v987
        %v2532 = vmul.f32 %v2525, %v983
        %v2533 = vmul.f32 %v2521, %v987
        %2534 = vrot.lane.b32.xlu0 %v2494, 127
        %v2535 = vpop.permute.xlu0 %2534
        %2536 = vrot.lane.b32.xlu0 %v2496, 127
        %v2537 = vpop.permute.xlu0 %2536
        %2538 = vrot.lane.b32.xlu0 %v2498, 127
        %v2539 = vpop.permute.xlu0 %2538
        %2540 = vrot.lane.b32.xlu0 %v2500, 127
        %v2541 = vpop.permute.xlu0 %2540
        %2542 = vrot.lane.b32.xlu0 %v2495, 127
        %v2543 = vpop.permute.xlu0 %2542
        %2544 = vrot.lane.b32.xlu0 %v2497, 127
        %v2545 = vpop.permute.xlu0 %2544
        %2546 = vrot.lane.b32.xlu0 %v2499, 127
        %v2547 = vpop.permute.xlu0 %2546
        %2548 = vrot.lane.b32.xlu0 %v2501, 127
        %v2549 = vpop.permute.xlu0 %2548
        %v2550 = vsel %vm1012, %v2535, %v2543
        %v2551 = vsel %vm1012, %v2537, %v2545
        %v2552 = vsel %vm1012, %v2539, %v2547
        %v2553 = vsel %vm1012, %v2541, %v2549
        %v2554 = vsel %vm1012, %v2543, %v2535
        %v2555 = vsel %vm1012, %v2545, %v2537
        %v2556 = vsel %vm1012, %v2547, %v2539
        %v2557 = vsel %vm1012, %v2549, %v2541
        %v2558 = vmul.f32 %v2550, %v1024
        %v2559 = vmul.f32 %v2554, %v1028
        %v2560 = vmul.f32 %v2551, %v1024
        %v2561 = vmul.f32 %v2555, %v1028
        %v2562 = vmul.f32 %v2552, %v1024
        %v2563 = vmul.f32 %v2556, %v1028
        %v2564 = vmul.f32 %v2553, %v1024
        %v2565 = vmul.f32 %v2557, %v1028
        %v2566 = vadd.f32 %v2526, %v2494
        %v2567 = vadd.f32 %v2527, %v2495
        %v2568 = vadd.f32 %v2528, %v2496
        %v2569 = vadd.f32 %v2529, %v2497
        %v2570 = vadd.f32 %v2530, %v2498
        %v2571 = vadd.f32 %v2531, %v2499
        %v2572 = vadd.f32 %v2532, %v2500
        %v2573 = vadd.f32 %v2533, %v2501
        %v2574 = vadd.f32 %v2566, %v2558
        %v2575 = vadd.f32 %v2567, %v2559
        %v2576 = vadd.f32 %v2568, %v2560
        %v2577 = vadd.f32 %v2569, %v2561
        %v2578 = vadd.f32 %v2570, %v2562
        %v2579 = vadd.f32 %v2571, %v2563
        %v2580 = vadd.f32 %v2572, %v2564
        %v2581 = vadd.f32 %v2573, %v2565
        %2582 = vrot.lane.b32.xlu0 %v2574, 16
        %v2583 = vpop.permute.xlu0 %2582
        %2584 = vrot.lane.b32.xlu0 %v2576, 16
        %v2585 = vpop.permute.xlu0 %2584
        %2586 = vrot.lane.b32.xlu0 %v2578, 16
        %v2587 = vpop.permute.xlu0 %2586
        %2588 = vrot.lane.b32.xlu0 %v2580, 16
        %v2589 = vpop.permute.xlu0 %2588
        %2590 = vrot.lane.b32.xlu0 %v2575, 16
        %v2591 = vpop.permute.xlu0 %2590
        %2592 = vrot.lane.b32.xlu0 %v2577, 16
        %v2593 = vpop.permute.xlu0 %2592
        %2594 = vrot.lane.b32.xlu0 %v2579, 16
        %v2595 = vpop.permute.xlu0 %2594
        %2596 = vrot.lane.b32.xlu0 %v2581, 16
        %v2597 = vpop.permute.xlu0 %2596
        %v2598 = vsel %vm1397, %v2583, %v2591
        %v2599 = vsel %vm1397, %v2585, %v2593
        %v2600 = vsel %vm1397, %v2587, %v2595
        %v2601 = vsel %vm1397, %v2589, %v2597
        %v2602 = vsel %vm1397, %v2591, %v2583
        %v2603 = vsel %vm1397, %v2593, %v2585
        %v2604 = vsel %vm1397, %v2595, %v2587
        %v2605 = vsel %vm1397, %v2597, %v2589
        %v2606 = vmul.f32 %v2602, %v1409
        %v2607 = vmul.f32 %v2598, %v1413
        %v2608 = vmul.f32 %v2603, %v1409
        %v2609 = vmul.f32 %v2599, %v1413
        %v2610 = vmul.f32 %v2604, %v1409
        %v2611 = vmul.f32 %v2600, %v1413
        %v2612 = vmul.f32 %v2605, %v1409
        %v2613 = vmul.f32 %v2601, %v1413
        %v2614 = vadd.f32 %v2606, %v2574
        %v2615 = vadd.f32 %v2607, %v2575
        %v2616 = vadd.f32 %v2608, %v2576
        %v2617 = vadd.f32 %v2609, %v2577
        %v2618 = vadd.f32 %v2610, %v2578
        %v2619 = vadd.f32 %v2611, %v2579
        %v2620 = vadd.f32 %v2612, %v2580
        %v2621 = vadd.f32 %v2613, %v2581
        %2622 = vrot.lane.b32.xlu0 %v2574, 112
        %v2623 = vpop.permute.xlu0 %2622
        %2624 = vrot.lane.b32.xlu0 %v2576, 112
        %v2625 = vpop.permute.xlu0 %2624
        %2626 = vrot.lane.b32.xlu0 %v2578, 112
        %v2627 = vpop.permute.xlu0 %2626
        %2628 = vrot.lane.b32.xlu0 %v2580, 112
        %v2629 = vpop.permute.xlu0 %2628
        %2630 = vrot.lane.b32.xlu0 %v2575, 112
        %v2631 = vpop.permute.xlu0 %2630
        %2632 = vrot.lane.b32.xlu0 %v2577, 112
        %v2633 = vpop.permute.xlu0 %2632
        %2634 = vrot.lane.b32.xlu0 %v2579, 112
        %v2635 = vpop.permute.xlu0 %2634
        %2636 = vrot.lane.b32.xlu0 %v2581, 112
        %v2637 = vpop.permute.xlu0 %2636
        %v2638 = vsel %vm1446, %v2623, %v2631
        %v2639 = vsel %vm1446, %v2625, %v2633
        %v2640 = vsel %vm1446, %v2627, %v2635
        %v2641 = vsel %vm1446, %v2629, %v2637
        %v2642 = vsel %vm1446, %v2631, %v2623
        %v2643 = vsel %vm1446, %v2633, %v2625
        %v2644 = vsel %vm1446, %v2635, %v2627
        %v2645 = vsel %vm1446, %v2637, %v2629
        %v2646 = vmul.f32 %v2638, %v1458
        %v2647 = vmul.f32 %v2642, %v1462
        %v2648 = vmul.f32 %v2639, %v1458
        %v2649 = vmul.f32 %v2643, %v1462
        %v2650 = vmul.f32 %v2640, %v1458
        %v2651 = vmul.f32 %v2644, %v1462
        %v2652 = vmul.f32 %v2641, %v1458
        %v2653 = vmul.f32 %v2645, %v1462
        %v2654 = vadd.f32 %v2614, %v2646
        %v2655 = vadd.f32 %v2615, %v2647
        %v2656 = vadd.f32 %v2616, %v2648
        %v2657 = vadd.f32 %v2617, %v2649
        %v2658 = vadd.f32 %v2618, %v2650
        %v2659 = vadd.f32 %v2619, %v2651
        %v2660 = vadd.f32 %v2620, %v2652
        %v2661 = vadd.f32 %v2621, %v2653
        %v2662 = vlaneseq
        %v2663 = vshrl.u32 %v2662, 7
        %v2664 = vsub.s32 4, %v2663
        %v2665 = vrot.slane %v656, %v2664
        %v2666 = vlaneseq
        %v2667 = vshrl.u32 %v2666, 7
        %v2668 = vsub.s32 4, %v2667
        %v2669 = vrot.slane %v657, %v2668
        %v2670 = vmul.f32 %v2654, %v2665
        %v2671 = vmul.f32 %v2655, %v2669
        %v2672 = vmul.f32 %v2656, %v2665
        %v2673 = vmul.f32 %v2657, %v2669
        %v2674 = vmul.f32 %v2658, %v2665
        %v2675 = vmul.f32 %v2659, %v2669
        %v2676 = vmul.f32 %v2660, %v2665
        %v2677 = vmul.f32 %v2661, %v2669
        %v2678 = vadd.f32 %v2486, %v2670
        %v2679 = vadd.f32 %v2487, %v2671
        %v2680 = vadd.f32 %v2488, %v2672
        %v2681 = vadd.f32 %v2489, %v2673
        %v2682 = vadd.f32 %v2490, %v2674
        %v2683 = vadd.f32 %v2491, %v2675
        %v2684 = vadd.f32 %v2492, %v2676
        %v2685 = vadd.f32 %v2493, %v2677
        %s2686 = scalar_lea.vmem [#allocation2], 192
        %2687 = vst [vmem:[%s2686] sm:$0xff] %v2678
        %2688 = vst [vmem:[%s2686 + $0x8] sm:$0xff] %v2679
        %2689 = vst [vmem:[%s2686 + $0x10] sm:$0xff] %v2680
        %2690 = vst [vmem:[%s2686 + $0x18] sm:$0xff] %v2681
        %2691 = vst [vmem:[%s2686 + $0x20] sm:$0xff] %v2682
        %2692 = vst [vmem:[%s2686 + $0x28] sm:$0xff] %v2683
        %2693 = vst [vmem:[%s2686 + $0x30] sm:$0xff] %v2684
        %2694 = vst [vmem:[%s2686 + $0x38] sm:$0xff] %v2685
        %v2695 = vld [vmem:[#allocation2] sm:$0xff]
        %v2696 = vld [vmem:[#allocation2 + $0x8] sm:$0xff]
        %v2697 = vld [vmem:[#allocation2 + $0x10] sm:$0xff]
        %v2698 = vld [vmem:[#allocation2 + $0x18] sm:$0xff]
        %v2699 = vld [vmem:[#allocation2 + $0x20] sm:$0xff]
        %v2700 = vld [vmem:[#allocation2 + $0x28] sm:$0xff]
        %v2701 = vld [vmem:[#allocation2 + $0x30] sm:$0xff]
        %v2702 = vld [vmem:[#allocation2 + $0x38] sm:$0xff]
        %v2703 = vld [vmem:[%s2273] sm:$0xff]
        %v2704 = vld [vmem:[%s2273 + $0x8] sm:$0xff]
        %v2705 = vld [vmem:[%s2273 + $0x10] sm:$0xff]
        %v2706 = vld [vmem:[%s2273 + $0x18] sm:$0xff]
        %v2707 = vld [vmem:[%s2273 + $0x20] sm:$0xff]
        %v2708 = vld [vmem:[%s2273 + $0x28] sm:$0xff]
        %v2709 = vld [vmem:[%s2273 + $0x30] sm:$0xff]
        %v2710 = vld [vmem:[%s2273 + $0x38] sm:$0xff]
        %v2711 = vmax.f32 %v2703, 0.0
        %v2712 = vmax.f32 %v2704, 0.0
        %v2713 = vmax.f32 %v2705, 0.0
        %v2714 = vmax.f32 %v2706, 0.0
        %v2715 = vmax.f32 %v2707, 0.0
        %v2716 = vmax.f32 %v2708, 0.0
        %v2717 = vmax.f32 %v2709, 0.0
        %v2718 = vmax.f32 %v2710, 0.0
        %2719 = vrot.lane.b32.xlu0 %v2711, 1
        %v2720 = vpop.permute.xlu0 %2719
        %2721 = vrot.lane.b32.xlu0 %v2713, 1
        %v2722 = vpop.permute.xlu0 %2721
        %2723 = vrot.lane.b32.xlu0 %v2715, 1
        %v2724 = vpop.permute.xlu0 %2723
        %2725 = vrot.lane.b32.xlu0 %v2717, 1
        %v2726 = vpop.permute.xlu0 %2725
        %2727 = vrot.lane.b32.xlu0 %v2712, 1
        %v2728 = vpop.permute.xlu0 %2727
        %2729 = vrot.lane.b32.xlu0 %v2714, 1
        %v2730 = vpop.permute.xlu0 %2729
        %2731 = vrot.lane.b32.xlu0 %v2716, 1
        %v2732 = vpop.permute.xlu0 %2731
        %2733 = vrot.lane.b32.xlu0 %v2718, 1
        %v2734 = vpop.permute.xlu0 %2733
        %v2735 = vsel %vm971, %v2720, %v2728
        %v2736 = vsel %vm971, %v2722, %v2730
        %v2737 = vsel %vm971, %v2724, %v2732
        %v2738 = vsel %vm971, %v2726, %v2734
        %v2739 = vsel %vm971, %v2728, %v2720
        %v2740 = vsel %vm971, %v2730, %v2722
        %v2741 = vsel %vm971, %v2732, %v2724
        %v2742 = vsel %vm971, %v2734, %v2726
        %v2743 = vmul.f32 %v2739, %v983
        %v2744 = vmul.f32 %v2735, %v987
        %v2745 = vmul.f32 %v2740, %v983
        %v2746 = vmul.f32 %v2736, %v987
        %v2747 = vmul.f32 %v2741, %v983
        %v2748 = vmul.f32 %v2737, %v987
        %v2749 = vmul.f32 %v2742, %v983
        %v2750 = vmul.f32 %v2738, %v987
        %2751 = vrot.lane.b32.xlu0 %v2711, 127
        %v2752 = vpop.permute.xlu0 %2751
        %2753 = vrot.lane.b32.xlu0 %v2713, 127
        %v2754 = vpop.permute.xlu0 %2753
        %2755 = vrot.lane.b32.xlu0 %v2715, 127
        %v2756 = vpop.permute.xlu0 %2755
        %2757 = vrot.lane.b32.xlu0 %v2717, 127
        %v2758 = vpop.permute.xlu0 %2757
        %2759 = vrot.lane.b32.xlu0 %v2712, 127
        %v2760 = vpop.permute.xlu0 %2759
        %2761 = vrot.lane.b32.xlu0 %v2714, 127
        %v2762 = vpop.permute.xlu0 %2761
        %2763 = vrot.lane.b32.xlu0 %v2716, 127
        %v2764 = vpop.permute.xlu0 %2763
        %2765 = vrot.lane.b32.xlu0 %v2718, 127
        %v2766 = vpop.permute.xlu0 %2765
        %v2767 = vsel %vm1012, %v2752, %v2760
        %v2768 = vsel %vm1012, %v2754, %v2762
        %v2769 = vsel %vm1012, %v2756, %v2764
        %v2770 = vsel %vm1012, %v2758, %v2766
        %v2771 = vsel %vm1012, %v2760, %v2752
        %v2772 = vsel %vm1012, %v2762, %v2754
        %v2773 = vsel %vm1012, %v2764, %v2756
        %v2774 = vsel %vm1012, %v2766, %v2758
        %v2775 = vmul.f32 %v2767, %v1024
        %v2776 = vmul.f32 %v2771, %v1028
        %v2777 = vmul.f32 %v2768, %v1024
        %v2778 = vmul.f32 %v2772, %v1028
        %v2779 = vmul.f32 %v2769, %v1024
        %v2780 = vmul.f32 %v2773, %v1028
        %v2781 = vmul.f32 %v2770, %v1024
        %v2782 = vmul.f32 %v2774, %v1028
        %v2783 = vld [vmem:[%s13] sm:$0xff]
        %v2784 = vld [vmem:[%s13 + $0x8] sm:$0xff]
        %v2785 = vld [vmem:[%s13 + $0x10] sm:$0xff]
        %v2786 = vld [vmem:[%s13 + $0x18] sm:$0xff]
        %2788 = vset.pattern.permute.xlu0 0
        %2789 = vperm.xlu0 %2788, %v2783
        %v2790 = vpop.permute.xlu0 %2789
        %2793 = vset.pattern.permute.xlu0 0
        %2794 = vperm.xlu0 %2793, %v2784
        %v2795 = vpop.permute.xlu0 %2794
        %2798 = vset.pattern.permute.xlu0 0
        %2799 = vperm.xlu0 %2798, %v2785
        %v2800 = vpop.permute.xlu0 %2799
        %2803 = vset.pattern.permute.xlu0 0
        %2804 = vperm.xlu0 %2803, %v2786
        %v2805 = vpop.permute.xlu0 %2804
        %v2807 = vmul.f32 %v2743, %v2790
        %v2808 = vmul.f32 %v2744, %v2790
        %v2809 = vmul.f32 %v2745, %v2795
        %v2810 = vmul.f32 %v2746, %v2795
        %v2811 = vmul.f32 %v2747, %v2800
        %v2812 = vmul.f32 %v2748, %v2800
        %v2813 = vmul.f32 %v2749, %v2805
        %v2814 = vmul.f32 %v2750, %v2805
        %s2815 = scalar_lea.vmem %s13, 32
        %v2816 = vld [vmem:[%s2815] sm:$0xff]
        %v2817 = vld [vmem:[%s2815 + $0x8] sm:$0xff]
        %v2818 = vld [vmem:[%s2815 + $0x10] sm:$0xff]
        %v2819 = vld [vmem:[%s2815 + $0x18] sm:$0xff]
        %2821 = vset.pattern.permute.xlu0 0
        %2822 = vperm.xlu0 %2821, %v2816
        %v2823 = vpop.permute.xlu0 %2822
        %2826 = vset.pattern.permute.xlu0 0
        %2827 = vperm.xlu0 %2826, %v2817
        %v2828 = vpop.permute.xlu0 %2827
        %2831 = vset.pattern.permute.xlu0 0
        %2832 = vperm.xlu0 %2831, %v2818
        %v2833 = vpop.permute.xlu0 %2832
        %2836 = vset.pattern.permute.xlu0 0
        %2837 = vperm.xlu0 %2836, %v2819
        %v2838 = vpop.permute.xlu0 %2837
        %v2840 = vmul.f32 %v2711, %v2823
        %v2841 = vmul.f32 %v2712, %v2823
        %v2842 = vmul.f32 %v2713, %v2828
        %v2843 = vmul.f32 %v2714, %v2828
        %v2844 = vmul.f32 %v2715, %v2833
        %v2845 = vmul.f32 %v2716, %v2833
        %v2846 = vmul.f32 %v2717, %v2838
        %v2847 = vmul.f32 %v2718, %v2838
        %v2848 = vadd.f32 %v2807, %v2840
        %v2849 = vadd.f32 %v2808, %v2841
        %v2850 = vadd.f32 %v2809, %v2842
        %v2851 = vadd.f32 %v2810, %v2843
        %v2852 = vadd.f32 %v2811, %v2844
        %v2853 = vadd.f32 %v2812, %v2845
        %v2854 = vadd.f32 %v2813, %v2846
        %v2855 = vadd.f32 %v2814, %v2847
        %s2856 = scalar_lea.vmem %s13, 64
        %v2857 = vld [vmem:[%s2856] sm:$0xff]
        %v2858 = vld [vmem:[%s2856 + $0x8] sm:$0xff]
        %v2859 = vld [vmem:[%s2856 + $0x10] sm:$0xff]
        %v2860 = vld [vmem:[%s2856 + $0x18] sm:$0xff]
        %2862 = vset.pattern.permute.xlu0 0
        %2863 = vperm.xlu0 %2862, %v2857
        %v2864 = vpop.permute.xlu0 %2863
        %2867 = vset.pattern.permute.xlu0 0
        %2868 = vperm.xlu0 %2867, %v2858
        %v2869 = vpop.permute.xlu0 %2868
        %2872 = vset.pattern.permute.xlu0 0
        %2873 = vperm.xlu0 %2872, %v2859
        %v2874 = vpop.permute.xlu0 %2873
        %2877 = vset.pattern.permute.xlu0 0
        %2878 = vperm.xlu0 %2877, %v2860
        %v2879 = vpop.permute.xlu0 %2878
        %v2881 = vmul.f32 %v2775, %v2864
        %v2882 = vmul.f32 %v2776, %v2864
        %v2883 = vmul.f32 %v2777, %v2869
        %v2884 = vmul.f32 %v2778, %v2869
        %v2885 = vmul.f32 %v2779, %v2874
        %v2886 = vmul.f32 %v2780, %v2874
        %v2887 = vmul.f32 %v2781, %v2879
        %v2888 = vmul.f32 %v2782, %v2879
        %v2889 = vadd.f32 %v2848, %v2881
        %v2890 = vadd.f32 %v2849, %v2882
        %v2891 = vadd.f32 %v2850, %v2883
        %v2892 = vadd.f32 %v2851, %v2884
        %v2893 = vadd.f32 %v2852, %v2885
        %v2894 = vadd.f32 %v2853, %v2886
        %v2895 = vadd.f32 %v2854, %v2887
        %v2896 = vadd.f32 %v2855, %v2888
        %s2897 = scalar_lea.vmem %s13, 96
        %v2898 = vld [vmem:[%s2897] sm:$0xff]
        %v2899 = vld [vmem:[%s2897 + $0x8] sm:$0xff]
        %v2900 = vld [vmem:[%s2897 + $0x10] sm:$0xff]
        %v2901 = vld [vmem:[%s2897 + $0x18] sm:$0xff]
        %2903 = vset.pattern.permute.xlu0 0
        %2904 = vperm.xlu0 %2903, %v2898
        %v2905 = vpop.permute.xlu0 %2904
        %2908 = vset.pattern.permute.xlu0 0
        %2909 = vperm.xlu0 %2908, %v2899
        %v2910 = vpop.permute.xlu0 %2909
        %2913 = vset.pattern.permute.xlu0 0
        %2914 = vperm.xlu0 %2913, %v2900
        %v2915 = vpop.permute.xlu0 %2914
        %2918 = vset.pattern.permute.xlu0 0
        %2919 = vperm.xlu0 %2918, %v2901
        %v2920 = vpop.permute.xlu0 %2919
        %v2922 = vmul.f32 %v2743, %v2905
        %v2923 = vmul.f32 %v2744, %v2905
        %v2924 = vmul.f32 %v2745, %v2910
        %v2925 = vmul.f32 %v2746, %v2910
        %v2926 = vmul.f32 %v2747, %v2915
        %v2927 = vmul.f32 %v2748, %v2915
        %v2928 = vmul.f32 %v2749, %v2920
        %v2929 = vmul.f32 %v2750, %v2920
        %s2930 = scalar_lea.vmem %s13, 128
        %v2931 = vld [vmem:[%s2930] sm:$0xff]
        %v2932 = vld [vmem:[%s2930 + $0x8] sm:$0xff]
        %v2933 = vld [vmem:[%s2930 + $0x10] sm:$0xff]
        %v2934 = vld [vmem:[%s2930 + $0x18] sm:$0xff]
        %2936 = vset.pattern.permute.xlu0 0
        %2937 = vperm.xlu0 %2936, %v2931
        %v2938 = vpop.permute.xlu0 %2937
        %2941 = vset.pattern.permute.xlu0 0
        %2942 = vperm.xlu0 %2941, %v2932
        %v2943 = vpop.permute.xlu0 %2942
        %2946 = vset.pattern.permute.xlu0 0
        %2947 = vperm.xlu0 %2946, %v2933
        %v2948 = vpop.permute.xlu0 %2947
        %2951 = vset.pattern.permute.xlu0 0
        %2952 = vperm.xlu0 %2951, %v2934
        %v2953 = vpop.permute.xlu0 %2952
        %v2955 = vmul.f32 %v2711, %v2938
        %v2956 = vmul.f32 %v2712, %v2938
        %v2957 = vmul.f32 %v2713, %v2943
        %v2958 = vmul.f32 %v2714, %v2943
        %v2959 = vmul.f32 %v2715, %v2948
        %v2960 = vmul.f32 %v2716, %v2948
        %v2961 = vmul.f32 %v2717, %v2953
        %v2962 = vmul.f32 %v2718, %v2953
        %v2963 = vadd.f32 %v2922, %v2955
        %v2964 = vadd.f32 %v2923, %v2956
        %v2965 = vadd.f32 %v2924, %v2957
        %v2966 = vadd.f32 %v2925, %v2958
        %v2967 = vadd.f32 %v2926, %v2959
        %v2968 = vadd.f32 %v2927, %v2960
        %v2969 = vadd.f32 %v2928, %v2961
        %v2970 = vadd.f32 %v2929, %v2962
        %s2971 = scalar_lea.vmem %s13, 160
        %v2972 = vld [vmem:[%s2971] sm:$0xff]
        %v2973 = vld [vmem:[%s2971 + $0x8] sm:$0xff]
        %v2974 = vld [vmem:[%s2971 + $0x10] sm:$0xff]
        %v2975 = vld [vmem:[%s2971 + $0x18] sm:$0xff]
        %2977 = vset.pattern.permute.xlu0 0
        %2978 = vperm.xlu0 %2977, %v2972
        %v2979 = vpop.permute.xlu0 %2978
        %2982 = vset.pattern.permute.xlu0 0
        %2983 = vperm.xlu0 %2982, %v2973
        %v2984 = vpop.permute.xlu0 %2983
        %2987 = vset.pattern.permute.xlu0 0
        %2988 = vperm.xlu0 %2987, %v2974
        %v2989 = vpop.permute.xlu0 %2988
        %2992 = vset.pattern.permute.xlu0 0
        %2993 = vperm.xlu0 %2992, %v2975
        %v2994 = vpop.permute.xlu0 %2993
        %v2996 = vmul.f32 %v2775, %v2979
        %v2997 = vmul.f32 %v2776, %v2979
        %v2998 = vmul.f32 %v2777, %v2984
        %v2999 = vmul.f32 %v2778, %v2984
        %v3000 = vmul.f32 %v2779, %v2989
        %v3001 = vmul.f32 %v2780, %v2989
        %v3002 = vmul.f32 %v2781, %v2994
        %v3003 = vmul.f32 %v2782, %v2994
        %v3004 = vadd.f32 %v2963, %v2996
        %v3005 = vadd.f32 %v2964, %v2997
        %v3006 = vadd.f32 %v2965, %v2998
        %v3007 = vadd.f32 %v2966, %v2999
        %v3008 = vadd.f32 %v2967, %v3000
        %v3009 = vadd.f32 %v2968, %v3001
        %v3010 = vadd.f32 %v2969, %v3002
        %v3011 = vadd.f32 %v2970, %v3003
        %s3012 = scalar_lea.vmem %s13, 192
        %v3013 = vld [vmem:[%s3012] sm:$0xff]
        %v3014 = vld [vmem:[%s3012 + $0x8] sm:$0xff]
        %v3015 = vld [vmem:[%s3012 + $0x10] sm:$0xff]
        %v3016 = vld [vmem:[%s3012 + $0x18] sm:$0xff]
        %3018 = vset.pattern.permute.xlu0 0
        %3019 = vperm.xlu0 %3018, %v3013
        %v3020 = vpop.permute.xlu0 %3019
        %3023 = vset.pattern.permute.xlu0 0
        %3024 = vperm.xlu0 %3023, %v3014
        %v3025 = vpop.permute.xlu0 %3024
        %3028 = vset.pattern.permute.xlu0 0
        %3029 = vperm.xlu0 %3028, %v3015
        %v3030 = vpop.permute.xlu0 %3029
        %3033 = vset.pattern.permute.xlu0 0
        %3034 = vperm.xlu0 %3033, %v3016
        %v3035 = vpop.permute.xlu0 %3034
        %v3037 = vmul.f32 %v2743, %v3020
        %v3038 = vmul.f32 %v2744, %v3020
        %v3039 = vmul.f32 %v2745, %v3025
        %v3040 = vmul.f32 %v2746, %v3025
        %v3041 = vmul.f32 %v2747, %v3030
        %v3042 = vmul.f32 %v2748, %v3030
        %v3043 = vmul.f32 %v2749, %v3035
        %v3044 = vmul.f32 %v2750, %v3035
        %s3045 = scalar_lea.vmem %s13, 224
        %v3046 = vld [vmem:[%s3045] sm:$0xff]
        %v3047 = vld [vmem:[%s3045 + $0x8] sm:$0xff]
        %v3048 = vld [vmem:[%s3045 + $0x10] sm:$0xff]
        %v3049 = vld [vmem:[%s3045 + $0x18] sm:$0xff]
        %3051 = vset.pattern.permute.xlu0 0
        %3052 = vperm.xlu0 %3051, %v3046
        %v3053 = vpop.permute.xlu0 %3052
        %3056 = vset.pattern.permute.xlu0 0
        %3057 = vperm.xlu0 %3056, %v3047
        %v3058 = vpop.permute.xlu0 %3057
        %3061 = vset.pattern.permute.xlu0 0
        %3062 = vperm.xlu0 %3061, %v3048
        %v3063 = vpop.permute.xlu0 %3062
        %3066 = vset.pattern.permute.xlu0 0
        %3067 = vperm.xlu0 %3066, %v3049
        %v3068 = vpop.permute.xlu0 %3067
        %v3070 = vmul.f32 %v2711, %v3053
        %v3071 = vmul.f32 %v2712, %v3053
        %v3072 = vmul.f32 %v2713, %v3058
        %v3073 = vmul.f32 %v2714, %v3058
        %v3074 = vmul.f32 %v2715, %v3063
        %v3075 = vmul.f32 %v2716, %v3063
        %v3076 = vmul.f32 %v2717, %v3068
        %v3077 = vmul.f32 %v2718, %v3068
        %v3078 = vadd.f32 %v3037, %v3070
        %v3079 = vadd.f32 %v3038, %v3071
        %v3080 = vadd.f32 %v3039, %v3072
        %v3081 = vadd.f32 %v3040, %v3073
        %v3082 = vadd.f32 %v3041, %v3074
        %v3083 = vadd.f32 %v3042, %v3075
        %v3084 = vadd.f32 %v3043, %v3076
        %v3085 = vadd.f32 %v3044, %v3077
        %s3086 = scalar_lea.vmem %s13, 256
        %v3087 = vld [vmem:[%s3086] sm:$0xff]
        %v3088 = vld [vmem:[%s3086 + $0x8] sm:$0xff]
        %v3089 = vld [vmem:[%s3086 + $0x10] sm:$0xff]
        %v3090 = vld [vmem:[%s3086 + $0x18] sm:$0xff]
        %3092 = vset.pattern.permute.xlu0 0
        %3093 = vperm.xlu0 %3092, %v3087
        %v3094 = vpop.permute.xlu0 %3093
        %3097 = vset.pattern.permute.xlu0 0
        %3098 = vperm.xlu0 %3097, %v3088
        %v3099 = vpop.permute.xlu0 %3098
        %3102 = vset.pattern.permute.xlu0 0
        %3103 = vperm.xlu0 %3102, %v3089
        %v3104 = vpop.permute.xlu0 %3103
        %3107 = vset.pattern.permute.xlu0 0
        %3108 = vperm.xlu0 %3107, %v3090
        %v3109 = vpop.permute.xlu0 %3108
        %v3111 = vmul.f32 %v2775, %v3094
        %v3112 = vmul.f32 %v2776, %v3094
        %v3113 = vmul.f32 %v2777, %v3099
        %v3114 = vmul.f32 %v2778, %v3099
        %v3115 = vmul.f32 %v2779, %v3104
        %v3116 = vmul.f32 %v2780, %v3104
        %v3117 = vmul.f32 %v2781, %v3109
        %v3118 = vmul.f32 %v2782, %v3109
        %v3119 = vadd.f32 %v3078, %v3111
        %v3120 = vadd.f32 %v3079, %v3112
        %v3121 = vadd.f32 %v3080, %v3113
        %v3122 = vadd.f32 %v3081, %v3114
        %v3123 = vadd.f32 %v3082, %v3115
        %v3124 = vadd.f32 %v3083, %v3116
        %v3125 = vadd.f32 %v3084, %v3117
        %v3126 = vadd.f32 %v3085, %v3118
        %3127 = vrot.lane.b32.xlu0 %v2889, 16
        %v3128 = vpop.permute.xlu0 %3127
        %3129 = vrot.lane.b32.xlu0 %v2891, 16
        %v3130 = vpop.permute.xlu0 %3129
        %3131 = vrot.lane.b32.xlu0 %v2893, 16
        %v3132 = vpop.permute.xlu0 %3131
        %3133 = vrot.lane.b32.xlu0 %v2895, 16
        %v3134 = vpop.permute.xlu0 %3133
        %3135 = vrot.lane.b32.xlu0 %v2890, 16
        %v3136 = vpop.permute.xlu0 %3135
        %3137 = vrot.lane.b32.xlu0 %v2892, 16
        %v3138 = vpop.permute.xlu0 %3137
        %3139 = vrot.lane.b32.xlu0 %v2894, 16
        %v3140 = vpop.permute.xlu0 %3139
        %3141 = vrot.lane.b32.xlu0 %v2896, 16
        %v3142 = vpop.permute.xlu0 %3141
        %v3143 = vsel %vm1397, %v3128, %v3136
        %v3144 = vsel %vm1397, %v3130, %v3138
        %v3145 = vsel %vm1397, %v3132, %v3140
        %v3146 = vsel %vm1397, %v3134, %v3142
        %v3147 = vsel %vm1397, %v3136, %v3128
        %v3148 = vsel %vm1397, %v3138, %v3130
        %v3149 = vsel %vm1397, %v3140, %v3132
        %v3150 = vsel %vm1397, %v3142, %v3134
        %v3151 = vmul.f32 %v3147, %v1409
        %v3152 = vmul.f32 %v3143, %v1413
        %v3153 = vmul.f32 %v3148, %v1409
        %v3154 = vmul.f32 %v3144, %v1413
        %v3155 = vmul.f32 %v3149, %v1409
        %v3156 = vmul.f32 %v3145, %v1413
        %v3157 = vmul.f32 %v3150, %v1409
        %v3158 = vmul.f32 %v3146, %v1413
        %v3159 = vadd.f32 %v3151, %v3004
        %v3160 = vadd.f32 %v3152, %v3005
        %v3161 = vadd.f32 %v3153, %v3006
        %v3162 = vadd.f32 %v3154, %v3007
        %v3163 = vadd.f32 %v3155, %v3008
        %v3164 = vadd.f32 %v3156, %v3009
        %v3165 = vadd.f32 %v3157, %v3010
        %v3166 = vadd.f32 %v3158, %v3011
        %3167 = vrot.lane.b32.xlu0 %v3119, 112
        %v3168 = vpop.permute.xlu0 %3167
        %3169 = vrot.lane.b32.xlu0 %v3121, 112
        %v3170 = vpop.permute.xlu0 %3169
        %3171 = vrot.lane.b32.xlu0 %v3123, 112
        %v3172 = vpop.permute.xlu0 %3171
        %3173 = vrot.lane.b32.xlu0 %v3125, 112
        %v3174 = vpop.permute.xlu0 %3173
        %3175 = vrot.lane.b32.xlu0 %v3120, 112
        %v3176 = vpop.permute.xlu0 %3175
        %3177 = vrot.lane.b32.xlu0 %v3122, 112
        %v3178 = vpop.permute.xlu0 %3177
        %3179 = vrot.lane.b32.xlu0 %v3124, 112
        %v3180 = vpop.permute.xlu0 %3179
        %3181 = vrot.lane.b32.xlu0 %v3126, 112
        %v3182 = vpop.permute.xlu0 %3181
        %v3183 = vsel %vm1446, %v3168, %v3176
        %v3184 = vsel %vm1446, %v3170, %v3178
        %v3185 = vsel %vm1446, %v3172, %v3180
        %v3186 = vsel %vm1446, %v3174, %v3182
        %v3187 = vsel %vm1446, %v3176, %v3168
        %v3188 = vsel %vm1446, %v3178, %v3170
        %v3189 = vsel %vm1446, %v3180, %v3172
        %v3190 = vsel %vm1446, %v3182, %v3174
        %v3191 = vmul.f32 %v3183, %v1458
        %v3192 = vmul.f32 %v3187, %v1462
        %v3193 = vmul.f32 %v3184, %v1458
        %v3194 = vmul.f32 %v3188, %v1462
        %v3195 = vmul.f32 %v3185, %v1458
        %v3196 = vmul.f32 %v3189, %v1462
        %v3197 = vmul.f32 %v3186, %v1458
        %v3198 = vmul.f32 %v3190, %v1462
        %v3199 = vadd.f32 %v3159, %v3191
        %v3200 = vadd.f32 %v3160, %v3192
        %v3201 = vadd.f32 %v3161, %v3193
        %v3202 = vadd.f32 %v3162, %v3194
        %v3203 = vadd.f32 %v3163, %v3195
        %v3204 = vadd.f32 %v3164, %v3196
        %v3205 = vadd.f32 %v3165, %v3197
        %v3206 = vadd.f32 %v3166, %v3198
        %v3207 = vld [vmem:[%s14] sm:$0xf]
        %v3208 = vld [vmem:[%s14 + $0x4] sm:$0xf]
        %v3209 = vld [vmem:[%s14 + $0x8] sm:$0xf]
        %v3210 = vld [vmem:[%s14 + $0xc] sm:$0xf]
        %v3211 = vpack.c.bf16 %v3201, %v3199
        %v3212 = vpack.c.bf16 %v3202, %v3200
        %v3213 = vpack.c.bf16 %v3205, %v3203
        %v3214 = vpack.c.bf16 %v3206, %v3204
        %v3219 = vunpack.c.l.b16 %v3207
        %v3220 = vunpack.c.l.b16 %v3208
        %v3221 = vunpack.c.l.b16 %v3209
        %v3222 = vunpack.c.l.b16 %v3210
        %v3223 = vpack.c.b16 %v3220, %v3219
        %v3224 = vpack.c.b16 %v3222, %v3221
        %v3226 = vsel %vm706, %v3223, 0
        %v3229 = vsel %vm706, %v3224, 0
        %3231 = vmatprep.subr.bf16.mxu0 %v3212
        %3232 = vmatpush1.bf16.msra.mxu0 %v3211
        %3233 = vmatprep.subr.bf16.mxu0 %v3214
        %3234 = vmatpush1.bf16.msra.mxu0 %v3213
        %3235 = vmatprep.subr.bf16.mxu0 0
        %3236 = vmatpush1.bf16.msra.mxu0 0
        %3237 = vmatprep.subr.bf16.mxu0 0
        %3238 = vmatpush1.bf16.msra.mxu0 0
        %3239 = vmatprep.subr.bf16.mxu0 0
        %3240 = vmatpush1.bf16.msra.mxu0 0
        %3241 = vmatprep.subr.bf16.mxu0 0
        %3242 = vmatpush1.bf16.msra.mxu0 0
        %3243 = vmatprep.subr.bf16.mxu0 0
        %3244 = vmatpush1.bf16.msra.mxu0 0
        %3245 = vmatprep.subr.bf16.mxu0 0
        %3246 = vmatpush1.bf16.msra.mxu0 0
        %3247 = vmatprep.subr.bf16.mxu0 0
        %3248 = vmatpush1.bf16.msra.mxu0 0
        %3249 = vmatprep.subr.bf16.mxu0 0
        %3250 = vmatpush1.bf16.msra.mxu0 0
        %3251 = vmatprep.subr.bf16.mxu0 0
        %3252 = vmatpush1.bf16.msra.mxu0 0
        %3253 = vmatprep.subr.bf16.mxu0 0
        %3254 = vmatpush1.bf16.msra.mxu0 0
        %3255 = vmatprep.subr.bf16.mxu0 0
        %3256 = vmatpush1.bf16.msra.mxu0 0
        %3257 = vmatprep.subr.bf16.mxu0 0
        %3258 = vmatpush1.bf16.msra.mxu0 0
        %3259 = vmatprep.subr.bf16.mxu0 0
        %3260 = vmatpush1.bf16.msra.mxu0 0
        %3261 = vmatprep.subr.bf16.mxu0 0
        %3262 = vmatpush1.bf16.msra.mxu0 0
        %3263 = vmatprep.mubr.bf16.mxu0 0
        %3264 = vmatmul.mubr.bf16.gmra.mrb[0].mxu0 %v3226
        %v3265 = vpop.f32.mrb[0].mxu0
        %v3266 = vadd.f32 0.0, %v3265
        %v3267 = vpop.f32.mrb[0].mxu0
        %v3268 = vadd.f32 0.0, %v3267
        %v3269 = vpop.f32.mrb[0].mxu0
        %v3270 = vadd.f32 0.0, %v3269
        %v3271 = vpop.f32.mrb[0].mxu0
        %v3272 = vadd.f32 0.0, %v3271
        %3273 = vmatprep.mubr.bf16.mxu0 0
        %3274 = vmatmul.mubr.bf16.gmra.mrb[0].mxu0 %v3229
        %v3275 = vpop.f32.mrb[0].mxu0
        %v3276 = vadd.f32 0.0, %v3275
        %v3277 = vpop.f32.mrb[0].mxu0
        %v3278 = vadd.f32 0.0, %v3277
        %v3279 = vpop.f32.mrb[0].mxu0
        %v3280 = vadd.f32 0.0, %v3279
        %v3281 = vpop.f32.mrb[0].mxu0
        %v3282 = vadd.f32 0.0, %v3281
        %3283 = vdwg.mxu0
        %v3284 = vld [vmem:[%s15] sm:$0xff]
        %v3285 = vld [vmem:[%s15 + $0x8] sm:$0xff]
        %v3286 = vld [vmem:[%s15 + $0x10] sm:$0xff]
        %v3287 = vld [vmem:[%s15 + $0x18] sm:$0xff]
        %3289 = vset.pattern.permute.xlu0 0
        %3290 = vperm.xlu0 %3289, %v3284
        %v3291 = vpop.permute.xlu0 %3290
        %3294 = vset.pattern.permute.xlu0 0
        %3295 = vperm.xlu0 %3294, %v3285
        %v3296 = vpop.permute.xlu0 %3295
        %3299 = vset.pattern.permute.xlu0 0
        %3300 = vperm.xlu0 %3299, %v3286
        %v3301 = vpop.permute.xlu0 %3300
        %3304 = vset.pattern.permute.xlu0 0
        %3305 = vperm.xlu0 %3304, %v3287
        %v3306 = vpop.permute.xlu0 %3305
        %v3308 = vmul.f32 %v3266, %v3291
        %v3309 = vmul.f32 %v3268, %v3291
        %v3310 = vmul.f32 %v3270, %v3296
        %v3311 = vmul.f32 %v3272, %v3296
        %v3312 = vmul.f32 %v3276, %v3301
        %v3313 = vmul.f32 %v3278, %v3301
        %v3314 = vmul.f32 %v3280, %v3306
        %v3315 = vmul.f32 %v3282, %v3306
        %v3316 = vld [vmem:[%s16] sm:$0xff]
        %v3317 = vld [vmem:[%s16 + $0x8] sm:$0xff]
        %v3318 = vld [vmem:[%s16 + $0x10] sm:$0xff]
        %v3319 = vld [vmem:[%s16 + $0x18] sm:$0xff]
        %3321 = vset.pattern.permute.xlu0 0
        %3322 = vperm.xlu0 %3321, %v3316
        %v3323 = vpop.permute.xlu0 %3322
        %3326 = vset.pattern.permute.xlu0 0
        %3327 = vperm.xlu0 %3326, %v3317
        %v3328 = vpop.permute.xlu0 %3327
        %3331 = vset.pattern.permute.xlu0 0
        %3332 = vperm.xlu0 %3331, %v3318
        %v3333 = vpop.permute.xlu0 %3332
        %3336 = vset.pattern.permute.xlu0 0
        %3337 = vperm.xlu0 %3336, %v3319
        %v3338 = vpop.permute.xlu0 %3337
        %v3340 = vadd.f32 %v3308, %v3323
        %v3341 = vadd.f32 %v3309, %v3323
        %v3342 = vadd.f32 %v3310, %v3328
        %v3343 = vadd.f32 %v3311, %v3328
        %v3344 = vadd.f32 %v3312, %v3333
        %v3345 = vadd.f32 %v3313, %v3333
        %v3346 = vadd.f32 %v3314, %v3338
        %v3347 = vadd.f32 %v3315, %v3338
        %v3348 = vmax.f32 %v3340, 0.0
        %v3349 = vmax.f32 %v3341, 0.0
        %v3350 = vmax.f32 %v3342, 0.0
        %v3351 = vmax.f32 %v3343, 0.0
        %v3352 = vmax.f32 %v3344, 0.0
        %v3353 = vmax.f32 %v3345, 0.0
        %v3354 = vmax.f32 %v3346, 0.0
        %v3355 = vmax.f32 %v3347, 0.0
        %3356 = vrot.lane.b32.xlu0 %v3348, 1
        %v3357 = vpop.permute.xlu0 %3356
        %3358 = vrot.lane.b32.xlu0 %v3350, 1
        %v3359 = vpop.permute.xlu0 %3358
        %3360 = vrot.lane.b32.xlu0 %v3352, 1
        %v3361 = vpop.permute.xlu0 %3360
        %3362 = vrot.lane.b32.xlu0 %v3354, 1
        %v3363 = vpop.permute.xlu0 %3362
        %3364 = vrot.lane.b32.xlu0 %v3349, 1
        %v3365 = vpop.permute.xlu0 %3364
        %3366 = vrot.lane.b32.xlu0 %v3351, 1
        %v3367 = vpop.permute.xlu0 %3366
        %3368 = vrot.lane.b32.xlu0 %v3353, 1
        %v3369 = vpop.permute.xlu0 %3368
        %3370 = vrot.lane.b32.xlu0 %v3355, 1
        %v3371 = vpop.permute.xlu0 %3370
        %v3372 = vsel %vm971, %v3357, %v3365
        %v3373 = vsel %vm971, %v3359, %v3367
        %v3374 = vsel %vm971, %v3361, %v3369
        %v3375 = vsel %vm971, %v3363, %v3371
        %v3376 = vsel %vm971, %v3365, %v3357
        %v3377 = vsel %vm971, %v3367, %v3359
        %v3378 = vsel %vm971, %v3369, %v3361
        %v3379 = vsel %vm971, %v3371, %v3363
        %v3380 = vmul.f32 %v3376, %v983
        %v3381 = vmul.f32 %v3372, %v987
        %v3382 = vmul.f32 %v3377, %v983
        %v3383 = vmul.f32 %v3373, %v987
        %v3384 = vmul.f32 %v3378, %v983
        %v3385 = vmul.f32 %v3374, %v987
        %v3386 = vmul.f32 %v3379, %v983
        %v3387 = vmul.f32 %v3375, %v987
        %3388 = vrot.lane.b32.xlu0 %v3348, 127
        %v3389 = vpop.permute.xlu0 %3388
        %3390 = vrot.lane.b32.xlu0 %v3350, 127
        %v3391 = vpop.permute.xlu0 %3390
        %3392 = vrot.lane.b32.xlu0 %v3352, 127
        %v3393 = vpop.permute.xlu0 %3392
        %3394 = vrot.lane.b32.xlu0 %v3354, 127
        %v3395 = vpop.permute.xlu0 %3394
        %3396 = vrot.lane.b32.xlu0 %v3349, 127
        %v3397 = vpop.permute.xlu0 %3396
        %3398 = vrot.lane.b32.xlu0 %v3351, 127
        %v3399 = vpop.permute.xlu0 %3398
        %3400 = vrot.lane.b32.xlu0 %v3353, 127
        %v3401 = vpop.permute.xlu0 %3400
        %3402 = vrot.lane.b32.xlu0 %v3355, 127
        %v3403 = vpop.permute.xlu0 %3402
        %v3404 = vsel %vm1012, %v3389, %v3397
        %v3405 = vsel %vm1012, %v3391, %v3399
        %v3406 = vsel %vm1012, %v3393, %v3401
        %v3407 = vsel %vm1012, %v3395, %v3403
        %v3408 = vsel %vm1012, %v3397, %v3389
        %v3409 = vsel %vm1012, %v3399, %v3391
        %v3410 = vsel %vm1012, %v3401, %v3393
        %v3411 = vsel %vm1012, %v3403, %v3395
        %v3412 = vmul.f32 %v3404, %v1024
        %v3413 = vmul.f32 %v3408, %v1028
        %v3414 = vmul.f32 %v3405, %v1024
        %v3415 = vmul.f32 %v3409, %v1028
        %v3416 = vmul.f32 %v3406, %v1024
        %v3417 = vmul.f32 %v3410, %v1028
        %v3418 = vmul.f32 %v3407, %v1024
        %v3419 = vmul.f32 %v3411, %v1028
        %v3420 = vld [vmem:[%s17] sm:$0xff]
        %v3421 = vld [vmem:[%s17 + $0x8] sm:$0xff]
        %v3422 = vld [vmem:[%s17 + $0x10] sm:$0xff]
        %v3423 = vld [vmem:[%s17 + $0x18] sm:$0xff]
        %3425 = vset.pattern.permute.xlu0 0
        %3426 = vperm.xlu0 %3425, %v3420
        %v3427 = vpop.permute.xlu0 %3426
        %3430 = vset.pattern.permute.xlu0 0
        %3431 = vperm.xlu0 %3430, %v3421
        %v3432 = vpop.permute.xlu0 %3431
        %3435 = vset.pattern.permute.xlu0 0
        %3436 = vperm.xlu0 %3435, %v3422
        %v3437 = vpop.permute.xlu0 %3436
        %3440 = vset.pattern.permute.xlu0 0
        %3441 = vperm.xlu0 %3440, %v3423
        %v3442 = vpop.permute.xlu0 %3441
        %v3444 = vmul.f32 %v3380, %v3427
        %v3445 = vmul.f32 %v3381, %v3427
        %v3446 = vmul.f32 %v3382, %v3432
        %v3447 = vmul.f32 %v3383, %v3432
        %v3448 = vmul.f32 %v3384, %v3437
        %v3449 = vmul.f32 %v3385, %v3437
        %v3450 = vmul.f32 %v3386, %v3442
        %v3451 = vmul.f32 %v3387, %v3442
        %s3452 = scalar_lea.vmem %s17, 32
        %v3453 = vld [vmem:[%s3452] sm:$0xff]
        %v3454 = vld [vmem:[%s3452 + $0x8] sm:$0xff]
        %v3455 = vld [vmem:[%s3452 + $0x10] sm:$0xff]
        %v3456 = vld [vmem:[%s3452 + $0x18] sm:$0xff]
        %3458 = vset.pattern.permute.xlu0 0
        %3459 = vperm.xlu0 %3458, %v3453
        %v3460 = vpop.permute.xlu0 %3459
        %3463 = vset.pattern.permute.xlu0 0
        %3464 = vperm.xlu0 %3463, %v3454
        %v3465 = vpop.permute.xlu0 %3464
        %3468 = vset.pattern.permute.xlu0 0
        %3469 = vperm.xlu0 %3468, %v3455
        %v3470 = vpop.permute.xlu0 %3469
        %3473 = vset.pattern.permute.xlu0 0
        %3474 = vperm.xlu0 %3473, %v3456
        %v3475 = vpop.permute.xlu0 %3474
        %v3477 = vmul.f32 %v3348, %v3460
        %v3478 = vmul.f32 %v3349, %v3460
        %v3479 = vmul.f32 %v3350, %v3465
        %v3480 = vmul.f32 %v3351, %v3465
        %v3481 = vmul.f32 %v3352, %v3470
        %v3482 = vmul.f32 %v3353, %v3470
        %v3483 = vmul.f32 %v3354, %v3475
        %v3484 = vmul.f32 %v3355, %v3475
        %v3485 = vadd.f32 %v3444, %v3477
        %v3486 = vadd.f32 %v3445, %v3478
        %v3487 = vadd.f32 %v3446, %v3479
        %v3488 = vadd.f32 %v3447, %v3480
        %v3489 = vadd.f32 %v3448, %v3481
        %v3490 = vadd.f32 %v3449, %v3482
        %v3491 = vadd.f32 %v3450, %v3483
        %v3492 = vadd.f32 %v3451, %v3484
        %s3493 = scalar_lea.vmem %s17, 64
        %v3494 = vld [vmem:[%s3493] sm:$0xff]
        %v3495 = vld [vmem:[%s3493 + $0x8] sm:$0xff]
        %v3496 = vld [vmem:[%s3493 + $0x10] sm:$0xff]
        %v3497 = vld [vmem:[%s3493 + $0x18] sm:$0xff]
        %3499 = vset.pattern.permute.xlu0 0
        %3500 = vperm.xlu0 %3499, %v3494
        %v3501 = vpop.permute.xlu0 %3500
        %3504 = vset.pattern.permute.xlu0 0
        %3505 = vperm.xlu0 %3504, %v3495
        %v3506 = vpop.permute.xlu0 %3505
        %3509 = vset.pattern.permute.xlu0 0
        %3510 = vperm.xlu0 %3509, %v3496
        %v3511 = vpop.permute.xlu0 %3510
        %3514 = vset.pattern.permute.xlu0 0
        %3515 = vperm.xlu0 %3514, %v3497
        %v3516 = vpop.permute.xlu0 %3515
        %v3518 = vmul.f32 %v3412, %v3501
        %v3519 = vmul.f32 %v3413, %v3501
        %v3520 = vmul.f32 %v3414, %v3506
        %v3521 = vmul.f32 %v3415, %v3506
        %v3522 = vmul.f32 %v3416, %v3511
        %v3523 = vmul.f32 %v3417, %v3511
        %v3524 = vmul.f32 %v3418, %v3516
        %v3525 = vmul.f32 %v3419, %v3516
        %v3526 = vadd.f32 %v3485, %v3518
        %v3527 = vadd.f32 %v3486, %v3519
        %v3528 = vadd.f32 %v3487, %v3520
        %v3529 = vadd.f32 %v3488, %v3521
        %v3530 = vadd.f32 %v3489, %v3522
        %v3531 = vadd.f32 %v3490, %v3523
        %v3532 = vadd.f32 %v3491, %v3524
        %v3533 = vadd.f32 %v3492, %v3525
        %s3534 = scalar_lea.vmem %s17, 96
        %v3535 = vld [vmem:[%s3534] sm:$0xff]
        %v3536 = vld [vmem:[%s3534 + $0x8] sm:$0xff]
        %v3537 = vld [vmem:[%s3534 + $0x10] sm:$0xff]
        %v3538 = vld [vmem:[%s3534 + $0x18] sm:$0xff]
        %3540 = vset.pattern.permute.xlu0 0
        %3541 = vperm.xlu0 %3540, %v3535
        %v3542 = vpop.permute.xlu0 %3541
        %3545 = vset.pattern.permute.xlu0 0
        %3546 = vperm.xlu0 %3545, %v3536
        %v3547 = vpop.permute.xlu0 %3546
        %3550 = vset.pattern.permute.xlu0 0
        %3551 = vperm.xlu0 %3550, %v3537
        %v3552 = vpop.permute.xlu0 %3551
        %3555 = vset.pattern.permute.xlu0 0
        %3556 = vperm.xlu0 %3555, %v3538
        %v3557 = vpop.permute.xlu0 %3556
        %v3559 = vmul.f32 %v3380, %v3542
        %v3560 = vmul.f32 %v3381, %v3542
        %v3561 = vmul.f32 %v3382, %v3547
        %v3562 = vmul.f32 %v3383, %v3547
        %v3563 = vmul.f32 %v3384, %v3552
        %v3564 = vmul.f32 %v3385, %v3552
        %v3565 = vmul.f32 %v3386, %v3557
        %v3566 = vmul.f32 %v3387, %v3557
        %s3567 = scalar_lea.vmem %s17, 128
        %v3568 = vld [vmem:[%s3567] sm:$0xff]
        %v3569 = vld [vmem:[%s3567 + $0x8] sm:$0xff]
        %v3570 = vld [vmem:[%s3567 + $0x10] sm:$0xff]
        %v3571 = vld [vmem:[%s3567 + $0x18] sm:$0xff]
        %3573 = vset.pattern.permute.xlu0 0
        %3574 = vperm.xlu0 %3573, %v3568
        %v3575 = vpop.permute.xlu0 %3574
        %3578 = vset.pattern.permute.xlu0 0
        %3579 = vperm.xlu0 %3578, %v3569
        %v3580 = vpop.permute.xlu0 %3579
        %3583 = vset.pattern.permute.xlu0 0
        %3584 = vperm.xlu0 %3583, %v3570
        %v3585 = vpop.permute.xlu0 %3584
        %3588 = vset.pattern.permute.xlu0 0
        %3589 = vperm.xlu0 %3588, %v3571
        %v3590 = vpop.permute.xlu0 %3589
        %v3592 = vmul.f32 %v3348, %v3575
        %v3593 = vmul.f32 %v3349, %v3575
        %v3594 = vmul.f32 %v3350, %v3580
        %v3595 = vmul.f32 %v3351, %v3580
        %v3596 = vmul.f32 %v3352, %v3585
        %v3597 = vmul.f32 %v3353, %v3585
        %v3598 = vmul.f32 %v3354, %v3590
        %v3599 = vmul.f32 %v3355, %v3590
        %v3600 = vadd.f32 %v3559, %v3592
        %v3601 = vadd.f32 %v3560, %v3593
        %v3602 = vadd.f32 %v3561, %v3594
        %v3603 = vadd.f32 %v3562, %v3595
        %v3604 = vadd.f32 %v3563, %v3596
        %v3605 = vadd.f32 %v3564, %v3597
        %v3606 = vadd.f32 %v3565, %v3598
        %v3607 = vadd.f32 %v3566, %v3599
        %s3608 = scalar_lea.vmem %s17, 160
        %v3609 = vld [vmem:[%s3608] sm:$0xff]
        %v3610 = vld [vmem:[%s3608 + $0x8] sm:$0xff]
        %v3611 = vld [vmem:[%s3608 + $0x10] sm:$0xff]
        %v3612 = vld [vmem:[%s3608 + $0x18] sm:$0xff]
        %3614 = vset.pattern.permute.xlu0 0
        %3615 = vperm.xlu0 %3614, %v3609
        %v3616 = vpop.permute.xlu0 %3615
        %3619 = vset.pattern.permute.xlu0 0
        %3620 = vperm.xlu0 %3619, %v3610
        %v3621 = vpop.permute.xlu0 %3620
        %3624 = vset.pattern.permute.xlu0 0
        %3625 = vperm.xlu0 %3624, %v3611
        %v3626 = vpop.permute.xlu0 %3625
        %3629 = vset.pattern.permute.xlu0 0
        %3630 = vperm.xlu0 %3629, %v3612
        %v3631 = vpop.permute.xlu0 %3630
        %v3633 = vmul.f32 %v3412, %v3616
        %v3634 = vmul.f32 %v3413, %v3616
        %v3635 = vmul.f32 %v3414, %v3621
        %v3636 = vmul.f32 %v3415, %v3621
        %v3637 = vmul.f32 %v3416, %v3626
        %v3638 = vmul.f32 %v3417, %v3626
        %v3639 = vmul.f32 %v3418, %v3631
        %v3640 = vmul.f32 %v3419, %v3631
        %v3641 = vadd.f32 %v3600, %v3633
        %v3642 = vadd.f32 %v3601, %v3634
        %v3643 = vadd.f32 %v3602, %v3635
        %v3644 = vadd.f32 %v3603, %v3636
        %v3645 = vadd.f32 %v3604, %v3637
        %v3646 = vadd.f32 %v3605, %v3638
        %v3647 = vadd.f32 %v3606, %v3639
        %v3648 = vadd.f32 %v3607, %v3640
        %s3649 = scalar_lea.vmem %s17, 192
        %v3650 = vld [vmem:[%s3649] sm:$0xff]
        %v3651 = vld [vmem:[%s3649 + $0x8] sm:$0xff]
        %v3652 = vld [vmem:[%s3649 + $0x10] sm:$0xff]
        %v3653 = vld [vmem:[%s3649 + $0x18] sm:$0xff]
        %3655 = vset.pattern.permute.xlu0 0
        %3656 = vperm.xlu0 %3655, %v3650
        %v3657 = vpop.permute.xlu0 %3656
        %3660 = vset.pattern.permute.xlu0 0
        %3661 = vperm.xlu0 %3660, %v3651
        %v3662 = vpop.permute.xlu0 %3661
        %3665 = vset.pattern.permute.xlu0 0
        %3666 = vperm.xlu0 %3665, %v3652
        %v3667 = vpop.permute.xlu0 %3666
        %3670 = vset.pattern.permute.xlu0 0
        %3671 = vperm.xlu0 %3670, %v3653
        %v3672 = vpop.permute.xlu0 %3671
        %v3674 = vmul.f32 %v3380, %v3657
        %v3675 = vmul.f32 %v3381, %v3657
        %v3676 = vmul.f32 %v3382, %v3662
        %v3677 = vmul.f32 %v3383, %v3662
        %v3678 = vmul.f32 %v3384, %v3667
        %v3679 = vmul.f32 %v3385, %v3667
        %v3680 = vmul.f32 %v3386, %v3672
        %v3681 = vmul.f32 %v3387, %v3672
        %s3682 = scalar_lea.vmem %s17, 224
        %v3683 = vld [vmem:[%s3682] sm:$0xff]
        %v3684 = vld [vmem:[%s3682 + $0x8] sm:$0xff]
        %v3685 = vld [vmem:[%s3682 + $0x10] sm:$0xff]
        %v3686 = vld [vmem:[%s3682 + $0x18] sm:$0xff]
        %3688 = vset.pattern.permute.xlu0 0
        %3689 = vperm.xlu0 %3688, %v3683
        %v3690 = vpop.permute.xlu0 %3689
        %3693 = vset.pattern.permute.xlu0 0
        %3694 = vperm.xlu0 %3693, %v3684
        %v3695 = vpop.permute.xlu0 %3694
        %3698 = vset.pattern.permute.xlu0 0
        %3699 = vperm.xlu0 %3698, %v3685
        %v3700 = vpop.permute.xlu0 %3699
        %3703 = vset.pattern.permute.xlu0 0
        %3704 = vperm.xlu0 %3703, %v3686
        %v3705 = vpop.permute.xlu0 %3704
        %v3707 = vmul.f32 %v3348, %v3690
        %v3708 = vmul.f32 %v3349, %v3690
        %v3709 = vmul.f32 %v3350, %v3695
        %v3710 = vmul.f32 %v3351, %v3695
        %v3711 = vmul.f32 %v3352, %v3700
        %v3712 = vmul.f32 %v3353, %v3700
        %v3713 = vmul.f32 %v3354, %v3705
        %v3714 = vmul.f32 %v3355, %v3705
        %v3715 = vadd.f32 %v3674, %v3707
        %v3716 = vadd.f32 %v3675, %v3708
        %v3717 = vadd.f32 %v3676, %v3709
        %v3718 = vadd.f32 %v3677, %v3710
        %v3719 = vadd.f32 %v3678, %v3711
        %v3720 = vadd.f32 %v3679, %v3712
        %v3721 = vadd.f32 %v3680, %v3713
        %v3722 = vadd.f32 %v3681, %v3714
        %s3723 = scalar_lea.vmem %s17, 256
        %v3724 = vld [vmem:[%s3723] sm:$0xff]
        %v3725 = vld [vmem:[%s3723 + $0x8] sm:$0xff]
        %v3726 = vld [vmem:[%s3723 + $0x10] sm:$0xff]
        %v3727 = vld [vmem:[%s3723 + $0x18] sm:$0xff]
        %3729 = vset.pattern.permute.xlu0 0
        %3730 = vperm.xlu0 %3729, %v3724
        %v3731 = vpop.permute.xlu0 %3730
        %3734 = vset.pattern.permute.xlu0 0
        %3735 = vperm.xlu0 %3734, %v3725
        %v3736 = vpop.permute.xlu0 %3735
        %3739 = vset.pattern.permute.xlu0 0
        %3740 = vperm.xlu0 %3739, %v3726
        %v3741 = vpop.permute.xlu0 %3740
        %3744 = vset.pattern.permute.xlu0 0
        %3745 = vperm.xlu0 %3744, %v3727
        %v3746 = vpop.permute.xlu0 %3745
        %v3748 = vmul.f32 %v3412, %v3731
        %v3749 = vmul.f32 %v3413, %v3731
        %v3750 = vmul.f32 %v3414, %v3736
        %v3751 = vmul.f32 %v3415, %v3736
        %v3752 = vmul.f32 %v3416, %v3741
        %v3753 = vmul.f32 %v3417, %v3741
        %v3754 = vmul.f32 %v3418, %v3746
        %v3755 = vmul.f32 %v3419, %v3746
        %v3756 = vadd.f32 %v3715, %v3748
        %v3757 = vadd.f32 %v3716, %v3749
        %v3758 = vadd.f32 %v3717, %v3750
        %v3759 = vadd.f32 %v3718, %v3751
        %v3760 = vadd.f32 %v3719, %v3752
        %v3761 = vadd.f32 %v3720, %v3753
        %v3762 = vadd.f32 %v3721, %v3754
        %v3763 = vadd.f32 %v3722, %v3755
        %3764 = vrot.lane.b32.xlu0 %v3526, 16
        %v3765 = vpop.permute.xlu0 %3764
        %3766 = vrot.lane.b32.xlu0 %v3528, 16
        %v3767 = vpop.permute.xlu0 %3766
        %3768 = vrot.lane.b32.xlu0 %v3530, 16
        %v3769 = vpop.permute.xlu0 %3768
        %3770 = vrot.lane.b32.xlu0 %v3532, 16
        %v3771 = vpop.permute.xlu0 %3770
        %3772 = vrot.lane.b32.xlu0 %v3527, 16
        %v3773 = vpop.permute.xlu0 %3772
        %3774 = vrot.lane.b32.xlu0 %v3529, 16
        %v3775 = vpop.permute.xlu0 %3774
        %3776 = vrot.lane.b32.xlu0 %v3531, 16
        %v3777 = vpop.permute.xlu0 %3776
        %3778 = vrot.lane.b32.xlu0 %v3533, 16
        %v3779 = vpop.permute.xlu0 %3778
        %v3780 = vsel %vm1397, %v3765, %v3773
        %v3781 = vsel %vm1397, %v3767, %v3775
        %v3782 = vsel %vm1397, %v3769, %v3777
        %v3783 = vsel %vm1397, %v3771, %v3779
        %v3784 = vsel %vm1397, %v3773, %v3765
        %v3785 = vsel %vm1397, %v3775, %v3767
        %v3786 = vsel %vm1397, %v3777, %v3769
        %v3787 = vsel %vm1397, %v3779, %v3771
        %v3788 = vmul.f32 %v3784, %v1409
        %v3789 = vmul.f32 %v3780, %v1413
        %v3790 = vmul.f32 %v3785, %v1409
        %v3791 = vmul.f32 %v3781, %v1413
        %v3792 = vmul.f32 %v3786, %v1409
        %v3793 = vmul.f32 %v3782, %v1413
        %v3794 = vmul.f32 %v3787, %v1409
        %v3795 = vmul.f32 %v3783, %v1413
        %v3796 = vadd.f32 %v3788, %v3641
        %v3797 = vadd.f32 %v3789, %v3642
        %v3798 = vadd.f32 %v3790, %v3643
        %v3799 = vadd.f32 %v3791, %v3644
        %v3800 = vadd.f32 %v3792, %v3645
        %v3801 = vadd.f32 %v3793, %v3646
        %v3802 = vadd.f32 %v3794, %v3647
        %v3803 = vadd.f32 %v3795, %v3648
        %3804 = vrot.lane.b32.xlu0 %v3756, 112
        %v3805 = vpop.permute.xlu0 %3804
        %3806 = vrot.lane.b32.xlu0 %v3758, 112
        %v3807 = vpop.permute.xlu0 %3806
        %3808 = vrot.lane.b32.xlu0 %v3760, 112
        %v3809 = vpop.permute.xlu0 %3808
        %3810 = vrot.lane.b32.xlu0 %v3762, 112
        %v3811 = vpop.permute.xlu0 %3810
        %3812 = vrot.lane.b32.xlu0 %v3757, 112
        %v3813 = vpop.permute.xlu0 %3812
        %3814 = vrot.lane.b32.xlu0 %v3759, 112
        %v3815 = vpop.permute.xlu0 %3814
        %3816 = vrot.lane.b32.xlu0 %v3761, 112
        %v3817 = vpop.permute.xlu0 %3816
        %3818 = vrot.lane.b32.xlu0 %v3763, 112
        %v3819 = vpop.permute.xlu0 %3818
        %v3820 = vsel %vm1446, %v3805, %v3813
        %v3821 = vsel %vm1446, %v3807, %v3815
        %v3822 = vsel %vm1446, %v3809, %v3817
        %v3823 = vsel %vm1446, %v3811, %v3819
        %v3824 = vsel %vm1446, %v3813, %v3805
        %v3825 = vsel %vm1446, %v3815, %v3807
        %v3826 = vsel %vm1446, %v3817, %v3809
        %v3827 = vsel %vm1446, %v3819, %v3811
        %v3828 = vmul.f32 %v3820, %v1458
        %v3829 = vmul.f32 %v3824, %v1462
        %v3830 = vmul.f32 %v3821, %v1458
        %v3831 = vmul.f32 %v3825, %v1462
        %v3832 = vmul.f32 %v3822, %v1458
        %v3833 = vmul.f32 %v3826, %v1462
        %v3834 = vmul.f32 %v3823, %v1458
        %v3835 = vmul.f32 %v3827, %v1462
        %v3836 = vadd.f32 %v3796, %v3828
        %v3837 = vadd.f32 %v3797, %v3829
        %v3838 = vadd.f32 %v3798, %v3830
        %v3839 = vadd.f32 %v3799, %v3831
        %v3840 = vadd.f32 %v3800, %v3832
        %v3841 = vadd.f32 %v3801, %v3833
        %v3842 = vadd.f32 %v3802, %v3834
        %v3843 = vadd.f32 %v3803, %v3835
        %v3844 = vld [vmem:[%s18] sm:$0xf]
        %v3845 = vld [vmem:[%s18 + $0x4] sm:$0xf]
        %v3846 = vld [vmem:[%s18 + $0x8] sm:$0xf]
        %v3847 = vld [vmem:[%s18 + $0xc] sm:$0xf]
        %v3848 = vpack.c.bf16 %v3838, %v3836
        %v3849 = vpack.c.bf16 %v3839, %v3837
        %v3850 = vpack.c.bf16 %v3842, %v3840
        %v3851 = vpack.c.bf16 %v3843, %v3841
        %v3856 = vunpack.c.l.b16 %v3844
        %v3857 = vunpack.c.l.b16 %v3845
        %v3858 = vunpack.c.l.b16 %v3846
        %v3859 = vunpack.c.l.b16 %v3847
        %v3860 = vpack.c.b16 %v3857, %v3856
        %v3861 = vpack.c.b16 %v3859, %v3858
        %v3863 = vsel %vm706, %v3860, 0
        %v3866 = vsel %vm706, %v3861, 0
        %3868 = vmatprep.subr.bf16.mxu0 %v3849
        %3869 = vmatpush1.bf16.msra.mxu0 %v3848
        %3870 = vmatprep.subr.bf16.mxu0 %v3851
        %3871 = vmatpush1.bf16.msra.mxu0 %v3850
        %3872 = vmatprep.subr.bf16.mxu0 0
        %3873 = vmatpush1.bf16.msra.mxu0 0
        %3874 = vmatprep.subr.bf16.mxu0 0
        %3875 = vmatpush1.bf16.msra.mxu0 0
        %3876 = vmatprep.subr.bf16.mxu0 0
        %3877 = vmatpush1.bf16.msra.mxu0 0
        %3878 = vmatprep.subr.bf16.mxu0 0
        %3879 = vmatpush1.bf16.msra.mxu0 0
        %3880 = vmatprep.subr.bf16.mxu0 0
        %3881 = vmatpush1.bf16.msra.mxu0 0
        %3882 = vmatprep.subr.bf16.mxu0 0
        %3883 = vmatpush1.bf16.msra.mxu0 0
        %3884 = vmatprep.subr.bf16.mxu0 0
        %3885 = vmatpush1.bf16.msra.mxu0 0
        %3886 = vmatprep.subr.bf16.mxu0 0
        %3887 = vmatpush1.bf16.msra.mxu0 0
        %3888 = vmatprep.subr.bf16.mxu0 0
        %3889 = vmatpush1.bf16.msra.mxu0 0
        %3890 = vmatprep.subr.bf16.mxu0 0
        %3891 = vmatpush1.bf16.msra.mxu0 0
        %3892 = vmatprep.subr.bf16.mxu0 0
        %3893 = vmatpush1.bf16.msra.mxu0 0
        %3894 = vmatprep.subr.bf16.mxu0 0
        %3895 = vmatpush1.bf16.msra.mxu0 0
        %3896 = vmatprep.subr.bf16.mxu0 0
        %3897 = vmatpush1.bf16.msra.mxu0 0
        %3898 = vmatprep.subr.bf16.mxu0 0
        %3899 = vmatpush1.bf16.msra.mxu0 0
        %3900 = vmatprep.mubr.bf16.mxu0 0
        %3901 = vmatmul.mubr.bf16.gmra.mrb[0].mxu0 %v3863
        %v3902 = vpop.f32.mrb[0].mxu0
        %v3903 = vadd.f32 0.0, %v3902
        %v3904 = vpop.f32.mrb[0].mxu0
        %v3905 = vadd.f32 0.0, %v3904
        %v3906 = vpop.f32.mrb[0].mxu0
        %v3907 = vadd.f32 0.0, %v3906
        %v3908 = vpop.f32.mrb[0].mxu0
        %v3909 = vadd.f32 0.0, %v3908
        %3910 = vmatprep.mubr.bf16.mxu0 0
        %3911 = vmatmul.mubr.bf16.gmra.mrb[0].mxu0 %v3866
        %v3912 = vpop.f32.mrb[0].mxu0
        %v3913 = vadd.f32 0.0, %v3912
        %v3914 = vpop.f32.mrb[0].mxu0
        %v3915 = vadd.f32 0.0, %v3914
        %v3916 = vpop.f32.mrb[0].mxu0
        %v3917 = vadd.f32 0.0, %v3916
        %v3918 = vpop.f32.mrb[0].mxu0
        %v3919 = vadd.f32 0.0, %v3918
        %3920 = vdwg.mxu0
        %v3921 = vld [vmem:[%s19] sm:$0xff]
        %v3922 = vld [vmem:[%s19 + $0x8] sm:$0xff]
        %v3923 = vld [vmem:[%s19 + $0x10] sm:$0xff]
        %v3924 = vld [vmem:[%s19 + $0x18] sm:$0xff]
        %3926 = vset.pattern.permute.xlu0 0
        %3927 = vperm.xlu0 %3926, %v3921
        %v3928 = vpop.permute.xlu0 %3927
        %3931 = vset.pattern.permute.xlu0 0
        %3932 = vperm.xlu0 %3931, %v3922
        %v3933 = vpop.permute.xlu0 %3932
        %3936 = vset.pattern.permute.xlu0 0
        %3937 = vperm.xlu0 %3936, %v3923
        %v3938 = vpop.permute.xlu0 %3937
        %3941 = vset.pattern.permute.xlu0 0
        %3942 = vperm.xlu0 %3941, %v3924
        %v3943 = vpop.permute.xlu0 %3942
        %v3945 = vmul.f32 %v3903, %v3928
        %v3946 = vmul.f32 %v3905, %v3928
        %v3947 = vmul.f32 %v3907, %v3933
        %v3948 = vmul.f32 %v3909, %v3933
        %v3949 = vmul.f32 %v3913, %v3938
        %v3950 = vmul.f32 %v3915, %v3938
        %v3951 = vmul.f32 %v3917, %v3943
        %v3952 = vmul.f32 %v3919, %v3943
        %v3953 = vld [vmem:[%s20] sm:$0xff]
        %v3954 = vld [vmem:[%s20 + $0x8] sm:$0xff]
        %v3955 = vld [vmem:[%s20 + $0x10] sm:$0xff]
        %v3956 = vld [vmem:[%s20 + $0x18] sm:$0xff]
        %3958 = vset.pattern.permute.xlu0 0
        %3959 = vperm.xlu0 %3958, %v3953
        %v3960 = vpop.permute.xlu0 %3959
        %3963 = vset.pattern.permute.xlu0 0
        %3964 = vperm.xlu0 %3963, %v3954
        %v3965 = vpop.permute.xlu0 %3964
        %3968 = vset.pattern.permute.xlu0 0
        %3969 = vperm.xlu0 %3968, %v3955
        %v3970 = vpop.permute.xlu0 %3969
        %3973 = vset.pattern.permute.xlu0 0
        %3974 = vperm.xlu0 %3973, %v3956
        %v3975 = vpop.permute.xlu0 %3974
        %v3977 = vadd.f32 %v3945, %v3960
        %v3978 = vadd.f32 %v3946, %v3960
        %v3979 = vadd.f32 %v3947, %v3965
        %v3980 = vadd.f32 %v3948, %v3965
        %v3981 = vadd.f32 %v3949, %v3970
        %v3982 = vadd.f32 %v3950, %v3970
        %v3983 = vadd.f32 %v3951, %v3975
        %v3984 = vadd.f32 %v3952, %v3975
        %v3985 = vadd.f32 %v2695, %v3977
        %v3986 = vadd.f32 %v2696, %v3978
        %v3987 = vadd.f32 %v2697, %v3979
        %v3988 = vadd.f32 %v2698, %v3980
        %v3989 = vadd.f32 %v2699, %v3981
        %v3990 = vadd.f32 %v2700, %v3982
        %v3991 = vadd.f32 %v2701, %v3983
        %v3992 = vadd.f32 %v2702, %v3984
        %s3993 = scalar_lea.vmem [#allocation2], 256
        %3994 = vst [vmem:[%s3993] sm:$0xff] %v3985
        %3995 = vst [vmem:[%s3993 + $0x8] sm:$0xff] %v3986
        %3996 = vst [vmem:[%s3993 + $0x10] sm:$0xff] %v3987
        %3997 = vst [vmem:[%s3993 + $0x18] sm:$0xff] %v3988
        %3998 = vst [vmem:[%s3993 + $0x20] sm:$0xff] %v3989
        %3999 = vst [vmem:[%s3993 + $0x28] sm:$0xff] %v3990
        %4000 = vst [vmem:[%s3993 + $0x30] sm:$0xff] %v3991
        %4001 = vst [vmem:[%s3993 + $0x38] sm:$0xff] %v3992
        %v4002 = vld [vmem:[%s2273] sm:$0xff]
        %v4003 = vld [vmem:[%s2273 + $0x8] sm:$0xff]
        %v4004 = vld [vmem:[%s2273 + $0x10] sm:$0xff]
        %v4005 = vld [vmem:[%s2273 + $0x18] sm:$0xff]
        %v4006 = vld [vmem:[%s2273 + $0x20] sm:$0xff]
        %v4007 = vld [vmem:[%s2273 + $0x28] sm:$0xff]
        %v4008 = vld [vmem:[%s2273 + $0x30] sm:$0xff]
        %v4009 = vld [vmem:[%s2273 + $0x38] sm:$0xff]
        %v4010 = vld [vmem:[%s2686] sm:$0xff]
        %v4011 = vld [vmem:[%s2686 + $0x8] sm:$0xff]
        %v4012 = vld [vmem:[%s2686 + $0x10] sm:$0xff]
        %v4013 = vld [vmem:[%s2686 + $0x18] sm:$0xff]
        %v4014 = vld [vmem:[%s2686 + $0x20] sm:$0xff]
        %v4015 = vld [vmem:[%s2686 + $0x28] sm:$0xff]
        %v4016 = vld [vmem:[%s2686 + $0x30] sm:$0xff]
        %v4017 = vld [vmem:[%s2686 + $0x38] sm:$0xff]
        %4018 = vrot.lane.b32.xlu0 %v4010, 1
        %v4019 = vpop.permute.xlu0 %4018
        %4020 = vrot.lane.b32.xlu0 %v4012, 1
        %v4021 = vpop.permute.xlu0 %4020
        %4022 = vrot.lane.b32.xlu0 %v4014, 1
        %v4023 = vpop.permute.xlu0 %4022
        %4024 = vrot.lane.b32.xlu0 %v4016, 1
        %v4025 = vpop.permute.xlu0 %4024
        %4026 = vrot.lane.b32.xlu0 %v4011, 1
        %v4027 = vpop.permute.xlu0 %4026
        %4028 = vrot.lane.b32.xlu0 %v4013, 1
        %v4029 = vpop.permute.xlu0 %4028
        %4030 = vrot.lane.b32.xlu0 %v4015, 1
        %v4031 = vpop.permute.xlu0 %4030
        %4032 = vrot.lane.b32.xlu0 %v4017, 1
        %v4033 = vpop.permute.xlu0 %4032
        %v4034 = vsel %vm971, %v4019, %v4027
        %v4035 = vsel %vm971, %v4021, %v4029
        %v4036 = vsel %vm971, %v4023, %v4031
        %v4037 = vsel %vm971, %v4025, %v4033
        %v4038 = vsel %vm971, %v4027, %v4019
        %v4039 = vsel %vm971, %v4029, %v4021
        %v4040 = vsel %vm971, %v4031, %v4023
        %v4041 = vsel %vm971, %v4033, %v4025
        %v4042 = vsel %vm2326, %v4038, -1e+30
        %v4043 = vsel %vm2327, %v4034, -1e+30
        %v4044 = vsel %vm2326, %v4039, -1e+30
        %v4045 = vsel %vm2327, %v4035, -1e+30
        %v4046 = vsel %vm2326, %v4040, -1e+30
        %v4047 = vsel %vm2327, %v4036, -1e+30
        %v4048 = vsel %vm2326, %v4041, -1e+30
        %v4049 = vsel %vm2327, %v4037, -1e+30
        %v4050 = vmax.f32 %v4042, %v4010
        %v4051 = vmax.f32 %v4043, %v4011
        %v4052 = vmax.f32 %v4044, %v4012
        %v4053 = vmax.f32 %v4045, %v4013
        %v4054 = vmax.f32 %v4046, %v4014
        %v4055 = vmax.f32 %v4047, %v4015
        %v4056 = vmax.f32 %v4048, %v4016
        %v4057 = vmax.f32 %v4049, %v4017
        %4058 = vrot.lane.b32.xlu0 %v4010, 127
        %v4059 = vpop.permute.xlu0 %4058
        %4060 = vrot.lane.b32.xlu0 %v4012, 127
        %v4061 = vpop.permute.xlu0 %4060
        %4062 = vrot.lane.b32.xlu0 %v4014, 127
        %v4063 = vpop.permute.xlu0 %4062
        %4064 = vrot.lane.b32.xlu0 %v4016, 127
        %v4065 = vpop.permute.xlu0 %4064
        %4066 = vrot.lane.b32.xlu0 %v4011, 127
        %v4067 = vpop.permute.xlu0 %4066
        %4068 = vrot.lane.b32.xlu0 %v4013, 127
        %v4069 = vpop.permute.xlu0 %4068
        %4070 = vrot.lane.b32.xlu0 %v4015, 127
        %v4071 = vpop.permute.xlu0 %4070
        %4072 = vrot.lane.b32.xlu0 %v4017, 127
        %v4073 = vpop.permute.xlu0 %4072
        %v4074 = vsel %vm1012, %v4059, %v4067
        %v4075 = vsel %vm1012, %v4061, %v4069
        %v4076 = vsel %vm1012, %v4063, %v4071
        %v4077 = vsel %vm1012, %v4065, %v4073
        %v4078 = vsel %vm1012, %v4067, %v4059
        %v4079 = vsel %vm1012, %v4069, %v4061
        %v4080 = vsel %vm1012, %v4071, %v4063
        %v4081 = vsel %vm1012, %v4073, %v4065
        %v4082 = vsel %vm2376, %v4074, -1e+30
        %v4083 = vsel %vm2377, %v4078, -1e+30
        %v4084 = vsel %vm2376, %v4075, -1e+30
        %v4085 = vsel %vm2377, %v4079, -1e+30
        %v4086 = vsel %vm2376, %v4076, -1e+30
        %v4087 = vsel %vm2377, %v4080, -1e+30
        %v4088 = vsel %vm2376, %v4077, -1e+30
        %v4089 = vsel %vm2377, %v4081, -1e+30
        %v4090 = vmax.f32 %v4050, %v4082
        %v4091 = vmax.f32 %v4051, %v4083
        %v4092 = vmax.f32 %v4052, %v4084
        %v4093 = vmax.f32 %v4053, %v4085
        %v4094 = vmax.f32 %v4054, %v4086
        %v4095 = vmax.f32 %v4055, %v4087
        %v4096 = vmax.f32 %v4056, %v4088
        %v4097 = vmax.f32 %v4057, %v4089
        %4098 = vrot.lane.b32.xlu0 %v4090, 16
        %v4099 = vpop.permute.xlu0 %4098
        %4100 = vrot.lane.b32.xlu0 %v4092, 16
        %v4101 = vpop.permute.xlu0 %4100
        %4102 = vrot.lane.b32.xlu0 %v4094, 16
        %v4103 = vpop.permute.xlu0 %4102
        %4104 = vrot.lane.b32.xlu0 %v4096, 16
        %v4105 = vpop.permute.xlu0 %4104
        %4106 = vrot.lane.b32.xlu0 %v4091, 16
        %v4107 = vpop.permute.xlu0 %4106
        %4108 = vrot.lane.b32.xlu0 %v4093, 16
        %v4109 = vpop.permute.xlu0 %4108
        %4110 = vrot.lane.b32.xlu0 %v4095, 16
        %v4111 = vpop.permute.xlu0 %4110
        %4112 = vrot.lane.b32.xlu0 %v4097, 16
        %v4113 = vpop.permute.xlu0 %4112
        %v4114 = vsel %vm1397, %v4099, %v4107
        %v4115 = vsel %vm1397, %v4101, %v4109
        %v4116 = vsel %vm1397, %v4103, %v4111
        %v4117 = vsel %vm1397, %v4105, %v4113
        %v4118 = vsel %vm1397, %v4107, %v4099
        %v4119 = vsel %vm1397, %v4109, %v4101
        %v4120 = vsel %vm1397, %v4111, %v4103
        %v4121 = vsel %vm1397, %v4113, %v4105
        %v4122 = vsel %vm2426, %v4118, -1e+30
        %v4123 = vsel %vm2427, %v4114, -1e+30
        %v4124 = vsel %vm2426, %v4119, -1e+30
        %v4125 = vsel %vm2427, %v4115, -1e+30
        %v4126 = vsel %vm2426, %v4120, -1e+30
        %v4127 = vsel %vm2427, %v4116, -1e+30
        %v4128 = vsel %vm2426, %v4121, -1e+30
        %v4129 = vsel %vm2427, %v4117, -1e+30
        %v4130 = vmax.f32 %v4122, %v4090
        %v4131 = vmax.f32 %v4123, %v4091
        %v4132 = vmax.f32 %v4124, %v4092
        %v4133 = vmax.f32 %v4125, %v4093
        %v4134 = vmax.f32 %v4126, %v4094
        %v4135 = vmax.f32 %v4127, %v4095
        %v4136 = vmax.f32 %v4128, %v4096
        %v4137 = vmax.f32 %v4129, %v4097
        %4138 = vrot.lane.b32.xlu0 %v4090, 112
        %v4139 = vpop.permute.xlu0 %4138
        %4140 = vrot.lane.b32.xlu0 %v4092, 112
        %v4141 = vpop.permute.xlu0 %4140
        %4142 = vrot.lane.b32.xlu0 %v4094, 112
        %v4143 = vpop.permute.xlu0 %4142
        %4144 = vrot.lane.b32.xlu0 %v4096, 112
        %v4145 = vpop.permute.xlu0 %4144
        %4146 = vrot.lane.b32.xlu0 %v4091, 112
        %v4147 = vpop.permute.xlu0 %4146
        %4148 = vrot.lane.b32.xlu0 %v4093, 112
        %v4149 = vpop.permute.xlu0 %4148
        %4150 = vrot.lane.b32.xlu0 %v4095, 112
        %v4151 = vpop.permute.xlu0 %4150
        %4152 = vrot.lane.b32.xlu0 %v4097, 112
        %v4153 = vpop.permute.xlu0 %4152
        %v4154 = vsel %vm1446, %v4139, %v4147
        %v4155 = vsel %vm1446, %v4141, %v4149
        %v4156 = vsel %vm1446, %v4143, %v4151
        %v4157 = vsel %vm1446, %v4145, %v4153
        %v4158 = vsel %vm1446, %v4147, %v4139
        %v4159 = vsel %vm1446, %v4149, %v4141
        %v4160 = vsel %vm1446, %v4151, %v4143
        %v4161 = vsel %vm1446, %v4153, %v4145
        %v4162 = vsel %vm2476, %v4154, -1e+30
        %v4163 = vsel %vm2477, %v4158, -1e+30
        %v4164 = vsel %vm2476, %v4155, -1e+30
        %v4165 = vsel %vm2477, %v4159, -1e+30
        %v4166 = vsel %vm2476, %v4156, -1e+30
        %v4167 = vsel %vm2477, %v4160, -1e+30
        %v4168 = vsel %vm2476, %v4157, -1e+30
        %v4169 = vsel %vm2477, %v4161, -1e+30
        %v4170 = vmax.f32 %v4130, %v4162
        %v4171 = vmax.f32 %v4131, %v4163
        %v4172 = vmax.f32 %v4132, %v4164
        %v4173 = vmax.f32 %v4133, %v4165
        %v4174 = vmax.f32 %v4134, %v4166
        %v4175 = vmax.f32 %v4135, %v4167
        %v4176 = vmax.f32 %v4136, %v4168
        %v4177 = vmax.f32 %v4137, %v4169
        %v4178 = vadd.f32 %v4002, %v4170
        %v4179 = vadd.f32 %v4003, %v4171
        %v4180 = vadd.f32 %v4004, %v4172
        %v4181 = vadd.f32 %v4005, %v4173
        %v4182 = vadd.f32 %v4006, %v4174
        %v4183 = vadd.f32 %v4007, %v4175
        %v4184 = vadd.f32 %v4008, %v4176
        %v4185 = vadd.f32 %v4009, %v4177
        %s4186 = scalar_lea.vmem [#allocation2], 320
        %4187 = vst [vmem:[%s4186] sm:$0xff] %v4178
        %4188 = vst [vmem:[%s4186 + $0x8] sm:$0xff] %v4179
        %4189 = vst [vmem:[%s4186 + $0x10] sm:$0xff] %v4180
        %4190 = vst [vmem:[%s4186 + $0x18] sm:$0xff] %v4181
        %4191 = vst [vmem:[%s4186 + $0x20] sm:$0xff] %v4182
        %4192 = vst [vmem:[%s4186 + $0x28] sm:$0xff] %v4183
        %4193 = vst [vmem:[%s4186 + $0x30] sm:$0xff] %v4184
        %4194 = vst [vmem:[%s4186 + $0x38] sm:$0xff] %v4185
        %v4195 = vld [vmem:[%s2273] sm:$0xff]
        %v4196 = vld [vmem:[%s2273 + $0x8] sm:$0xff]
        %v4197 = vld [vmem:[%s2273 + $0x10] sm:$0xff]
        %v4198 = vld [vmem:[%s2273 + $0x18] sm:$0xff]
        %v4199 = vld [vmem:[%s2273 + $0x20] sm:$0xff]
        %v4200 = vld [vmem:[%s2273 + $0x28] sm:$0xff]
        %v4201 = vld [vmem:[%s2273 + $0x30] sm:$0xff]
        %v4202 = vld [vmem:[%s2273 + $0x38] sm:$0xff]
        %v4203 = vld [vmem:[%s2686] sm:$0xff]
        %v4204 = vld [vmem:[%s2686 + $0x8] sm:$0xff]
        %v4205 = vld [vmem:[%s2686 + $0x10] sm:$0xff]
        %v4206 = vld [vmem:[%s2686 + $0x18] sm:$0xff]
        %v4207 = vld [vmem:[%s2686 + $0x20] sm:$0xff]
        %v4208 = vld [vmem:[%s2686 + $0x28] sm:$0xff]
        %v4209 = vld [vmem:[%s2686 + $0x30] sm:$0xff]
        %v4210 = vld [vmem:[%s2686 + $0x38] sm:$0xff]
        %v4211 = vld [vmem:[%s3993] sm:$0xff]
        %v4212 = vld [vmem:[%s3993 + $0x8] sm:$0xff]
        %v4213 = vld [vmem:[%s3993 + $0x10] sm:$0xff]
        %v4214 = vld [vmem:[%s3993 + $0x18] sm:$0xff]
        %v4215 = vld [vmem:[%s3993 + $0x20] sm:$0xff]
        %v4216 = vld [vmem:[%s3993 + $0x28] sm:$0xff]
        %v4217 = vld [vmem:[%s3993 + $0x30] sm:$0xff]
        %v4218 = vld [vmem:[%s3993 + $0x38] sm:$0xff]
        %v4219 = vld [vmem:[%s4186] sm:$0xff]
        %v4220 = vld [vmem:[%s4186 + $0x8] sm:$0xff]
        %v4221 = vld [vmem:[%s4186 + $0x10] sm:$0xff]
        %v4222 = vld [vmem:[%s4186 + $0x18] sm:$0xff]
        %v4223 = vld [vmem:[%s4186 + $0x20] sm:$0xff]
        %v4224 = vld [vmem:[%s4186 + $0x28] sm:$0xff]
        %v4225 = vld [vmem:[%s4186 + $0x30] sm:$0xff]
        %v4226 = vld [vmem:[%s4186 + $0x38] sm:$0xff]
        %4227 = vst [vmem:[%s649] sm:$0xff] %v4195
        %4228 = vst [vmem:[%s649 + $0x8] sm:$0xff] %v4196
        %4229 = vst [vmem:[%s649 + $0x10] sm:$0xff] %v4197
        %4230 = vst [vmem:[%s649 + $0x18] sm:$0xff] %v4198
        %4231 = vst [vmem:[%s649 + $0x20] sm:$0xff] %v4199
        %4232 = vst [vmem:[%s649 + $0x28] sm:$0xff] %v4200
        %4233 = vst [vmem:[%s649 + $0x30] sm:$0xff] %v4201
        %4234 = vst [vmem:[%s649 + $0x38] sm:$0xff] %v4202
        %4235 = vst [vmem:[%s649 + $0x40] sm:$0xff] %v4203
        %4236 = vst [vmem:[%s649 + $0x48] sm:$0xff] %v4204
        %4237 = vst [vmem:[%s649 + $0x50] sm:$0xff] %v4205
        %4238 = vst [vmem:[%s649 + $0x58] sm:$0xff] %v4206
        %4239 = vst [vmem:[%s649 + $0x60] sm:$0xff] %v4207
        %4240 = vst [vmem:[%s649 + $0x68] sm:$0xff] %v4208
        %4241 = vst [vmem:[%s649 + $0x70] sm:$0xff] %v4209
        %4242 = vst [vmem:[%s649 + $0x78] sm:$0xff] %v4210
        %4243 = vst [vmem:[%s649 + $0x80] sm:$0xff] %v4211
        %4244 = vst [vmem:[%s649 + $0x88] sm:$0xff] %v4212
        %4245 = vst [vmem:[%s649 + $0x90] sm:$0xff] %v4213
        %4246 = vst [vmem:[%s649 + $0x98] sm:$0xff] %v4214
        %4247 = vst [vmem:[%s649 + $0xa0] sm:$0xff] %v4215
        %4248 = vst [vmem:[%s649 + $0xa8] sm:$0xff] %v4216
        %4249 = vst [vmem:[%s649 + $0xb0] sm:$0xff] %v4217
        %4250 = vst [vmem:[%s649 + $0xb8] sm:$0xff] %v4218
        %4251 = vst [vmem:[%s649 + $0xc0] sm:$0xff] %v4219
        %4252 = vst [vmem:[%s649 + $0xc8] sm:$0xff] %v4220
        %4253 = vst [vmem:[%s649 + $0xd0] sm:$0xff] %v4221
        %4254 = vst [vmem:[%s649 + $0xd8] sm:$0xff] %v4222
        %4255 = vst [vmem:[%s649 + $0xe0] sm:$0xff] %v4223
        %4256 = vst [vmem:[%s649 + $0xe8] sm:$0xff] %v4224
        %4257 = vst [vmem:[%s649 + $0xf0] sm:$0xff] %v4225
        %4258 = vst [vmem:[%s649 + $0xf8] sm:$0xff] %v4226
        %s4259 = sand.u32 %s489, 1
        %s4260 = scalar_lea.sflag [#allocation4], %s4259
        %s4261 = sand.u32 %s489, 1
        %s4262 = smul.addr %s4261, 256
        %s4263 = scalar_lea.vmem [#allocation3], %s4262
        // Predicated region
        $region105: #{tpu_custom_call.1} parent=103 // pred_check
          %p4264 = pneg %p499
        $region106: #{tpu_custom_call.1} parent=103 // pred_check_branch
          %4266 = sbr.rel (%p4264) target = $region108
        $region107: #{tpu_custom_call.1} parent=103 // pred_region
          %s4268 = ssub.s32 4096, 4096
          %4269 = vsyncadd %s4260, %s4268
          %s4270 = smul.addr %s35, 32
          %s4271 = smul.addr %s4270, 128
          %s4272 = scalar_lea.hbm %s21, %s4271
          %s4273 = sshll.u32 %s4263, 4
          %s4274 = int_to_ptr.vmem [resolvable:$true] %s4273
          %4279 = dma.vmem_to_hbm [thread:$0]  %s4274, 4096, %s4272, %s4260, 256, 256, 16
        $region108: #{tpu_custom_call.1} parent=103 // pred_fallthru
          _
      $region104: #{tpu_custom_call.1} parent=5 // pred_fallthru
        _
      %p4280 = scmp.le.s32.totalorder 2, %s30
      // Predicated region
      $region109: #{tpu_custom_call.1} parent=5 // pred_check
        %p4281 = pneg %p4280
      $region110: #{tpu_custom_call.1} parent=5 // pred_check_branch
        %4283 = sbr.rel (%p4281) target = $region112
      $region111: #{tpu_custom_call.1} parent=5 // pred_region
        %s4284 = ssub.s32 %s30, 2
        // Predicated region
        $region113: #{tpu_custom_call.1} parent=111 // pred_check
          %p4285 = pneg %p505
        $region114: #{tpu_custom_call.1} parent=111 // pred_check_branch
          %4287 = sbr.rel (%p4285) target = $region116
        $region115: #{tpu_custom_call.1} parent=111 // pred_region
          %s4288 = sand.u32 %s490, 1
          %s4289 = scalar_lea.sflag [#allocation4], %s4288
          %s4290 = sand.u32 %s490, 1
          %s4291 = smul.addr %s4290, 256
          %s4292 = scalar_lea.vmem [#allocation3], %s4291
          %4293 = dma.done %s4289, 4096
        $region116: #{tpu_custom_call.1} parent=111 // pred_fallthru
          _
      $region112: #{tpu_custom_call.1} parent=5 // pred_fallthru
        _
    $region6: #{tpu_custom_call.1} parent=1 // loop_footer
      %s34 = sadd.s32 1, %s30
    $region7: #{tpu_custom_call.1} parent=1 // loop_footer_branch
      %29 = sbr.rel target = $region3
    $region8: #{tpu_custom_call.1} parent=1 // loop_exit
      _
    %4294 = vsyncpa [#allocation4], 1
    %s4295 = scalar_lea.sflag [#allocation4], 1
    %4296 = vsyncpa %s4295, 1

</llo_original>
